<compile_context>
chip_gen: v6e
topology: v6e:2x2x1
jax: 0.10.0
libtpu: 0.0.40
codegen_flags: <defaults>
</compile_context>

<pallas_src>
import jax
import jax.numpy as jnp
from jax import lax
from jax.experimental import pallas as pl
from jax.experimental.pallas import tpu as pltpu


def prepare_attention_params(w_qkv, w_proj, b_proj):
    """One-time weight prep.  Call once (outside the per-step path) and cache.

    w_qkv:  (3C, C) PyTorch Linear weight (out, in), out index = (qkv, h, d).
    w_proj: (C, C)  PyTorch Linear weight (out, in).
    b_proj: (C,)    proj bias.
    Returns bf16 (C,3C) qkv weight, bf16 (C,C) proj weight, f32 (1,C) bias.
    """
    wqkv_t = jnp.transpose(w_qkv).astype(jnp.bfloat16)    # (C, 3C): cols = [q | k | v], head-major inside
    wproj_t = jnp.transpose(w_proj).astype(jnp.bfloat16)  # (C_in = H*Dh, C_out)
    bias2d = b_proj.reshape(1, -1).astype(jnp.float32)    # (1, C)
    # TODO(synk): on v7x, optionally store these in fp8 (MXU fp8 path) to halve
    # weight VMEM/DMA bytes; bf16 kept here for accuracy/portability.
    return wqkv_t, wproj_t, bias2d


def attention_forward(x, params, num_heads, *, batch_blocks=1,
                      vmem_limit_bytes=None):
    """x: (B, N, C) f32; params from prepare_attention_params.

    batch_blocks: grid steps the batch is split into.  1 on v5e/v6e (single
    TensorCore -> extra steps are pure overhead), 2 on v7x (dual TC).
    """
    wqkv_t, wproj_t, bias2d = params
    B, N, C = x.shape
    H = num_heads
    Dh = C // H
    assert C % H == 0
    assert B % batch_blocks == 0
    # TODO(synk): for real ViT (N=197) pad tokens to a multiple of 8 in the
    # wrapper and mask padded keys before the softmax; toy N=8 is aligned.
    assert N % 8 == 0
    BB = B // batch_blocks      # batch elements per grid step
    R = BB * N                  # activation rows per grid step
    scale = float(Dh) ** -0.5

    # Fold batch*tokens into the matmul row axis.  Stays f32: the bf16 cast is
    # done inside the kernel (no extra HBM read/write pass in the wrapper).
    x2d = x.reshape(B * N, C)

    def kernel(x_ref, wqkv_ref, wproj_ref, bias_ref, out_ref, attn_ref,
               qkv_ref, om_ref):
        f32, bf16 = jnp.float32, jnp.bfloat16

        # ---- QKV projection: ONE lane-dense (R, C) @ (C, 3C) matmul --------
        # bf16 operands, f32 accumulation; result parked in a VMEM scratch so
        # per-batch / per-head slices are ref loads (bounded live ranges).
        xb = x_ref[...].astype(bf16)                                   # (R, C)
        qkv_ref[...] = jnp.dot(xb, wqkv_ref[...],
                               preferred_element_type=f32)             # (R, 3C) f32

        wproj = wproj_ref[...]                                         # (C, C) bf16
        bias = bias_ref[...]                                           # (1, C) f32

        def batch_body(b, carry):
            r0 = pl.multiple_of(b * N, 8)          # sublane-aligned row offset
            attn_sum = jnp.zeros((N, N), dtype=f32)

            for h in range(H):                      # heads: small static unroll
                # Static lane slices of the fused QKV slab (head-major columns).
                q_h = qkv_ref[pl.ds(r0, N), pl.ds(h * Dh, Dh)].astype(bf16)
                k_h = qkv_ref[pl.ds(r0, N), pl.ds(C + h * Dh, Dh)].astype(bf16)
                v_h = qkv_ref[pl.ds(r0, N), pl.ds(2 * C + h * Dh, Dh)].astype(bf16)

                # scores = (q @ k^T) * scale -- scale applied in f32 AFTER the
                # matmul (matches PyTorch; avoids bf16 rounding of the scale).
                s_h = lax.dot_general(
                    q_h, k_h,
                    dimension_numbers=(((1,), (1,)), ((), ())),
                    preferred_element_type=f32) * scale                # (N, N) f32

                # softmax over keys, strictly f32; exact divide because the
                # attention matrix is a user-visible output.
                m_h = jnp.max(s_h, axis=-1, keepdims=True)
                p_h = jnp.exp(s_h - m_h)
                attn_h = p_h / jnp.sum(p_h, axis=-1, keepdims=True)    # (N, N) f32
                attn_sum = attn_sum + attn_h       # running head-mean numerator

                # attn @ V written straight into the merged (N, C) layout at
                # lane offset h*Dh -> no (H,N,Dh)->(N,C) relayout, no (H,N,C).
                o_h = jnp.dot(attn_h.astype(bf16), v_h,
                              preferred_element_type=f32)              # (N, Dh) f32
                om_ref[:, h * Dh:(h + 1) * Dh] = o_h.astype(bf16)

            # Head-mean attention output; stored before the proj matmul so the
            # only thing live across it is the merged bf16 (N, C) scratch.
            attn_ref[b] = (attn_sum * (1.0 / H)).astype(attn_ref.dtype)

            # Head-merge + output projection fused into ONE lane-dense matmul
            # with K = C contraction depth, then the f32 bias add.
            out_b = jnp.dot(om_ref[...], wproj,
                            preferred_element_type=f32) + bias         # (N, C) f32
            out_ref[pl.ds(r0, N), :] = out_b.astype(out_ref.dtype)
            return carry

        lax.fori_loop(0, BB, batch_body, 0, unroll=True)

    out_shapes = (
        jax.ShapeDtypeStruct((B * N, C), jnp.float32),
        jax.ShapeDtypeStruct((B, N, N), jnp.float32),
    )

    grid_spec = pltpu.PrefetchScalarGridSpec(
        num_scalar_prefetch=0,
        grid=(batch_blocks,),
        in_specs=[
            pl.BlockSpec((R, C), lambda i: (i, 0)),           # activations (f32)
            pl.BlockSpec((C, 3 * C), lambda i: (0, 0)),       # fused QKV weight (resident)
            pl.BlockSpec((C, C), lambda i: (0, 0)),           # proj weight (resident)
            pl.BlockSpec((1, C), lambda i: (0, 0)),           # proj bias
        ],
        out_specs=[
            pl.BlockSpec((R, C), lambda i: (i, 0)),           # output rows
            pl.BlockSpec((BB, N, N), lambda i: (i, 0, 0)),    # head-mean attention
        ],
        scratch_shapes=[
            pltpu.VMEM((R, 3 * C), jnp.float32),   # fused QKV slab for this block
            pltpu.VMEM((N, C), jnp.bfloat16),      # merged attn@V, proj operand
        ],
    )

    cp_kwargs = dict(dimension_semantics=("parallel",))
    if vmem_limit_bytes is not None:
        cp_kwargs["vmem_limit_bytes"] = int(vmem_limit_bytes)

    out2d, attn_mean = pl.pallas_call(
        kernel,
        out_shape=out_shapes,
        grid_spec=grid_spec,
        compiler_params=pltpu.CompilerParams(**cp_kwargs),
    )(x2d, wqkv_t, wproj_t, bias2d)

    return out2d.reshape(B, N, C), attn_mean


def attention_reference(x, w_qkv, w_proj, b_proj, num_heads):
    """Pure-JAX f32 reference mirroring the PyTorch forward exactly."""
    B, N, C = x.shape
    H = num_heads
    Dh = C // H
    scale = float(Dh) ** -0.5
    qkv = jnp.einsum('bnc,oc->bno', x, w_qkv)          # Linear, no bias
    qkv = qkv.reshape(B, N, 3, H, Dh).transpose(2, 0, 3, 1, 4)
    q, k, v = qkv[0], qkv[1], qkv[2]                   # (B, H, N, Dh)
    attn = jnp.einsum('bhnd,bhmd->bhnm', q, k) * scale
    attn = jax.nn.softmax(attn, axis=-1)
    o = jnp.einsum('bhnm,bhmd->bhnd', attn, v)
    o = o.transpose(0, 2, 1, 3).reshape(B, N, C)
    out = jnp.einsum('bnc,oc->bno', o, w_proj) + b_proj
    return out, attn.mean(axis=1)


if __name__ == "__main__":
    # Small shapes consistent with the module: B=2 batch, N=8 tokens, C=32 dim,
    # num_heads=8 -> head_dim=4.
    B, N, C, H = 2, 8, 32, 8

    key = jax.random.PRNGKey(0)
    kx, kqkv, kproj, kb = jax.random.split(key, 4)

    x = jax.random.normal(kx, (B, N, C), dtype=jnp.float32)
    # PyTorch Linear weight shapes: (out_features, in_features).
    w_qkv = jax.random.normal(kqkv, (3 * C, C), dtype=jnp.float32) * (C ** -0.5)
    w_proj = jax.random.normal(kproj, (C, C), dtype=jnp.float32) * (C ** -0.5)
    b_proj = jax.random.normal(kb, (C,), dtype=jnp.float32) * 0.02

    ref_out, ref_attn = attention_reference(x, w_qkv, w_proj, b_proj, H)

    # Weight prep done ONCE (cache/hoist this in a real model loop).
    params = prepare_attention_params(w_qkv, w_proj, b_proj)

    # Default: whole batch folded into a single grid step (v5e/v6e).
    out, attn_mean = attention_forward(x, params, H)
    out = jax.block_until_ready(out)
    attn_mean = jax.block_until_ready(attn_mean)
    assert out.shape == (B, N, C) and attn_mean.shape == (B, N, N)
    # bf16 matmul operands -> loosened tolerances.
    assert jnp.allclose(out, ref_out, atol=5e-2, rtol=5e-2)
    assert jnp.allclose(attn_mean, ref_attn, atol=2e-2, rtol=5e-2)

    # v7x-style split: two grid steps ("parallel") so both TensorCores get work.
    out2, attn_mean2 = attention_forward(x, params, H, batch_blocks=2)
    out2 = jax.block_until_ready(out2)
    attn_mean2 = jax.block_until_ready(attn_mean2)
    assert jnp.allclose(out2, ref_out, atol=5e-2, rtol=5e-2)
    assert jnp.allclose(attn_mean2, ref_attn, atol=2e-2, rtol=5e-2)

    print("KERNEL_OK")
</pallas_src>

<mosaic_0001>
module attributes {stable_mosaic.version = 11 : i64} {
  func.func @kernel(%arg0: i32, %arg1: memref<16x32xf32, #tpu.memory_space<vmem>>, %arg2: memref<32x96xbf16, #tpu.memory_space<vmem>>, %arg3: memref<32x32xbf16, #tpu.memory_space<vmem>>, %arg4: memref<1x32xf32, #tpu.memory_space<vmem>>, %arg5: memref<16x32xf32, #tpu.memory_space<vmem>>, %arg6: memref<2x8x8xf32, #tpu.memory_space<vmem>>, %arg7: memref<16x96xf32, #tpu.memory_space<vmem>>, %arg8: memref<8x32xbf16, #tpu.memory_space<vmem>>) attributes {dimension_semantics = [#tpu.dimension_semantics<parallel>], iteration_bounds = array<i64: 1>, scalar_prefetch = 0 : i64, scratch_operands = 2 : i64, tpu.core_type = #tpu.core_type<tc>, window_params = [{transform_indices = @transform_0, window_bounds = array<i64: 16, 32>}, {pipeline_mode = #tpu.pipeline_mode<synchronous>, transform_indices = @transform_1, window_bounds = array<i64: 32, 96>}, {pipeline_mode = #tpu.pipeline_mode<synchronous>, transform_indices = @transform_2, window_bounds = array<i64: 32, 32>}, {pipeline_mode = #tpu.pipeline_mode<synchronous>, transform_indices = @transform_3, window_bounds = array<i64: 1, 32>}, {transform_indices = @transform_4, window_bounds = array<i64: 16, 32>}, {transform_indices = @transform_5, window_bounds = array<i64: 2, 8, 8>}]} {
    %c0 = arith.constant 0 : index
    %c0_0 = arith.constant 0 : index
    %0 = vector.load %arg1[%c0, %c0_0] : memref<16x32xf32, #tpu.memory_space<vmem>>, vector<16x32xf32>
    %1 = arith.truncf %0 : vector<16x32xf32> to vector<16x32xbf16>
    %c0_1 = arith.constant 0 : index
    %c0_2 = arith.constant 0 : index
    %2 = vector.load %arg2[%c0_1, %c0_2] : memref<32x96xbf16, #tpu.memory_space<vmem>>, vector<32x96xbf16>
    %cst = arith.constant dense<0.000000e+00> : vector<16x96xf32>
    %3 = tpu.matmul %1, %2, %cst {dimension_numbers = #tpu.dot_dimension_numbers<[1], [0], [0], [1], [0, 0, 1, 1], [], []>} : vector<16x32xbf16>, vector<32x96xbf16>, vector<16x96xf32> -> vector<16x96xf32>
    %c0_3 = arith.constant 0 : index
    %c0_4 = arith.constant 0 : index
    %4 = vector.load %arg7[%c0_3, %c0_4] : memref<16x96xf32, #tpu.memory_space<vmem>>, vector<16x96xf32>
    tpu.vector_store %arg7[%c0_3, %c0_4], %3 {strides = array<i32>} : memref<16x96xf32, #tpu.memory_space<vmem>>, vector<16x96xf32>,
    %c0_5 = arith.constant 0 : index
    %c0_6 = arith.constant 0 : index
    %5 = vector.load %arg3[%c0_5, %c0_6] : memref<32x32xbf16, #tpu.memory_space<vmem>>, vector<32x32xbf16>
    %c0_7 = arith.constant 0 : index
    %c0_8 = arith.constant 0 : index
    %6 = vector.load %arg4[%c0_7, %c0_8] : memref<1x32xf32, #tpu.memory_space<vmem>>, vector<1x32xf32>
    %c0_i32 = arith.constant 0 : i32
    %c8_i32 = arith.constant 8 : i32
    %7 = arith.muli %c0_i32, %c8_i32 : i32
    %8 = tpu.assume_multiple %7, 8 : i32
    %cst_9 = arith.constant 0.000000e+00 : f32
    %9 = vector.broadcast %cst_9 : f32 to vector<8x8xf32>
    %10 = arith.index_cast %8 : i32 to index
    %c0_10 = arith.constant 0 : index
    %11 = vector.load %arg7[%10, %c0_10] : memref<16x96xf32, #tpu.memory_space<vmem>>, vector<8x4xf32>
    %12 = arith.truncf %11 : vector<8x4xf32> to vector<8x4xbf16>
    %13 = arith.index_cast %8 : i32 to index
    %c32 = arith.constant 32 : index
    %14 = vector.load %arg7[%13, %c32] : memref<16x96xf32, #tpu.memory_space<vmem>>, vector<8x4xf32>
    %15 = arith.truncf %14 : vector<8x4xf32> to vector<8x4xbf16>
    %16 = arith.index_cast %8 : i32 to index
    %c64 = arith.constant 64 : index
    %17 = vector.load %arg7[%16, %c64] : memref<16x96xf32, #tpu.memory_space<vmem>>, vector<8x4xf32>
    %18 = arith.truncf %17 : vector<8x4xf32> to vector<8x4xbf16>
    %cst_11 = arith.constant dense<0.000000e+00> : vector<8x8xf32>
    %19 = tpu.matmul %12, %15, %cst_11 {dimension_numbers = #tpu.dot_dimension_numbers<[1], [1], [0], [0], [0, 0, 1, 0], [], []>} : vector<8x4xbf16>, vector<8x4xbf16>, vector<8x8xf32> -> vector<8x8xf32>
    %cst_12 = arith.constant 5.000000e-01 : f32
    %20 = vector.broadcast %cst_12 : f32 to vector<8x8xf32>
    %21 = arith.mulf %19, %20 : vector<8x8xf32>
    %cst_13 = arith.constant dense<0xFF800000> : vector<8xf32>
    %22 = vector.multi_reduction <maximumf>, %21, %cst_13 [1] : vector<8x8xf32> to vector<8xf32>
    %23 = vector.shape_cast %22 : vector<8xf32> to vector<8x1xf32>
    %24 = vector.broadcast %23 : vector<8x1xf32> to vector<8x8xf32>
    %25 = arith.subf %21, %24 : vector<8x8xf32>
    %26 = math.exp %25 : vector<8x8xf32>
    %cst_14 = arith.constant dense<0.000000e+00> : vector<8xf32>
    %27 = vector.multi_reduction <add>, %26, %cst_14 [1] : vector<8x8xf32> to vector<8xf32>
    %28 = vector.shape_cast %27 : vector<8xf32> to vector<8x1xf32>
    %29 = vector.broadcast %28 : vector<8x1xf32> to vector<8x8xf32>
    %30 = arith.divf %26, %29 : vector<8x8xf32>
    %31 = arith.addf %9, %30 : vector<8x8xf32>
    %32 = arith.truncf %30 : vector<8x8xf32> to vector<8x8xbf16>
    %cst_15 = arith.constant dense<0.000000e+00> : vector<8x4xf32>
    %33 = tpu.matmul %32, %18, %cst_15 {dimension_numbers = #tpu.dot_dimension_numbers<[1], [0], [0], [1], [0, 0, 1, 1], [], []>} : vector<8x8xbf16>, vector<8x4xbf16>, vector<8x4xf32> -> vector<8x4xf32>
    %34 = arith.truncf %33 : vector<8x4xf32> to vector<8x4xbf16>
    %c0_16 = arith.constant 0 : index
    %c0_17 = arith.constant 0 : index
    %35 = vector.load %arg8[%c0_16, %c0_17] : memref<8x32xbf16, #tpu.memory_space<vmem>>, vector<8x4xbf16>
    tpu.vector_store %arg8[%c0_16, %c0_17], %34 {strides = array<i32>} : memref<8x32xbf16, #tpu.memory_space<vmem>>, vector<8x4xbf16>,
    %36 = arith.index_cast %8 : i32 to index
    %c4 = arith.constant 4 : index
    %37 = vector.load %arg7[%36, %c4] : memref<16x96xf32, #tpu.memory_space<vmem>>, vector<8x4xf32>
    %38 = arith.truncf %37 : vector<8x4xf32> to vector<8x4xbf16>
    %39 = arith.index_cast %8 : i32 to index
    %c36 = arith.constant 36 : index
    %40 = vector.load %arg7[%39, %c36] : memref<16x96xf32, #tpu.memory_space<vmem>>, vector<8x4xf32>
    %41 = arith.truncf %40 : vector<8x4xf32> to vector<8x4xbf16>
    %42 = arith.index_cast %8 : i32 to index
    %c68 = arith.constant 68 : index
    %43 = vector.load %arg7[%42, %c68] : memref<16x96xf32, #tpu.memory_space<vmem>>, vector<8x4xf32>
    %44 = arith.truncf %43 : vector<8x4xf32> to vector<8x4xbf16>
    %cst_18 = arith.constant dense<0.000000e+00> : vector<8x8xf32>
    %45 = tpu.matmul %38, %41, %cst_18 {dimension_numbers = #tpu.dot_dimension_numbers<[1], [1], [0], [0], [0, 0, 1, 0], [], []>} : vector<8x4xbf16>, vector<8x4xbf16>, vector<8x8xf32> -> vector<8x8xf32>
    %cst_19 = arith.constant 5.000000e-01 : f32
    %46 = vector.broadcast %cst_19 : f32 to vector<8x8xf32>
    %47 = arith.mulf %45, %46 : vector<8x8xf32>
    %cst_20 = arith.constant dense<0xFF800000> : vector<8xf32>
    %48 = vector.multi_reduction <maximumf>, %47, %cst_20 [1] : vector<8x8xf32> to vector<8xf32>
    %49 = vector.shape_cast %48 : vector<8xf32> to vector<8x1xf32>
    %50 = vector.broadcast %49 : vector<8x1xf32> to vector<8x8xf32>
    %51 = arith.subf %47, %50 : vector<8x8xf32>
    %52 = math.exp %51 : vector<8x8xf32>
    %cst_21 = arith.constant dense<0.000000e+00> : vector<8xf32>
    %53 = vector.multi_reduction <add>, %52, %cst_21 [1] : vector<8x8xf32> to vector<8xf32>
    %54 = vector.shape_cast %53 : vector<8xf32> to vector<8x1xf32>
    %55 = vector.broadcast %54 : vector<8x1xf32> to vector<8x8xf32>
    %56 = arith.divf %52, %55 : vector<8x8xf32>
    %57 = arith.addf %31, %56 : vector<8x8xf32>
    %58 = arith.truncf %56 : vector<8x8xf32> to vector<8x8xbf16>
    %cst_22 = arith.constant dense<0.000000e+00> : vector<8x4xf32>
    %59 = tpu.matmul %58, %44, %cst_22 {dimension_numbers = #tpu.dot_dimension_numbers<[1], [0], [0], [1], [0, 0, 1, 1], [], []>} : vector<8x8xbf16>, vector<8x4xbf16>, vector<8x4xf32> -> vector<8x4xf32>
    %60 = arith.truncf %59 : vector<8x4xf32> to vector<8x4xbf16>
    %c0_23 = arith.constant 0 : index
    %c4_24 = arith.constant 4 : index
    %61 = vector.load %arg8[%c0_23, %c4_24] : memref<8x32xbf16, #tpu.memory_space<vmem>>, vector<8x4xbf16>
    tpu.vector_store %arg8[%c0_23, %c4_24], %60 {strides = array<i32>} : memref<8x32xbf16, #tpu.memory_space<vmem>>, vector<8x4xbf16>,
    %62 = arith.index_cast %8 : i32 to index
    %c8 = arith.constant 8 : index
    %63 = vector.load %arg7[%62, %c8] : memref<16x96xf32, #tpu.memory_space<vmem>>, vector<8x4xf32>
    %64 = arith.truncf %63 : vector<8x4xf32> to vector<8x4xbf16>
    %65 = arith.index_cast %8 : i32 to index
    %c40 = arith.constant 40 : index
    %66 = vector.load %arg7[%65, %c40] : memref<16x96xf32, #tpu.memory_space<vmem>>, vector<8x4xf32>
    %67 = arith.truncf %66 : vector<8x4xf32> to vector<8x4xbf16>
    %68 = arith.index_cast %8 : i32 to index
    %c72 = arith.constant 72 : index
    %69 = vector.load %arg7[%68, %c72] : memref<16x96xf32, #tpu.memory_space<vmem>>, vector<8x4xf32>
    %70 = arith.truncf %69 : vector<8x4xf32> to vector<8x4xbf16>
    %cst_25 = arith.constant dense<0.000000e+00> : vector<8x8xf32>
    %71 = tpu.matmul %64, %67, %cst_25 {dimension_numbers = #tpu.dot_dimension_numbers<[1], [1], [0], [0], [0, 0, 1, 0], [], []>} : vector<8x4xbf16>, vector<8x4xbf16>, vector<8x8xf32> -> vector<8x8xf32>
    %cst_26 = arith.constant 5.000000e-01 : f32
    %72 = vector.broadcast %cst_26 : f32 to vector<8x8xf32>
    %73 = arith.mulf %71, %72 : vector<8x8xf32>
    %cst_27 = arith.constant dense<0xFF800000> : vector<8xf32>
    %74 = vector.multi_reduction <maximumf>, %73, %cst_27 [1] : vector<8x8xf32> to vector<8xf32>
    %75 = vector.shape_cast %74 : vector<8xf32> to vector<8x1xf32>
    %76 = vector.broadcast %75 : vector<8x1xf32> to vector<8x8xf32>
    %77 = arith.subf %73, %76 : vector<8x8xf32>
    %78 = math.exp %77 : vector<8x8xf32>
    %cst_28 = arith.constant dense<0.000000e+00> : vector<8xf32>
    %79 = vector.multi_reduction <add>, %78, %cst_28 [1] : vector<8x8xf32> to vector<8xf32>
    %80 = vector.shape_cast %79 : vector<8xf32> to vector<8x1xf32>
    %81 = vector.broadcast %80 : vector<8x1xf32> to vector<8x8xf32>
    %82 = arith.divf %78, %81 : vector<8x8xf32>
    %83 = arith.addf %57, %82 : vector<8x8xf32>
    %84 = arith.truncf %82 : vector<8x8xf32> to vector<8x8xbf16>
    %cst_29 = arith.constant dense<0.000000e+00> : vector<8x4xf32>
    %85 = tpu.matmul %84, %70, %cst_29 {dimension_numbers = #tpu.dot_dimension_numbers<[1], [0], [0], [1], [0, 0, 1, 1], [], []>} : vector<8x8xbf16>, vector<8x4xbf16>, vector<8x4xf32> -> vector<8x4xf32>
    %86 = arith.truncf %85 : vector<8x4xf32> to vector<8x4xbf16>
    %c0_30 = arith.constant 0 : index
    %c8_31 = arith.constant 8 : index
    %87 = vector.load %arg8[%c0_30, %c8_31] : memref<8x32xbf16, #tpu.memory_space<vmem>>, vector<8x4xbf16>
    tpu.vector_store %arg8[%c0_30, %c8_31], %86 {strides = array<i32>} : memref<8x32xbf16, #tpu.memory_space<vmem>>, vector<8x4xbf16>,
    %88 = arith.index_cast %8 : i32 to index
    %c12 = arith.constant 12 : index
    %89 = vector.load %arg7[%88, %c12] : memref<16x96xf32, #tpu.memory_space<vmem>>, vector<8x4xf32>
    %90 = arith.truncf %89 : vector<8x4xf32> to vector<8x4xbf16>
    %91 = arith.index_cast %8 : i32 to index
    %c44 = arith.constant 44 : index
    %92 = vector.load %arg7[%91, %c44] : memref<16x96xf32, #tpu.memory_space<vmem>>, vector<8x4xf32>
    %93 = arith.truncf %92 : vector<8x4xf32> to vector<8x4xbf16>
    %94 = arith.index_cast %8 : i32 to index
    %c76 = arith.constant 76 : index
    %95 = vector.load %arg7[%94, %c76] : memref<16x96xf32, #tpu.memory_space<vmem>>, vector<8x4xf32>
    %96 = arith.truncf %95 : vector<8x4xf32> to vector<8x4xbf16>
    %cst_32 = arith.constant dense<0.000000e+00> : vector<8x8xf32>
    %97 = tpu.matmul %90, %93, %cst_32 {dimension_numbers = #tpu.dot_dimension_numbers<[1], [1], [0], [0], [0, 0, 1, 0], [], []>} : vector<8x4xbf16>, vector<8x4xbf16>, vector<8x8xf32> -> vector<8x8xf32>
    %cst_33 = arith.constant 5.000000e-01 : f32
    %98 = vector.broadcast %cst_33 : f32 to vector<8x8xf32>
    %99 = arith.mulf %97, %98 : vector<8x8xf32>
    %cst_34 = arith.constant dense<0xFF800000> : vector<8xf32>
    %100 = vector.multi_reduction <maximumf>, %99, %cst_34 [1] : vector<8x8xf32> to vector<8xf32>
    %101 = vector.shape_cast %100 : vector<8xf32> to vector<8x1xf32>
    %102 = vector.broadcast %101 : vector<8x1xf32> to vector<8x8xf32>
    %103 = arith.subf %99, %102 : vector<8x8xf32>
    %104 = math.exp %103 : vector<8x8xf32>
    %cst_35 = arith.constant dense<0.000000e+00> : vector<8xf32>
    %105 = vector.multi_reduction <add>, %104, %cst_35 [1] : vector<8x8xf32> to vector<8xf32>
    %106 = vector.shape_cast %105 : vector<8xf32> to vector<8x1xf32>
    %107 = vector.broadcast %106 : vector<8x1xf32> to vector<8x8xf32>
    %108 = arith.divf %104, %107 : vector<8x8xf32>
    %109 = arith.addf %83, %108 : vector<8x8xf32>
    %110 = arith.truncf %108 : vector<8x8xf32> to vector<8x8xbf16>
    %cst_36 = arith.constant dense<0.000000e+00> : vector<8x4xf32>
    %111 = tpu.matmul %110, %96, %cst_36 {dimension_numbers = #tpu.dot_dimension_numbers<[1], [0], [0], [1], [0, 0, 1, 1], [], []>} : vector<8x8xbf16>, vector<8x4xbf16>, vector<8x4xf32> -> vector<8x4xf32>
    %112 = arith.truncf %111 : vector<8x4xf32> to vector<8x4xbf16>
    %c0_37 = arith.constant 0 : index
    %c12_38 = arith.constant 12 : index
    %113 = vector.load %arg8[%c0_37, %c12_38] : memref<8x32xbf16, #tpu.memory_space<vmem>>, vector<8x4xbf16>
    tpu.vector_store %arg8[%c0_37, %c12_38], %112 {strides = array<i32>} : memref<8x32xbf16, #tpu.memory_space<vmem>>, vector<8x4xbf16>,
    %114 = arith.index_cast %8 : i32 to index
    %c16 = arith.constant 16 : index
    %115 = vector.load %arg7[%114, %c16] : memref<16x96xf32, #tpu.memory_space<vmem>>, vector<8x4xf32>
    %116 = arith.truncf %115 : vector<8x4xf32> to vector<8x4xbf16>
    %117 = arith.index_cast %8 : i32 to index
    %c48 = arith.constant 48 : index
    %118 = vector.load %arg7[%117, %c48] : memref<16x96xf32, #tpu.memory_space<vmem>>, vector<8x4xf32>
    %119 = arith.truncf %118 : vector<8x4xf32> to vector<8x4xbf16>
    %120 = arith.index_cast %8 : i32 to index
    %c80 = arith.constant 80 : index
    %121 = vector.load %arg7[%120, %c80] : memref<16x96xf32, #tpu.memory_space<vmem>>, vector<8x4xf32>
    %122 = arith.truncf %121 : vector<8x4xf32> to vector<8x4xbf16>
    %cst_39 = arith.constant dense<0.000000e+00> : vector<8x8xf32>
    %123 = tpu.matmul %116, %119, %cst_39 {dimension_numbers = #tpu.dot_dimension_numbers<[1], [1], [0], [0], [0, 0, 1, 0], [], []>} : vector<8x4xbf16>, vector<8x4xbf16>, vector<8x8xf32> -> vector<8x8xf32>
    %cst_40 = arith.constant 5.000000e-01 : f32
    %124 = vector.broadcast %cst_40 : f32 to vector<8x8xf32>
    %125 = arith.mulf %123, %124 : vector<8x8xf32>
    %cst_41 = arith.constant dense<0xFF800000> : vector<8xf32>
    %126 = vector.multi_reduction <maximumf>, %125, %cst_41 [1] : vector<8x8xf32> to vector<8xf32>
    %127 = vector.shape_cast %126 : vector<8xf32> to vector<8x1xf32>
    %128 = vector.broadcast %127 : vector<8x1xf32> to vector<8x8xf32>
    %129 = arith.subf %125, %128 : vector<8x8xf32>
    %130 = math.exp %129 : vector<8x8xf32>
    %cst_42 = arith.constant dense<0.000000e+00> : vector<8xf32>
    %131 = vector.multi_reduction <add>, %130, %cst_42 [1] : vector<8x8xf32> to vector<8xf32>
    %132 = vector.shape_cast %131 : vector<8xf32> to vector<8x1xf32>
    %133 = vector.broadcast %132 : vector<8x1xf32> to vector<8x8xf32>
    %134 = arith.divf %130, %133 : vector<8x8xf32>
    %135 = arith.addf %109, %134 : vector<8x8xf32>
    %136 = arith.truncf %134 : vector<8x8xf32> to vector<8x8xbf16>
    %cst_43 = arith.constant dense<0.000000e+00> : vector<8x4xf32>
    %137 = tpu.matmul %136, %122, %cst_43 {dimension_numbers = #tpu.dot_dimension_numbers<[1], [0], [0], [1], [0, 0, 1, 1], [], []>} : vector<8x8xbf16>, vector<8x4xbf16>, vector<8x4xf32> -> vector<8x4xf32>
    %138 = arith.truncf %137 : vector<8x4xf32> to vector<8x4xbf16>
    %c0_44 = arith.constant 0 : index
    %c16_45 = arith.constant 16 : index
    %139 = vector.load %arg8[%c0_44, %c16_45] : memref<8x32xbf16, #tpu.memory_space<vmem>>, vector<8x4xbf16>
    tpu.vector_store %arg8[%c0_44, %c16_45], %138 {strides = array<i32>} : memref<8x32xbf16, #tpu.memory_space<vmem>>, vector<8x4xbf16>,
    %140 = arith.index_cast %8 : i32 to index
    %c20 = arith.constant 20 : index
    %141 = vector.load %arg7[%140, %c20] : memref<16x96xf32, #tpu.memory_space<vmem>>, vector<8x4xf32>
    %142 = arith.truncf %141 : vector<8x4xf32> to vector<8x4xbf16>
    %143 = arith.index_cast %8 : i32 to index
    %c52 = arith.constant 52 : index
    %144 = vector.load %arg7[%143, %c52] : memref<16x96xf32, #tpu.memory_space<vmem>>, vector<8x4xf32>
    %145 = arith.truncf %144 : vector<8x4xf32> to vector<8x4xbf16>
    %146 = arith.index_cast %8 : i32 to index
    %c84 = arith.constant 84 : index
    %147 = vector.load %arg7[%146, %c84] : memref<16x96xf32, #tpu.memory_space<vmem>>, vector<8x4xf32>
    %148 = arith.truncf %147 : vector<8x4xf32> to vector<8x4xbf16>
    %cst_46 = arith.constant dense<0.000000e+00> : vector<8x8xf32>
    %149 = tpu.matmul %142, %145, %cst_46 {dimension_numbers = #tpu.dot_dimension_numbers<[1], [1], [0], [0], [0, 0, 1, 0], [], []>} : vector<8x4xbf16>, vector<8x4xbf16>, vector<8x8xf32> -> vector<8x8xf32>
    %cst_47 = arith.constant 5.000000e-01 : f32
    %150 = vector.broadcast %cst_47 : f32 to vector<8x8xf32>
    %151 = arith.mulf %149, %150 : vector<8x8xf32>
    %cst_48 = arith.constant dense<0xFF800000> : vector<8xf32>
    %152 = vector.multi_reduction <maximumf>, %151, %cst_48 [1] : vector<8x8xf32> to vector<8xf32>
    %153 = vector.shape_cast %152 : vector<8xf32> to vector<8x1xf32>
    %154 = vector.broadcast %153 : vector<8x1xf32> to vector<8x8xf32>
    %155 = arith.subf %151, %154 : vector<8x8xf32>
    %156 = math.exp %155 : vector<8x8xf32>
    %cst_49 = arith.constant dense<0.000000e+00> : vector<8xf32>
    %157 = vector.multi_reduction <add>, %156, %cst_49 [1] : vector<8x8xf32> to vector<8xf32>
    %158 = vector.shape_cast %157 : vector<8xf32> to vector<8x1xf32>
    %159 = vector.broadcast %158 : vector<8x1xf32> to vector<8x8xf32>
    %160 = arith.divf %156, %159 : vector<8x8xf32>
    %161 = arith.addf %135, %160 : vector<8x8xf32>
    %162 = arith.truncf %160 : vector<8x8xf32> to vector<8x8xbf16>
    %cst_50 = arith.constant dense<0.000000e+00> : vector<8x4xf32>
    %163 = tpu.matmul %162, %148, %cst_50 {dimension_numbers = #tpu.dot_dimension_numbers<[1], [0], [0], [1], [0, 0, 1, 1], [], []>} : vector<8x8xbf16>, vector<8x4xbf16>, vector<8x4xf32> -> vector<8x4xf32>
    %164 = arith.truncf %163 : vector<8x4xf32> to vector<8x4xbf16>
    %c0_51 = arith.constant 0 : index
    %c20_52 = arith.constant 20 : index
    %165 = vector.load %arg8[%c0_51, %c20_52] : memref<8x32xbf16, #tpu.memory_space<vmem>>, vector<8x4xbf16>
    tpu.vector_store %arg8[%c0_51, %c20_52], %164 {strides = array<i32>} : memref<8x32xbf16, #tpu.memory_space<vmem>>, vector<8x4xbf16>,
    %166 = arith.index_cast %8 : i32 to index
    %c24 = arith.constant 24 : index
    %167 = vector.load %arg7[%166, %c24] : memref<16x96xf32, #tpu.memory_space<vmem>>, vector<8x4xf32>
    %168 = arith.truncf %167 : vector<8x4xf32> to vector<8x4xbf16>
    %169 = arith.index_cast %8 : i32 to index
    %c56 = arith.constant 56 : index
    %170 = vector.load %arg7[%169, %c56] : memref<16x96xf32, #tpu.memory_space<vmem>>, vector<8x4xf32>
    %171 = arith.truncf %170 : vector<8x4xf32> to vector<8x4xbf16>
    %172 = arith.index_cast %8 : i32 to index
    %c88 = arith.constant 88 : index
    %173 = vector.load %arg7[%172, %c88] : memref<16x96xf32, #tpu.memory_space<vmem>>, vector<8x4xf32>
    %174 = arith.truncf %173 : vector<8x4xf32> to vector<8x4xbf16>
    %cst_53 = arith.constant dense<0.000000e+00> : vector<8x8xf32>
    %175 = tpu.matmul %168, %171, %cst_53 {dimension_numbers = #tpu.dot_dimension_numbers<[1], [1], [0], [0], [0, 0, 1, 0], [], []>} : vector<8x4xbf16>, vector<8x4xbf16>, vector<8x8xf32> -> vector<8x8xf32>
    %cst_54 = arith.constant 5.000000e-01 : f32
    %176 = vector.broadcast %cst_54 : f32 to vector<8x8xf32>
    %177 = arith.mulf %175, %176 : vector<8x8xf32>
    %cst_55 = arith.constant dense<0xFF800000> : vector<8xf32>
    %178 = vector.multi_reduction <maximumf>, %177, %cst_55 [1] : vector<8x8xf32> to vector<8xf32>
    %179 = vector.shape_cast %178 : vector<8xf32> to vector<8x1xf32>
    %180 = vector.broadcast %179 : vector<8x1xf32> to vector<8x8xf32>
    %181 = arith.subf %177, %180 : vector<8x8xf32>
    %182 = math.exp %181 : vector<8x8xf32>
    %cst_56 = arith.constant dense<0.000000e+00> : vector<8xf32>
    %183 = vector.multi_reduction <add>, %182, %cst_56 [1] : vector<8x8xf32> to vector<8xf32>
    %184 = vector.shape_cast %183 : vector<8xf32> to vector<8x1xf32>
    %185 = vector.broadcast %184 : vector<8x1xf32> to vector<8x8xf32>
    %186 = arith.divf %182, %185 : vector<8x8xf32>
    %187 = arith.addf %161, %186 : vector<8x8xf32>
    %188 = arith.truncf %186 : vector<8x8xf32> to vector<8x8xbf16>
    %cst_57 = arith.constant dense<0.000000e+00> : vector<8x4xf32>
    %189 = tpu.matmul %188, %174, %cst_57 {dimension_numbers = #tpu.dot_dimension_numbers<[1], [0], [0], [1], [0, 0, 1, 1], [], []>} : vector<8x8xbf16>, vector<8x4xbf16>, vector<8x4xf32> -> vector<8x4xf32>
    %190 = arith.truncf %189 : vector<8x4xf32> to vector<8x4xbf16>
    %c0_58 = arith.constant 0 : index
    %c24_59 = arith.constant 24 : index
    %191 = vector.load %arg8[%c0_58, %c24_59] : memref<8x32xbf16, #tpu.memory_space<vmem>>, vector<8x4xbf16>
    tpu.vector_store %arg8[%c0_58, %c24_59], %190 {strides = array<i32>} : memref<8x32xbf16, #tpu.memory_space<vmem>>, vector<8x4xbf16>,
    %192 = arith.index_cast %8 : i32 to index
    %c28 = arith.constant 28 : index
    %193 = vector.load %arg7[%192, %c28] : memref<16x96xf32, #tpu.memory_space<vmem>>, vector<8x4xf32>
    %194 = arith.truncf %193 : vector<8x4xf32> to vector<8x4xbf16>
    %195 = arith.index_cast %8 : i32 to index
    %c60 = arith.constant 60 : index
    %196 = vector.load %arg7[%195, %c60] : memref<16x96xf32, #tpu.memory_space<vmem>>, vector<8x4xf32>
    %197 = arith.truncf %196 : vector<8x4xf32> to vector<8x4xbf16>
    %198 = arith.index_cast %8 : i32 to index
    %c92 = arith.constant 92 : index
    %199 = vector.load %arg7[%198, %c92] : memref<16x96xf32, #tpu.memory_space<vmem>>, vector<8x4xf32>
    %200 = arith.truncf %199 : vector<8x4xf32> to vector<8x4xbf16>
    %cst_60 = arith.constant dense<0.000000e+00> : vector<8x8xf32>
    %201 = tpu.matmul %194, %197, %cst_60 {dimension_numbers = #tpu.dot_dimension_numbers<[1], [1], [0], [0], [0, 0, 1, 0], [], []>} : vector<8x4xbf16>, vector<8x4xbf16>, vector<8x8xf32> -> vector<8x8xf32>
    %cst_61 = arith.constant 5.000000e-01 : f32
    %202 = vector.broadcast %cst_61 : f32 to vector<8x8xf32>
    %203 = arith.mulf %201, %202 : vector<8x8xf32>
    %cst_62 = arith.constant dense<0xFF800000> : vector<8xf32>
    %204 = vector.multi_reduction <maximumf>, %203, %cst_62 [1] : vector<8x8xf32> to vector<8xf32>
    %205 = vector.shape_cast %204 : vector<8xf32> to vector<8x1xf32>
    %206 = vector.broadcast %205 : vector<8x1xf32> to vector<8x8xf32>
    %207 = arith.subf %203, %206 : vector<8x8xf32>
    %208 = math.exp %207 : vector<8x8xf32>
    %cst_63 = arith.constant dense<0.000000e+00> : vector<8xf32>
    %209 = vector.multi_reduction <add>, %208, %cst_63 [1] : vector<8x8xf32> to vector<8xf32>
    %210 = vector.shape_cast %209 : vector<8xf32> to vector<8x1xf32>
    %211 = vector.broadcast %210 : vector<8x1xf32> to vector<8x8xf32>
    %212 = arith.divf %208, %211 : vector<8x8xf32>
    %213 = arith.addf %187, %212 : vector<8x8xf32>
    %214 = arith.truncf %212 : vector<8x8xf32> to vector<8x8xbf16>
    %cst_64 = arith.constant dense<0.000000e+00> : vector<8x4xf32>
    %215 = tpu.matmul %214, %200, %cst_64 {dimension_numbers = #tpu.dot_dimension_numbers<[1], [0], [0], [1], [0, 0, 1, 1], [], []>} : vector<8x8xbf16>, vector<8x4xbf16>, vector<8x4xf32> -> vector<8x4xf32>
    %216 = arith.truncf %215 : vector<8x4xf32> to vector<8x4xbf16>
    %c0_65 = arith.constant 0 : index
    %c28_66 = arith.constant 28 : index
    %217 = vector.load %arg8[%c0_65, %c28_66] : memref<8x32xbf16, #tpu.memory_space<vmem>>, vector<8x4xbf16>
    tpu.vector_store %arg8[%c0_65, %c28_66], %216 {strides = array<i32>} : memref<8x32xbf16, #tpu.memory_space<vmem>>, vector<8x4xbf16>,
    %cst_67 = arith.constant 1.250000e-01 : f32
    %218 = vector.broadcast %cst_67 : f32 to vector<8x8xf32>
    %219 = arith.mulf %213, %218 : vector<8x8xf32>
    %220 = arith.index_cast %c0_i32 : i32 to index
    %c0_68 = arith.constant 0 : index
    %c0_69 = arith.constant 0 : index
    %221 = vector.load %arg6[%220, %c0_68, %c0_69] : memref<2x8x8xf32, #tpu.memory_space<vmem>>, vector<1x8x8xf32>
    %222 = vector.shape_cast %221 : vector<1x8x8xf32> to vector<8x8xf32>
    %223 = vector.shape_cast %219 : vector<8x8xf32> to vector<1x8x8xf32>
    tpu.vector_store %arg6[%220, %c0_68, %c0_69], %223 {strides = array<i32>} : memref<2x8x8xf32, #tpu.memory_space<vmem>>, vector<1x8x8xf32>,
    %c0_70 = arith.constant 0 : index
    %c0_71 = arith.constant 0 : index
    %224 = vector.load %arg8[%c0_70, %c0_71] : memref<8x32xbf16, #tpu.memory_space<vmem>>, vector<8x32xbf16>
    %cst_72 = arith.constant dense<0.000000e+00> : vector<8x32xf32>
    %225 = tpu.matmul %224, %5, %cst_72 {dimension_numbers = #tpu.dot_dimension_numbers<[1], [0], [0], [1], [0, 0, 1, 1], [], []>} : vector<8x32xbf16>, vector<32x32xbf16>, vector<8x32xf32> -> vector<8x32xf32>
    %226 = vector.broadcast %6 : vector<1x32xf32> to vector<8x32xf32>
    %227 = arith.addf %225, %226 : vector<8x32xf32>
    %228 = arith.index_cast %8 : i32 to index
    %c0_73 = arith.constant 0 : index
    %229 = vector.load %arg5[%228, %c0_73] : memref<16x32xf32, #tpu.memory_space<vmem>>, vector<8x32xf32>
    tpu.vector_store %arg5[%228, %c0_73], %227 {strides = array<i32>} : memref<16x32xf32, #tpu.memory_space<vmem>>, vector<8x32xf32>,
    %c1_i32 = arith.constant 1 : i32
    %c8_i32_74 = arith.constant 8 : i32
    %230 = arith.muli %c1_i32, %c8_i32_74 : i32
    %231 = tpu.assume_multiple %230, 8 : i32
    %cst_75 = arith.constant 0.000000e+00 : f32
    %232 = vector.broadcast %cst_75 : f32 to vector<8x8xf32>
    %233 = arith.index_cast %231 : i32 to index
    %c0_76 = arith.constant 0 : index
    %234 = vector.load %arg7[%233, %c0_76] : memref<16x96xf32, #tpu.memory_space<vmem>>, vector<8x4xf32>
    %235 = arith.truncf %234 : vector<8x4xf32> to vector<8x4xbf16>
    %236 = arith.index_cast %231 : i32 to index
    %c32_77 = arith.constant 32 : index
    %237 = vector.load %arg7[%236, %c32_77] : memref<16x96xf32, #tpu.memory_space<vmem>>, vector<8x4xf32>
    %238 = arith.truncf %237 : vector<8x4xf32> to vector<8x4xbf16>
    %239 = arith.index_cast %231 : i32 to index
    %c64_78 = arith.constant 64 : index
    %240 = vector.load %arg7[%239, %c64_78] : memref<16x96xf32, #tpu.memory_space<vmem>>, vector<8x4xf32>
    %241 = arith.truncf %240 : vector<8x4xf32> to vector<8x4xbf16>
    %cst_79 = arith.constant dense<0.000000e+00> : vector<8x8xf32>
    %242 = tpu.matmul %235, %238, %cst_79 {dimension_numbers = #tpu.dot_dimension_numbers<[1], [1], [0], [0], [0, 0, 1, 0], [], []>} : vector<8x4xbf16>, vector<8x4xbf16>, vector<8x8xf32> -> vector<8x8xf32>
    %cst_80 = arith.constant 5.000000e-01 : f32
    %243 = vector.broadcast %cst_80 : f32 to vector<8x8xf32>
    %244 = arith.mulf %242, %243 : vector<8x8xf32>
    %cst_81 = arith.constant dense<0xFF800000> : vector<8xf32>
    %245 = vector.multi_reduction <maximumf>, %244, %cst_81 [1] : vector<8x8xf32> to vector<8xf32>
    %246 = vector.shape_cast %245 : vector<8xf32> to vector<8x1xf32>
    %247 = vector.broadcast %246 : vector<8x1xf32> to vector<8x8xf32>
    %248 = arith.subf %244, %247 : vector<8x8xf32>
    %249 = math.exp %248 : vector<8x8xf32>
    %cst_82 = arith.constant dense<0.000000e+00> : vector<8xf32>
    %250 = vector.multi_reduction <add>, %249, %cst_82 [1] : vector<8x8xf32> to vector<8xf32>
    %251 = vector.shape_cast %250 : vector<8xf32> to vector<8x1xf32>
    %252 = vector.broadcast %251 : vector<8x1xf32> to vector<8x8xf32>
    %253 = arith.divf %249, %252 : vector<8x8xf32>
    %254 = arith.addf %232, %253 : vector<8x8xf32>
    %255 = arith.truncf %253 : vector<8x8xf32> to vector<8x8xbf16>
    %cst_83 = arith.constant dense<0.000000e+00> : vector<8x4xf32>
    %256 = tpu.matmul %255, %241, %cst_83 {dimension_numbers = #tpu.dot_dimension_numbers<[1], [0], [0], [1], [0, 0, 1, 1], [], []>} : vector<8x8xbf16>, vector<8x4xbf16>, vector<8x4xf32> -> vector<8x4xf32>
    %257 = arith.truncf %256 : vector<8x4xf32> to vector<8x4xbf16>
    %c0_84 = arith.constant 0 : index
    %c0_85 = arith.constant 0 : index
    %258 = vector.load %arg8[%c0_84, %c0_85] : memref<8x32xbf16, #tpu.memory_space<vmem>>, vector<8x4xbf16>
    tpu.vector_store %arg8[%c0_84, %c0_85], %257 {strides = array<i32>} : memref<8x32xbf16, #tpu.memory_space<vmem>>, vector<8x4xbf16>,
    %259 = arith.index_cast %231 : i32 to index
    %c4_86 = arith.constant 4 : index
    %260 = vector.load %arg7[%259, %c4_86] : memref<16x96xf32, #tpu.memory_space<vmem>>, vector<8x4xf32>
    %261 = arith.truncf %260 : vector<8x4xf32> to vector<8x4xbf16>
    %262 = arith.index_cast %231 : i32 to index
    %c36_87 = arith.constant 36 : index
    %263 = vector.load %arg7[%262, %c36_87] : memref<16x96xf32, #tpu.memory_space<vmem>>, vector<8x4xf32>
    %264 = arith.truncf %263 : vector<8x4xf32> to vector<8x4xbf16>
    %265 = arith.index_cast %231 : i32 to index
    %c68_88 = arith.constant 68 : index
    %266 = vector.load %arg7[%265, %c68_88] : memref<16x96xf32, #tpu.memory_space<vmem>>, vector<8x4xf32>
    %267 = arith.truncf %266 : vector<8x4xf32> to vector<8x4xbf16>
    %cst_89 = arith.constant dense<0.000000e+00> : vector<8x8xf32>
    %268 = tpu.matmul %261, %264, %cst_89 {dimension_numbers = #tpu.dot_dimension_numbers<[1], [1], [0], [0], [0, 0, 1, 0], [], []>} : vector<8x4xbf16>, vector<8x4xbf16>, vector<8x8xf32> -> vector<8x8xf32>
    %cst_90 = arith.constant 5.000000e-01 : f32
    %269 = vector.broadcast %cst_90 : f32 to vector<8x8xf32>
    %270 = arith.mulf %268, %269 : vector<8x8xf32>
    %cst_91 = arith.constant dense<0xFF800000> : vector<8xf32>
    %271 = vector.multi_reduction <maximumf>, %270, %cst_91 [1] : vector<8x8xf32> to vector<8xf32>
    %272 = vector.shape_cast %271 : vector<8xf32> to vector<8x1xf32>
    %273 = vector.broadcast %272 : vector<8x1xf32> to vector<8x8xf32>
    %274 = arith.subf %270, %273 : vector<8x8xf32>
    %275 = math.exp %274 : vector<8x8xf32>
    %cst_92 = arith.constant dense<0.000000e+00> : vector<8xf32>
    %276 = vector.multi_reduction <add>, %275, %cst_92 [1] : vector<8x8xf32> to vector<8xf32>
    %277 = vector.shape_cast %276 : vector<8xf32> to vector<8x1xf32>
    %278 = vector.broadcast %277 : vector<8x1xf32> to vector<8x8xf32>
    %279 = arith.divf %275, %278 : vector<8x8xf32>
    %280 = arith.addf %254, %279 : vector<8x8xf32>
    %281 = arith.truncf %279 : vector<8x8xf32> to vector<8x8xbf16>
    %cst_93 = arith.constant dense<0.000000e+00> : vector<8x4xf32>
    %282 = tpu.matmul %281, %267, %cst_93 {dimension_numbers = #tpu.dot_dimension_numbers<[1], [0], [0], [1], [0, 0, 1, 1], [], []>} : vector<8x8xbf16>, vector<8x4xbf16>, vector<8x4xf32> -> vector<8x4xf32>
    %283 = arith.truncf %282 : vector<8x4xf32> to vector<8x4xbf16>
    %c0_94 = arith.constant 0 : index
    %c4_95 = arith.constant 4 : index
    %284 = vector.load %arg8[%c0_94, %c4_95] : memref<8x32xbf16, #tpu.memory_space<vmem>>, vector<8x4xbf16>
    tpu.vector_store %arg8[%c0_94, %c4_95], %283 {strides = array<i32>} : memref<8x32xbf16, #tpu.memory_space<vmem>>, vector<8x4xbf16>,
    %285 = arith.index_cast %231 : i32 to index
    %c8_96 = arith.constant 8 : index
    %286 = vector.load %arg7[%285, %c8_96] : memref<16x96xf32, #tpu.memory_space<vmem>>, vector<8x4xf32>
    %287 = arith.truncf %286 : vector<8x4xf32> to vector<8x4xbf16>
    %288 = arith.index_cast %231 : i32 to index
    %c40_97 = arith.constant 40 : index
    %289 = vector.load %arg7[%288, %c40_97] : memref<16x96xf32, #tpu.memory_space<vmem>>, vector<8x4xf32>
    %290 = arith.truncf %289 : vector<8x4xf32> to vector<8x4xbf16>
    %291 = arith.index_cast %231 : i32 to index
    %c72_98 = arith.constant 72 : index
    %292 = vector.load %arg7[%291, %c72_98] : memref<16x96xf32, #tpu.memory_space<vmem>>, vector<8x4xf32>
    %293 = arith.truncf %292 : vector<8x4xf32> to vector<8x4xbf16>
    %cst_99 = arith.constant dense<0.000000e+00> : vector<8x8xf32>
    %294 = tpu.matmul %287, %290, %cst_99 {dimension_numbers = #tpu.dot_dimension_numbers<[1], [1], [0], [0], [0, 0, 1, 0], [], []>} : vector<8x4xbf16>, vector<8x4xbf16>, vector<8x8xf32> -> vector<8x8xf32>
    %cst_100 = arith.constant 5.000000e-01 : f32
    %295 = vector.broadcast %cst_100 : f32 to vector<8x8xf32>
    %296 = arith.mulf %294, %295 : vector<8x8xf32>
    %cst_101 = arith.constant dense<0xFF800000> : vector<8xf32>
    %297 = vector.multi_reduction <maximumf>, %296, %cst_101 [1] : vector<8x8xf32> to vector<8xf32>
    %298 = vector.shape_cast %297 : vector<8xf32> to vector<8x1xf32>
    %299 = vector.broadcast %298 : vector<8x1xf32> to vector<8x8xf32>
    %300 = arith.subf %296, %299 : vector<8x8xf32>
    %301 = math.exp %300 : vector<8x8xf32>
    %cst_102 = arith.constant dense<0.000000e+00> : vector<8xf32>
    %302 = vector.multi_reduction <add>, %301, %cst_102 [1] : vector<8x8xf32> to vector<8xf32>
    %303 = vector.shape_cast %302 : vector<8xf32> to vector<8x1xf32>
    %304 = vector.broadcast %303 : vector<8x1xf32> to vector<8x8xf32>
    %305 = arith.divf %301, %304 : vector<8x8xf32>
    %306 = arith.addf %280, %305 : vector<8x8xf32>
    %307 = arith.truncf %305 : vector<8x8xf32> to vector<8x8xbf16>
    %cst_103 = arith.constant dense<0.000000e+00> : vector<8x4xf32>
    %308 = tpu.matmul %307, %293, %cst_103 {dimension_numbers = #tpu.dot_dimension_numbers<[1], [0], [0], [1], [0, 0, 1, 1], [], []>} : vector<8x8xbf16>, vector<8x4xbf16>, vector<8x4xf32> -> vector<8x4xf32>
    %309 = arith.truncf %308 : vector<8x4xf32> to vector<8x4xbf16>
    %c0_104 = arith.constant 0 : index
    %c8_105 = arith.constant 8 : index
    %310 = vector.load %arg8[%c0_104, %c8_105] : memref<8x32xbf16, #tpu.memory_space<vmem>>, vector<8x4xbf16>
    tpu.vector_store %arg8[%c0_104, %c8_105], %309 {strides = array<i32>} : memref<8x32xbf16, #tpu.memory_space<vmem>>, vector<8x4xbf16>,
    %311 = arith.index_cast %231 : i32 to index
    %c12_106 = arith.constant 12 : index
    %312 = vector.load %arg7[%311, %c12_106] : memref<16x96xf32, #tpu.memory_space<vmem>>, vector<8x4xf32>
    %313 = arith.truncf %312 : vector<8x4xf32> to vector<8x4xbf16>
    %314 = arith.index_cast %231 : i32 to index
    %c44_107 = arith.constant 44 : index
    %315 = vector.load %arg7[%314, %c44_107] : memref<16x96xf32, #tpu.memory_space<vmem>>, vector<8x4xf32>
    %316 = arith.truncf %315 : vector<8x4xf32> to vector<8x4xbf16>
    %317 = arith.index_cast %231 : i32 to index
    %c76_108 = arith.constant 76 : index
    %318 = vector.load %arg7[%317, %c76_108] : memref<16x96xf32, #tpu.memory_space<vmem>>, vector<8x4xf32>
    %319 = arith.truncf %318 : vector<8x4xf32> to vector<8x4xbf16>
    %cst_109 = arith.constant dense<0.000000e+00> : vector<8x8xf32>
    %320 = tpu.matmul %313, %316, %cst_109 {dimension_numbers = #tpu.dot_dimension_numbers<[1], [1], [0], [0], [0, 0, 1, 0], [], []>} : vector<8x4xbf16>, vector<8x4xbf16>, vector<8x8xf32> -> vector<8x8xf32>
    %cst_110 = arith.constant 5.000000e-01 : f32
    %321 = vector.broadcast %cst_110 : f32 to vector<8x8xf32>
    %322 = arith.mulf %320, %321 : vector<8x8xf32>
    %cst_111 = arith.constant dense<0xFF800000> : vector<8xf32>
    %323 = vector.multi_reduction <maximumf>, %322, %cst_111 [1] : vector<8x8xf32> to vector<8xf32>
    %324 = vector.shape_cast %323 : vector<8xf32> to vector<8x1xf32>
    %325 = vector.broadcast %324 : vector<8x1xf32> to vector<8x8xf32>
    %326 = arith.subf %322, %325 : vector<8x8xf32>
    %327 = math.exp %326 : vector<8x8xf32>
    %cst_112 = arith.constant dense<0.000000e+00> : vector<8xf32>
    %328 = vector.multi_reduction <add>, %327, %cst_112 [1] : vector<8x8xf32> to vector<8xf32>
    %329 = vector.shape_cast %328 : vector<8xf32> to vector<8x1xf32>
    %330 = vector.broadcast %329 : vector<8x1xf32> to vector<8x8xf32>
    %331 = arith.divf %327, %330 : vector<8x8xf32>
    %332 = arith.addf %306, %331 : vector<8x8xf32>
    %333 = arith.truncf %331 : vector<8x8xf32> to vector<8x8xbf16>
    %cst_113 = arith.constant dense<0.000000e+00> : vector<8x4xf32>
    %334 = tpu.matmul %333, %319, %cst_113 {dimension_numbers = #tpu.dot_dimension_numbers<[1], [0], [0], [1], [0, 0, 1, 1], [], []>} : vector<8x8xbf16>, vector<8x4xbf16>, vector<8x4xf32> -> vector<8x4xf32>
    %335 = arith.truncf %334 : vector<8x4xf32> to vector<8x4xbf16>
    %c0_114 = arith.constant 0 : index
    %c12_115 = arith.constant 12 : index
    %336 = vector.load %arg8[%c0_114, %c12_115] : memref<8x32xbf16, #tpu.memory_space<vmem>>, vector<8x4xbf16>
    tpu.vector_store %arg8[%c0_114, %c12_115], %335 {strides = array<i32>} : memref<8x32xbf16, #tpu.memory_space<vmem>>, vector<8x4xbf16>,
    %337 = arith.index_cast %231 : i32 to index
    %c16_116 = arith.constant 16 : index
    %338 = vector.load %arg7[%337, %c16_116] : memref<16x96xf32, #tpu.memory_space<vmem>>, vector<8x4xf32>
    %339 = arith.truncf %338 : vector<8x4xf32> to vector<8x4xbf16>
    %340 = arith.index_cast %231 : i32 to index
    %c48_117 = arith.constant 48 : index
    %341 = vector.load %arg7[%340, %c48_117] : memref<16x96xf32, #tpu.memory_space<vmem>>, vector<8x4xf32>
    %342 = arith.truncf %341 : vector<8x4xf32> to vector<8x4xbf16>
    %343 = arith.index_cast %231 : i32 to index
    %c80_118 = arith.constant 80 : index
    %344 = vector.load %arg7[%343, %c80_118] : memref<16x96xf32, #tpu.memory_space<vmem>>, vector<8x4xf32>
    %345 = arith.truncf %344 : vector<8x4xf32> to vector<8x4xbf16>
    %cst_119 = arith.constant dense<0.000000e+00> : vector<8x8xf32>
    %346 = tpu.matmul %339, %342, %cst_119 {dimension_numbers = #tpu.dot_dimension_numbers<[1], [1], [0], [0], [0, 0, 1, 0], [], []>} : vector<8x4xbf16>, vector<8x4xbf16>, vector<8x8xf32> -> vector<8x8xf32>
    %cst_120 = arith.constant 5.000000e-01 : f32
    %347 = vector.broadcast %cst_120 : f32 to vector<8x8xf32>
    %348 = arith.mulf %346, %347 : vector<8x8xf32>
    %cst_121 = arith.constant dense<0xFF800000> : vector<8xf32>
    %349 = vector.multi_reduction <maximumf>, %348, %cst_121 [1] : vector<8x8xf32> to vector<8xf32>
    %350 = vector.shape_cast %349 : vector<8xf32> to vector<8x1xf32>
    %351 = vector.broadcast %350 : vector<8x1xf32> to vector<8x8xf32>
    %352 = arith.subf %348, %351 : vector<8x8xf32>
    %353 = math.exp %352 : vector<8x8xf32>
    %cst_122 = arith.constant dense<0.000000e+00> : vector<8xf32>
    %354 = vector.multi_reduction <add>, %353, %cst_122 [1] : vector<8x8xf32> to vector<8xf32>
    %355 = vector.shape_cast %354 : vector<8xf32> to vector<8x1xf32>
    %356 = vector.broadcast %355 : vector<8x1xf32> to vector<8x8xf32>
    %357 = arith.divf %353, %356 : vector<8x8xf32>
    %358 = arith.addf %332, %357 : vector<8x8xf32>
    %359 = arith.truncf %357 : vector<8x8xf32> to vector<8x8xbf16>
    %cst_123 = arith.constant dense<0.000000e+00> : vector<8x4xf32>
    %360 = tpu.matmul %359, %345, %cst_123 {dimension_numbers = #tpu.dot_dimension_numbers<[1], [0], [0], [1], [0, 0, 1, 1], [], []>} : vector<8x8xbf16>, vector<8x4xbf16>, vector<8x4xf32> -> vector<8x4xf32>
    %361 = arith.truncf %360 : vector<8x4xf32> to vector<8x4xbf16>
    %c0_124 = arith.constant 0 : index
    %c16_125 = arith.constant 16 : index
    %362 = vector.load %arg8[%c0_124, %c16_125] : memref<8x32xbf16, #tpu.memory_space<vmem>>, vector<8x4xbf16>
    tpu.vector_store %arg8[%c0_124, %c16_125], %361 {strides = array<i32>} : memref<8x32xbf16, #tpu.memory_space<vmem>>, vector<8x4xbf16>,
    %363 = arith.index_cast %231 : i32 to index
    %c20_126 = arith.constant 20 : index
    %364 = vector.load %arg7[%363, %c20_126] : memref<16x96xf32, #tpu.memory_space<vmem>>, vector<8x4xf32>
    %365 = arith.truncf %364 : vector<8x4xf32> to vector<8x4xbf16>
    %366 = arith.index_cast %231 : i32 to index
    %c52_127 = arith.constant 52 : index
    %367 = vector.load %arg7[%366, %c52_127] : memref<16x96xf32, #tpu.memory_space<vmem>>, vector<8x4xf32>
    %368 = arith.truncf %367 : vector<8x4xf32> to vector<8x4xbf16>
    %369 = arith.index_cast %231 : i32 to index
    %c84_128 = arith.constant 84 : index
    %370 = vector.load %arg7[%369, %c84_128] : memref<16x96xf32, #tpu.memory_space<vmem>>, vector<8x4xf32>
    %371 = arith.truncf %370 : vector<8x4xf32> to vector<8x4xbf16>
    %cst_129 = arith.constant dense<0.000000e+00> : vector<8x8xf32>
    %372 = tpu.matmul %365, %368, %cst_129 {dimension_numbers = #tpu.dot_dimension_numbers<[1], [1], [0], [0], [0, 0, 1, 0], [], []>} : vector<8x4xbf16>, vector<8x4xbf16>, vector<8x8xf32> -> vector<8x8xf32>
    %cst_130 = arith.constant 5.000000e-01 : f32
    %373 = vector.broadcast %cst_130 : f32 to vector<8x8xf32>
    %374 = arith.mulf %372, %373 : vector<8x8xf32>
    %cst_131 = arith.constant dense<0xFF800000> : vector<8xf32>
    %375 = vector.multi_reduction <maximumf>, %374, %cst_131 [1] : vector<8x8xf32> to vector<8xf32>
    %376 = vector.shape_cast %375 : vector<8xf32> to vector<8x1xf32>
    %377 = vector.broadcast %376 : vector<8x1xf32> to vector<8x8xf32>
    %378 = arith.subf %374, %377 : vector<8x8xf32>
    %379 = math.exp %378 : vector<8x8xf32>
    %cst_132 = arith.constant dense<0.000000e+00> : vector<8xf32>
    %380 = vector.multi_reduction <add>, %379, %cst_132 [1] : vector<8x8xf32> to vector<8xf32>
    %381 = vector.shape_cast %380 : vector<8xf32> to vector<8x1xf32>
    %382 = vector.broadcast %381 : vector<8x1xf32> to vector<8x8xf32>
    %383 = arith.divf %379, %382 : vector<8x8xf32>
    %384 = arith.addf %358, %383 : vector<8x8xf32>
    %385 = arith.truncf %383 : vector<8x8xf32> to vector<8x8xbf16>
    %cst_133 = arith.constant dense<0.000000e+00> : vector<8x4xf32>
    %386 = tpu.matmul %385, %371, %cst_133 {dimension_numbers = #tpu.dot_dimension_numbers<[1], [0], [0], [1], [0, 0, 1, 1], [], []>} : vector<8x8xbf16>, vector<8x4xbf16>, vector<8x4xf32> -> vector<8x4xf32>
    %387 = arith.truncf %386 : vector<8x4xf32> to vector<8x4xbf16>
    %c0_134 = arith.constant 0 : index
    %c20_135 = arith.constant 20 : index
    %388 = vector.load %arg8[%c0_134, %c20_135] : memref<8x32xbf16, #tpu.memory_space<vmem>>, vector<8x4xbf16>
    tpu.vector_store %arg8[%c0_134, %c20_135], %387 {strides = array<i32>} : memref<8x32xbf16, #tpu.memory_space<vmem>>, vector<8x4xbf16>,
    %389 = arith.index_cast %231 : i32 to index
    %c24_136 = arith.constant 24 : index
    %390 = vector.load %arg7[%389, %c24_136] : memref<16x96xf32, #tpu.memory_space<vmem>>, vector<8x4xf32>
    %391 = arith.truncf %390 : vector<8x4xf32> to vector<8x4xbf16>
    %392 = arith.index_cast %231 : i32 to index
    %c56_137 = arith.constant 56 : index
    %393 = vector.load %arg7[%392, %c56_137] : memref<16x96xf32, #tpu.memory_space<vmem>>, vector<8x4xf32>
    %394 = arith.truncf %393 : vector<8x4xf32> to vector<8x4xbf16>
    %395 = arith.index_cast %231 : i32 to index
    %c88_138 = arith.constant 88 : index
    %396 = vector.load %arg7[%395, %c88_138] : memref<16x96xf32, #tpu.memory_space<vmem>>, vector<8x4xf32>
    %397 = arith.truncf %396 : vector<8x4xf32> to vector<8x4xbf16>
    %cst_139 = arith.constant dense<0.000000e+00> : vector<8x8xf32>
    %398 = tpu.matmul %391, %394, %cst_139 {dimension_numbers = #tpu.dot_dimension_numbers<[1], [1], [0], [0], [0, 0, 1, 0], [], []>} : vector<8x4xbf16>, vector<8x4xbf16>, vector<8x8xf32> -> vector<8x8xf32>
    %cst_140 = arith.constant 5.000000e-01 : f32
    %399 = vector.broadcast %cst_140 : f32 to vector<8x8xf32>
    %400 = arith.mulf %398, %399 : vector<8x8xf32>
    %cst_141 = arith.constant dense<0xFF800000> : vector<8xf32>
    %401 = vector.multi_reduction <maximumf>, %400, %cst_141 [1] : vector<8x8xf32> to vector<8xf32>
    %402 = vector.shape_cast %401 : vector<8xf32> to vector<8x1xf32>
    %403 = vector.broadcast %402 : vector<8x1xf32> to vector<8x8xf32>
    %404 = arith.subf %400, %403 : vector<8x8xf32>
    %405 = math.exp %404 : vector<8x8xf32>
    %cst_142 = arith.constant dense<0.000000e+00> : vector<8xf32>
    %406 = vector.multi_reduction <add>, %405, %cst_142 [1] : vector<8x8xf32> to vector<8xf32>
    %407 = vector.shape_cast %406 : vector<8xf32> to vector<8x1xf32>
    %408 = vector.broadcast %407 : vector<8x1xf32> to vector<8x8xf32>
    %409 = arith.divf %405, %408 : vector<8x8xf32>
    %410 = arith.addf %384, %409 : vector<8x8xf32>
    %411 = arith.truncf %409 : vector<8x8xf32> to vector<8x8xbf16>
    %cst_143 = arith.constant dense<0.000000e+00> : vector<8x4xf32>
    %412 = tpu.matmul %411, %397, %cst_143 {dimension_numbers = #tpu.dot_dimension_numbers<[1], [0], [0], [1], [0, 0, 1, 1], [], []>} : vector<8x8xbf16>, vector<8x4xbf16>, vector<8x4xf32> -> vector<8x4xf32>
    %413 = arith.truncf %412 : vector<8x4xf32> to vector<8x4xbf16>
    %c0_144 = arith.constant 0 : index
    %c24_145 = arith.constant 24 : index
    %414 = vector.load %arg8[%c0_144, %c24_145] : memref<8x32xbf16, #tpu.memory_space<vmem>>, vector<8x4xbf16>
    tpu.vector_store %arg8[%c0_144, %c24_145], %413 {strides = array<i32>} : memref<8x32xbf16, #tpu.memory_space<vmem>>, vector<8x4xbf16>,
    %415 = arith.index_cast %231 : i32 to index
    %c28_146 = arith.constant 28 : index
    %416 = vector.load %arg7[%415, %c28_146] : memref<16x96xf32, #tpu.memory_space<vmem>>, vector<8x4xf32>
    %417 = arith.truncf %416 : vector<8x4xf32> to vector<8x4xbf16>
    %418 = arith.index_cast %231 : i32 to index
    %c60_147 = arith.constant 60 : index
    %419 = vector.load %arg7[%418, %c60_147] : memref<16x96xf32, #tpu.memory_space<vmem>>, vector<8x4xf32>
    %420 = arith.truncf %419 : vector<8x4xf32> to vector<8x4xbf16>
    %421 = arith.index_cast %231 : i32 to index
    %c92_148 = arith.constant 92 : index
    %422 = vector.load %arg7[%421, %c92_148] : memref<16x96xf32, #tpu.memory_space<vmem>>, vector<8x4xf32>
    %423 = arith.truncf %422 : vector<8x4xf32> to vector<8x4xbf16>
    %cst_149 = arith.constant dense<0.000000e+00> : vector<8x8xf32>
    %424 = tpu.matmul %417, %420, %cst_149 {dimension_numbers = #tpu.dot_dimension_numbers<[1], [1], [0], [0], [0, 0, 1, 0], [], []>} : vector<8x4xbf16>, vector<8x4xbf16>, vector<8x8xf32> -> vector<8x8xf32>
    %cst_150 = arith.constant 5.000000e-01 : f32
    %425 = vector.broadcast %cst_150 : f32 to vector<8x8xf32>
    %426 = arith.mulf %424, %425 : vector<8x8xf32>
    %cst_151 = arith.constant dense<0xFF800000> : vector<8xf32>
    %427 = vector.multi_reduction <maximumf>, %426, %cst_151 [1] : vector<8x8xf32> to vector<8xf32>
    %428 = vector.shape_cast %427 : vector<8xf32> to vector<8x1xf32>
    %429 = vector.broadcast %428 : vector<8x1xf32> to vector<8x8xf32>
    %430 = arith.subf %426, %429 : vector<8x8xf32>
    %431 = math.exp %430 : vector<8x8xf32>
    %cst_152 = arith.constant dense<0.000000e+00> : vector<8xf32>
    %432 = vector.multi_reduction <add>, %431, %cst_152 [1] : vector<8x8xf32> to vector<8xf32>
    %433 = vector.shape_cast %432 : vector<8xf32> to vector<8x1xf32>
    %434 = vector.broadcast %433 : vector<8x1xf32> to vector<8x8xf32>
    %435 = arith.divf %431, %434 : vector<8x8xf32>
    %436 = arith.addf %410, %435 : vector<8x8xf32>
    %437 = arith.truncf %435 : vector<8x8xf32> to vector<8x8xbf16>
    %cst_153 = arith.constant dense<0.000000e+00> : vector<8x4xf32>
    %438 = tpu.matmul %437, %423, %cst_153 {dimension_numbers = #tpu.dot_dimension_numbers<[1], [0], [0], [1], [0, 0, 1, 1], [], []>} : vector<8x8xbf16>, vector<8x4xbf16>, vector<8x4xf32> -> vector<8x4xf32>
    %439 = arith.truncf %438 : vector<8x4xf32> to vector<8x4xbf16>
    %c0_154 = arith.constant 0 : index
    %c28_155 = arith.constant 28 : index
    %440 = vector.load %arg8[%c0_154, %c28_155] : memref<8x32xbf16, #tpu.memory_space<vmem>>, vector<8x4xbf16>
    tpu.vector_store %arg8[%c0_154, %c28_155], %439 {strides = array<i32>} : memref<8x32xbf16, #tpu.memory_space<vmem>>, vector<8x4xbf16>,
    %cst_156 = arith.constant 1.250000e-01 : f32
    %441 = vector.broadcast %cst_156 : f32 to vector<8x8xf32>
    %442 = arith.mulf %436, %441 : vector<8x8xf32>
    %443 = arith.index_cast %c1_i32 : i32 to index
    %c0_157 = arith.constant 0 : index
    %c0_158 = arith.constant 0 : index
    %444 = vector.load %arg6[%443, %c0_157, %c0_158] : memref<2x8x8xf32, #tpu.memory_space<vmem>>, vector<1x8x8xf32>
    %445 = vector.shape_cast %444 : vector<1x8x8xf32> to vector<8x8xf32>
    %446 = vector.shape_cast %442 : vector<8x8xf32> to vector<1x8x8xf32>
    tpu.vector_store %arg6[%443, %c0_157, %c0_158], %446 {strides = array<i32>} : memref<2x8x8xf32, #tpu.memory_space<vmem>>, vector<1x8x8xf32>,
    %c0_159 = arith.constant 0 : index
    %c0_160 = arith.constant 0 : index
    %447 = vector.load %arg8[%c0_159, %c0_160] : memref<8x32xbf16, #tpu.memory_space<vmem>>, vector<8x32xbf16>
    %cst_161 = arith.constant dense<0.000000e+00> : vector<8x32xf32>
    %448 = tpu.matmul %447, %5, %cst_161 {dimension_numbers = #tpu.dot_dimension_numbers<[1], [0], [0], [1], [0, 0, 1, 1], [], []>} : vector<8x32xbf16>, vector<32x32xbf16>, vector<8x32xf32> -> vector<8x32xf32>
    %449 = vector.broadcast %6 : vector<1x32xf32> to vector<8x32xf32>
    %450 = arith.addf %448, %449 : vector<8x32xf32>
    %451 = arith.index_cast %231 : i32 to index
    %c0_162 = arith.constant 0 : index
    %452 = vector.load %arg5[%451, %c0_162] : memref<16x32xf32, #tpu.memory_space<vmem>>, vector<8x32xf32>
    tpu.vector_store %arg5[%451, %c0_162], %450 {strides = array<i32>} : memref<16x32xf32, #tpu.memory_space<vmem>>, vector<8x32xf32>,
    %c2_i32 = arith.constant 2 : i32
    return
  }
  func.func @transform_0(%arg0: i32) -> (i32, i32) {
    %c0_i32 = arith.constant 0 : i32
    %c0_i32_0 = arith.constant 0 : i32
    return %arg0, %c0_i32 : i32, i32
  }
  func.func @transform_1(%arg0: i32) -> (i32, i32) {
    %c0_i32 = arith.constant 0 : i32
    %c0_i32_0 = arith.constant 0 : i32
    %c0_i32_1 = arith.constant 0 : i32
    return %c0_i32, %c0_i32_0 : i32, i32
  }
  func.func @transform_2(%arg0: i32) -> (i32, i32) {
    %c0_i32 = arith.constant 0 : i32
    %c0_i32_0 = arith.constant 0 : i32
    %c0_i32_1 = arith.constant 0 : i32
    return %c0_i32, %c0_i32_0 : i32, i32
  }
  func.func @transform_3(%arg0: i32) -> (i32, i32) {
    %c0_i32 = arith.constant 0 : i32
    %c0_i32_0 = arith.constant 0 : i32
    %c0_i32_1 = arith.constant 0 : i32
    return %c0_i32, %c0_i32_0 : i32, i32
  }
  func.func @transform_4(%arg0: i32) -> (i32, i32) {
    %c0_i32 = arith.constant 0 : i32
    %c0_i32_0 = arith.constant 0 : i32
    return %arg0, %c0_i32 : i32, i32
  }
  func.func @transform_5(%arg0: i32) -> (i32, i32, i32) {
    %c0_i32 = arith.constant 0 : i32
    %c0_i32_0 = arith.constant 0 : i32
    %c0_i32_1 = arith.constant 0 : i32
    return %arg0, %c0_i32, %c0_i32_0 : i32, i32, i32
  }
}

</mosaic_0001>

<llo_original>
// kernel: tpu_custom_call.1
$region0: #{tpu_custom_call.1}
  #allocation0 [shape = 'u32[]', space=smem, size = 0x4, offset = 0x4, fixed_abs, tag = 'smem constant byte address 0x4 - core index']
  #allocation1 [shape = 'u32[144,128]{1,0:T(1,128)}', space=vmem, size = 0x12000, scoped, tag = 'internal scratch']
  #allocation2 [shape = 'f32[16,96]{1,0:T(8,128)}', space=vmem, size = 0x2000, scoped, tag = 'scratch operand']
  #allocation3 [shape = 'bf16[8,32]{1,0:T(8,128)(2,1)}', space=vmem, size = 0x800, scoped, tag = 'scratch operand']
  %s0 = inlined_call_operand.hbm [shape: f32[16,32], index: 0, kind: input, shape index: {}]
  %s1 = inlined_call_operand.hbm [shape: bf16[32,96], index: 1, kind: input, shape index: {}]
  %s2 = inlined_call_operand.hbm [shape: bf16[32,32], index: 2, kind: input, shape index: {}]
  %s3 = inlined_call_operand.vmem [shape: f32[1,32], index: 3, kind: input, shape index: {}]
  %s4 = inlined_call_operand.hbm [shape: f32[16,32], index: 4, kind: output, shape index: {0}]
  %s5 = inlined_call_operand.hbm [shape: f32[2,8,8], index: 5, kind: output, shape index: {1}]
  %6 = xla_tuple %s4, %s5
  %s7 = sld [smem:[#allocation0]]
  $region46: #{tpu_custom_call.1} parent=0
    _
  %s9 = ssub.s32 1, %s7
  %s10 = scalar_select 0, %s9, %s7
  $region1: #{tpu_custom_call.1} parent=0
    #allocation4 [shape = 'u8[8192]{0}', space=vmem, size = 0x2000, scoped, tag = 'input window, operand 0, single buffered']
    #allocation5 [shape = 's32[1]{0}', space=sflag, size = 0x4, scoped, tag = 'scoped memory for tpu_custom_call.1']
    #allocation6 [shape = 's32[1]{0}', space=sflag, size = 0x4, scoped, tag = 'scoped memory for tpu_custom_call.1']
    #allocation7 [shape = 'u8[8192]{0}', space=vmem, size = 0x2000, scoped, tag = 'input window, operand 1, single buffered']
    #allocation8 [shape = 's32[1]{0}', space=sflag, size = 0x4, scoped, tag = 'scoped memory for tpu_custom_call.1']
    #allocation9 [shape = 'u8[8192]{0}', space=vmem, size = 0x2000, scoped, tag = 'input window, operand 2, single buffered']
    #allocation10 [shape = 'u8[8192]{0}', space=vmem, size = 0x2000, scoped, tag = 'output window, operand 0, single buffered']
    #allocation11 [shape = 'u8[8192]{0}', space=vmem, size = 0x2000, scoped, tag = 'output window, operand 1, single buffered']
    #allocation12 [shape = 's32[1]{0}', space=sflag, size = 0x4, scoped, tag = 'scoped memory for tpu_custom_call.1']
    %11 = vsyncpa [#allocation5], 0
    %12 = vsyncpa [#allocation8], 0
    %13 = vsyncpa [#allocation6], 0
    %14 = vsyncpa [#allocation12], 0
    // Predicated region
    $region2: #{tpu_custom_call.1} parent=1 // pred_check
      _
    $region3: #{tpu_custom_call.1} parent=1 // pred_check_branch
      %16 = sbr.rel (0) target = $region5
    $region4: #{tpu_custom_call.1} parent=1 // pred_region
      %s18 = ssub.s32 256, 256
      %19 = vsyncadd [#allocation5], %s18
      %s20 = sshll.u32 [#allocation4], 4
      %s21 = int_to_ptr.vmem [resolvable:$true] %s20
      %26 = dma.hbm_to_vmem [thread:$0]  %s0, 256, %s21, [#allocation5], 128, 128, 8
    $region5: #{tpu_custom_call.1} parent=1 // pred_fallthru
      _
    // Predicated region
    $region6: #{tpu_custom_call.1} parent=1 // pred_check
      _
    $region7: #{tpu_custom_call.1} parent=1 // pred_check_branch
      %28 = sbr.rel (0) target = $region9
    $region8: #{tpu_custom_call.1} parent=1 // pred_region
      %s30 = ssub.s32 256, 256
      %31 = vsyncadd [#allocation8], %s30
      %s32 = sshll.u32 [#allocation7], 4
      %s33 = int_to_ptr.vmem [resolvable:$true] %s32
      %38 = dma.hbm_to_vmem [thread:$0]  %s1, 256, %s33, [#allocation8], 64, 64, 4
    $region9: #{tpu_custom_call.1} parent=1 // pred_fallthru
      _
    // Predicated region
    $region10: #{tpu_custom_call.1} parent=1 // pred_check
      _
    $region11: #{tpu_custom_call.1} parent=1 // pred_check_branch
      %40 = sbr.rel (0) target = $region13
    $region12: #{tpu_custom_call.1} parent=1 // pred_region
      %s42 = ssub.s32 256, 256
      %43 = vsyncadd [#allocation8], %s42
      %s44 = sshll.u32 [#allocation9], 4
      %s45 = int_to_ptr.vmem [resolvable:$true] %s44
      %50 = dma.hbm_to_vmem [thread:$0]  %s2, 256, %s45, [#allocation8], 64, 64, 4
    $region13: #{tpu_custom_call.1} parent=1 // pred_fallthru
      _
    // Predicated region
    $region14: #{tpu_custom_call.1} parent=1 // pred_check
      _
    $region15: #{tpu_custom_call.1} parent=1 // pred_check_branch
      %52 = sbr.rel (0) target = $region17
    $region16: #{tpu_custom_call.1} parent=1 // pred_region
      _
    $region17: #{tpu_custom_call.1} parent=1 // pred_fallthru
      _
    // Predicated region
    $region18: #{tpu_custom_call.1} parent=1 // pred_check
      _
    $region19: #{tpu_custom_call.1} parent=1 // pred_check_branch
      %54 = sbr.rel (0) target = $region21
    $region20: #{tpu_custom_call.1} parent=1 // pred_region
      %55 = dma.done [#allocation5], 256
    $region21: #{tpu_custom_call.1} parent=1 // pred_fallthru
      _
    // Predicated region
    $region22: #{tpu_custom_call.1} parent=1 // pred_check
      _
    $region23: #{tpu_custom_call.1} parent=1 // pred_check_branch
      %57 = sbr.rel (0) target = $region25
    $region24: #{tpu_custom_call.1} parent=1 // pred_region
      %58 = dma.done [#allocation8], 256
    $region25: #{tpu_custom_call.1} parent=1 // pred_fallthru
      _
    // Predicated region
    $region26: #{tpu_custom_call.1} parent=1 // pred_check
      _
    $region27: #{tpu_custom_call.1} parent=1 // pred_check_branch
      %60 = sbr.rel (0) target = $region29
    $region28: #{tpu_custom_call.1} parent=1 // pred_region
      %61 = dma.done [#allocation8], 256
    $region29: #{tpu_custom_call.1} parent=1 // pred_fallthru
      _
    %v63 = vld [vmem:[#allocation4] sm:$0xff]
    %v64 = vld [vmem:[#allocation4 + $0x8] sm:$0xff]
    %v65 = vpack.c.bf16 %v64, %v63
    %v66 = vld [vmem:[#allocation7] sm:$0xf]
    %v67 = vld [vmem:[#allocation7 + $0x4] sm:$0xf]
    %v68 = vld [vmem:[#allocation7 + $0x8] sm:$0xf]
    %v69 = vld [vmem:[#allocation7 + $0xc] sm:$0xf]
    %v74 = vunpack.c.l.b16 %v66
    %v75 = vunpack.c.l.b16 %v67
    %v76 = vunpack.c.l.b16 %v68
    %v77 = vunpack.c.l.b16 %v69
    %v78 = vpack.c.b16 %v75, %v74
    %v79 = vpack.c.b16 %v77, %v76
    %vm82 = vcmask 261120
    %v84 = vsel %vm82, %v65, 0
    %86 = vmatprep.subr.bf16.mxu0 0
    %87 = vmatpush1.bf16.msra.mxu0 0
    %88 = vmatprep.subr.bf16.mxu0 0
    %89 = vmatpush1.bf16.msra.mxu0 0
    %90 = vmatprep.subr.bf16.mxu0 0
    %91 = vmatpush1.bf16.msra.mxu0 0
    %92 = vmatprep.subr.bf16.mxu0 0
    %93 = vmatpush1.bf16.msra.mxu0 0
    %94 = vmatprep.subr.bf16.mxu0 0
    %95 = vmatpush1.bf16.msra.mxu0 0
    %96 = vmatprep.subr.bf16.mxu0 0
    %97 = vmatpush1.bf16.msra.mxu0 0
    %98 = vmatprep.subr.bf16.mxu0 0
    %99 = vmatpush1.bf16.msra.mxu0 %v79
    %100 = vmatprep.subr.bf16.mxu0 0
    %101 = vmatpush1.bf16.msra.mxu0 %v78
    %102 = vmatprep.subr.bf16.mxu0 0
    %103 = vmatpush2.bf16.msra.mxu0 0
    %104 = vmatprep.subr.bf16.mxu0 0
    %105 = vmatpush2.bf16.msra.mxu0 0
    %106 = vmatprep.subr.bf16.mxu0 0
    %107 = vmatpush2.bf16.msra.mxu0 0
    %108 = vmatprep.subr.bf16.mxu0 0
    %109 = vmatpush2.bf16.msra.mxu0 0
    %110 = vmatprep.subr.bf16.mxu0 0
    %111 = vmatpush2.bf16.msra.mxu0 0
    %112 = vmatprep.subr.bf16.mxu0 0
    %113 = vmatpush2.bf16.msra.mxu0 0
    %114 = vmatprep.subr.bf16.mxu0 0
    %115 = vmatpush2.bf16.msra.mxu0 0
    %116 = vmatprep.subr.bf16.mxu0 0
    %117 = vmatpush2.bf16.msra.mxu0 0
    %118 = vmatprep.mubr.bf16.mxu0 0
    %119 = vmatmul.mubr.bf16.gmra.mxu0 %v84
    %v120 = vpop.f32.mrf.mxu0
    %v121 = vadd.f32 0.0, %v120
    %v122 = vpop.f32.mrf.mxu0
    %v123 = vpop.f32.mrf.mxu0
    %v124 = vadd.f32 0.0, %v123
    %v125 = vpop.f32.mrf.mxu0
    %126 = vdwg.mxu0
    %vm127 = vcmask 785408
    %128 = vst.msk [vmem:[#allocation2] sm:$0xff] %vm127, %v121
    %129 = vst.msk [vmem:[#allocation2 + $0x8] sm:$0xff] %vm127, %v124
    %v130 = vld [vmem:[#allocation9] sm:$0xf]
    %v131 = vld [vmem:[#allocation9 + $0x4] sm:$0xf]
    %v132 = vld [vmem:[#allocation9 + $0x8] sm:$0xf]
    %v133 = vld [vmem:[#allocation9 + $0xc] sm:$0xf]
    %v134 = vld [vmem:[%s3] sm:$0x1]
    %v135 = vld [vmem:[#allocation2] sm:$0xff]
    %v136 = vpack.c.bf16 %v135, %v135
    %138 = vrot.lane.b32.xlu0 %v136, 96
    %v139 = vpop.permute.xlu0 %138
    %vm140 = vcmask 31744
    %v142 = vsel %vm140, %v136, 0
    %v145 = vsel %vm140, %v139, 0
    %147 = vmatprep.subr.bf16.mxu0 0
    %148 = vmatpush1.bf16.xpose.msra.mxu0 0
    %149 = vmatprep.subr.bf16.mxu0 0
    %150 = vmatpush1.bf16.xpose.msra.mxu0 0
    %151 = vmatprep.subr.bf16.mxu0 0
    %152 = vmatpush1.bf16.xpose.msra.mxu0 0
    %153 = vmatprep.subr.bf16.mxu0 0
    %154 = vmatpush1.bf16.xpose.msra.mxu0 0
    %155 = vmatprep.subr.bf16.mxu0 0
    %156 = vmatpush1.bf16.xpose.msra.mxu0 0
    %157 = vmatprep.subr.bf16.mxu0 0
    %158 = vmatpush1.bf16.xpose.msra.mxu0 0
    %159 = vmatprep.subr.bf16.mxu0 0
    %160 = vmatpush1.bf16.xpose.msra.mxu0 0
    %161 = vmatprep.subr.bf16.mxu0 0
    %162 = vmatpush1.bf16.xpose.msra.mxu0 %v145
    %163 = vmatprep.subr.bf16.mxu0 0
    %164 = vmatpush2.bf16.xpose.msra.mxu0 0
    %165 = vmatprep.subr.bf16.mxu0 0
    %166 = vmatpush2.bf16.xpose.msra.mxu0 0
    %167 = vmatprep.subr.bf16.mxu0 0
    %168 = vmatpush2.bf16.xpose.msra.mxu0 0
    %169 = vmatprep.subr.bf16.mxu0 0
    %170 = vmatpush2.bf16.xpose.msra.mxu0 0
    %171 = vmatprep.subr.bf16.mxu0 0
    %172 = vmatpush2.bf16.xpose.msra.mxu0 0
    %173 = vmatprep.subr.bf16.mxu0 0
    %174 = vmatpush2.bf16.xpose.msra.mxu0 0
    %175 = vmatprep.subr.bf16.mxu0 0
    %176 = vmatpush2.bf16.xpose.msra.mxu0 0
    %177 = vmatprep.subr.bf16.mxu0 0
    %178 = vmatpush2.bf16.xpose.msra.mxu0 0
    %179 = vmatprep.mubr.bf16.mxu0 0
    %180 = vmatmul.mubr.bf16.gmra.mxu0 %v142
    %v181 = vpop.f32.mrf.mxu0
    %v182 = vadd.f32 0.0, %v181
    %v183 = vpop.f32.mrf.mxu0
    %v184 = vpop.f32.mrf.mxu0
    %v185 = vpop.f32.mrf.mxu0
    %186 = vdwg.mxu0
    %v187 = vmul.f32 %v182, 0.5
    %vm188 = vcmask 64512
    %v189 = vsel %vm188, %v187, -inf
    %190 = vmax.xlane.f32.xlu0 %v189
    %v191 = vpop.xlane.xlu0 %190
    %v192 = vsub.f32 %v187, %v191
    %v193 = vmul.f32 %v192, 1.442695
    %v194 = vpow.pop %v193
    %v195 = vsel %vm188, %v194, 0.0
    %196 = vadd.xlane.f32.xlu0 %v195
    %v197 = vpop.xlane.xlu0 %196
    %v198 = vrcp.pop %v197
    %v199 = vmul.f32 %v194, %v198
    %v200 = vadd.f32 %v199, 0.0
    %v201 = vpack.c.bf16 %v199, %v199
    %202 = vrot.lane.b32.xlu0 %v136, 64
    %v203 = vpop.permute.xlu0 %202
    %v205 = vsel %vm188, %v201, 0
    %vm207 = vcmask 1043456
    %v209 = vsel %vm207, %v203, 0
    %211 = vmatprep.subr.bf16.mxu0 0
    %212 = vmatpush1.bf16.msra.mxu0 0
    %213 = vmatprep.subr.bf16.mxu0 0
    %214 = vmatpush1.bf16.msra.mxu0 0
    %215 = vmatprep.subr.bf16.mxu0 0
    %216 = vmatpush1.bf16.msra.mxu0 0
    %217 = vmatprep.subr.bf16.mxu0 0
    %218 = vmatpush1.bf16.msra.mxu0 0
    %219 = vmatprep.subr.bf16.mxu0 0
    %220 = vmatpush1.bf16.msra.mxu0 0
    %221 = vmatprep.subr.bf16.mxu0 0
    %222 = vmatpush1.bf16.msra.mxu0 0
    %223 = vmatprep.subr.bf16.mxu0 0
    %224 = vmatpush1.bf16.msra.mxu0 0
    %225 = vmatprep.subr.bf16.mxu0 0
    %226 = vmatpush1.bf16.msra.mxu0 %v209
    %227 = vmatprep.subr.bf16.mxu0 0
    %228 = vmatpush2.bf16.msra.mxu0 0
    %229 = vmatprep.subr.bf16.mxu0 0
    %230 = vmatpush2.bf16.msra.mxu0 0
    %231 = vmatprep.subr.bf16.mxu0 0
    %232 = vmatpush2.bf16.msra.mxu0 0
    %233 = vmatprep.subr.bf16.mxu0 0
    %234 = vmatpush2.bf16.msra.mxu0 0
    %235 = vmatprep.subr.bf16.mxu0 0
    %236 = vmatpush2.bf16.msra.mxu0 0
    %237 = vmatprep.subr.bf16.mxu0 0
    %238 = vmatpush2.bf16.msra.mxu0 0
    %239 = vmatprep.subr.bf16.mxu0 0
    %240 = vmatpush2.bf16.msra.mxu0 0
    %241 = vmatprep.subr.bf16.mxu0 0
    %242 = vmatpush2.bf16.msra.mxu0 0
    %243 = vmatprep.mubr.bf16.mxu0 0
    %244 = vmatmul.mubr.bf16.gmra.mxu0 %v205
    %v245 = vpop.f32.mrf.mxu0
    %v246 = vadd.f32 0.0, %v245
    %v247 = vpop.f32.mrf.mxu0
    %v248 = vpop.f32.mrf.mxu0
    %v249 = vpop.f32.mrf.mxu0
    %250 = vdwg.mxu0
    %v251 = vpack.c.bf16 %v246, %v246
    %vm252 = vcmask 27648
    %253 = vst.msk [vmem:[#allocation3] sm:$0xf] %vm252, %v251
    %v254 = vld [vmem:[#allocation2] sm:$0xff]
    %v255 = vpack.c.bf16 %v254, %v254
    %257 = vrot.lane.b32.xlu0 %v255, 124
    %v258 = vpop.permute.xlu0 %257
    %259 = vrot.lane.b32.xlu0 %v255, 92
    %v260 = vpop.permute.xlu0 %259
    %v262 = vsel %vm140, %v258, 0
    %v265 = vsel %vm140, %v260, 0
    %267 = vmatprep.subr.bf16.mxu0 0
    %268 = vmatpush1.bf16.xpose.msra.mxu0 0
    %269 = vmatprep.subr.bf16.mxu0 0
    %270 = vmatpush1.bf16.xpose.msra.mxu0 0
    %271 = vmatprep.subr.bf16.mxu0 0
    %272 = vmatpush1.bf16.xpose.msra.mxu0 0
    %273 = vmatprep.subr.bf16.mxu0 0
    %274 = vmatpush1.bf16.xpose.msra.mxu0 0
    %275 = vmatprep.subr.bf16.mxu0 0
    %276 = vmatpush1.bf16.xpose.msra.mxu0 0
    %277 = vmatprep.subr.bf16.mxu0 0
    %278 = vmatpush1.bf16.xpose.msra.mxu0 0
    %279 = vmatprep.subr.bf16.mxu0 0
    %280 = vmatpush1.bf16.xpose.msra.mxu0 0
    %281 = vmatprep.subr.bf16.mxu0 0
    %282 = vmatpush1.bf16.xpose.msra.mxu0 %v265
    %283 = vmatprep.subr.bf16.mxu0 0
    %284 = vmatpush2.bf16.xpose.msra.mxu0 0
    %285 = vmatprep.subr.bf16.mxu0 0
    %286 = vmatpush2.bf16.xpose.msra.mxu0 0
    %287 = vmatprep.subr.bf16.mxu0 0
    %288 = vmatpush2.bf16.xpose.msra.mxu0 0
    %289 = vmatprep.subr.bf16.mxu0 0
    %290 = vmatpush2.bf16.xpose.msra.mxu0 0
    %291 = vmatprep.subr.bf16.mxu0 0
    %292 = vmatpush2.bf16.xpose.msra.mxu0 0
    %293 = vmatprep.subr.bf16.mxu0 0
    %294 = vmatpush2.bf16.xpose.msra.mxu0 0
    %295 = vmatprep.subr.bf16.mxu0 0
    %296 = vmatpush2.bf16.xpose.msra.mxu0 0
    %297 = vmatprep.subr.bf16.mxu0 0
    %298 = vmatpush2.bf16.xpose.msra.mxu0 0
    %299 = vmatprep.mubr.bf16.mxu0 0
    %300 = vmatmul.mubr.bf16.gmra.mxu0 %v262
    %v301 = vpop.f32.mrf.mxu0
    %v302 = vadd.f32 0.0, %v301
    %v303 = vpop.f32.mrf.mxu0
    %v304 = vpop.f32.mrf.mxu0
    %v305 = vpop.f32.mrf.mxu0
    %306 = vdwg.mxu0
    %v307 = vmul.f32 %v302, 0.5
    %v308 = vsel %vm188, %v307, -inf
    %309 = vmax.xlane.f32.xlu0 %v308
    %v310 = vpop.xlane.xlu0 %309
    %v311 = vsub.f32 %v307, %v310
    %v312 = vmul.f32 %v311, 1.442695
    %v313 = vpow.pop %v312
    %v314 = vsel %vm188, %v313, 0.0
    %315 = vadd.xlane.f32.xlu0 %v314
    %v316 = vpop.xlane.xlu0 %315
    %v317 = vrcp.pop %v316
    %v318 = vmul.f32 %v313, %v317
    %v319 = vadd.f32 %v200, %v318
    %v320 = vpack.c.bf16 %v318, %v318
    %321 = vrot.lane.b32.xlu0 %v255, 60
    %v322 = vpop.permute.xlu0 %321
    %v324 = vsel %vm188, %v320, 0
    %v327 = vsel %vm207, %v322, 0
    %329 = vmatprep.subr.bf16.mxu0 0
    %330 = vmatpush1.bf16.msra.mxu0 0
    %331 = vmatprep.subr.bf16.mxu0 0
    %332 = vmatpush1.bf16.msra.mxu0 0
    %333 = vmatprep.subr.bf16.mxu0 0
    %334 = vmatpush1.bf16.msra.mxu0 0
    %335 = vmatprep.subr.bf16.mxu0 0
    %336 = vmatpush1.bf16.msra.mxu0 0
    %337 = vmatprep.subr.bf16.mxu0 0
    %338 = vmatpush1.bf16.msra.mxu0 0
    %339 = vmatprep.subr.bf16.mxu0 0
    %340 = vmatpush1.bf16.msra.mxu0 0
    %341 = vmatprep.subr.bf16.mxu0 0
    %342 = vmatpush1.bf16.msra.mxu0 0
    %343 = vmatprep.subr.bf16.mxu0 0
    %344 = vmatpush1.bf16.msra.mxu0 %v327
    %345 = vmatprep.subr.bf16.mxu0 0
    %346 = vmatpush2.bf16.msra.mxu0 0
    %347 = vmatprep.subr.bf16.mxu0 0
    %348 = vmatpush2.bf16.msra.mxu0 0
    %349 = vmatprep.subr.bf16.mxu0 0
    %350 = vmatpush2.bf16.msra.mxu0 0
    %351 = vmatprep.subr.bf16.mxu0 0
    %352 = vmatpush2.bf16.msra.mxu0 0
    %353 = vmatprep.subr.bf16.mxu0 0
    %354 = vmatpush2.bf16.msra.mxu0 0
    %355 = vmatprep.subr.bf16.mxu0 0
    %356 = vmatpush2.bf16.msra.mxu0 0
    %357 = vmatprep.subr.bf16.mxu0 0
    %358 = vmatpush2.bf16.msra.mxu0 0
    %359 = vmatprep.subr.bf16.mxu0 0
    %360 = vmatpush2.bf16.msra.mxu0 0
    %361 = vmatprep.mubr.bf16.mxu0 0
    %362 = vmatmul.mubr.bf16.gmra.mxu0 %v324
    %v363 = vpop.f32.mrf.mxu0
    %v364 = vadd.f32 0.0, %v363
    %v365 = vpop.f32.mrf.mxu0
    %v366 = vpop.f32.mrf.mxu0
    %v367 = vpop.f32.mrf.mxu0
    %368 = vdwg.mxu0
    %v369 = vpack.c.bf16 %v364, %v364
    %v371 = vunpack.c.l.b16 %v369
    %v372 = vpack.c.b16 %v371, %v371
    %373 = vrot.lane.b32.xlu0 %v372, 4
    %v374 = vpop.permute.xlu0 %373
    %vm376 = vcmask 60448
    %377 = vst.msk [vmem:[#allocation3] sm:$0xf] %vm376, %v374
    %v378 = vld [vmem:[#allocation2] sm:$0xff]
    %v379 = vpack.c.bf16 %v378, %v378
    %381 = vrot.lane.b32.xlu0 %v379, 120
    %v382 = vpop.permute.xlu0 %381
    %383 = vrot.lane.b32.xlu0 %v379, 88
    %v384 = vpop.permute.xlu0 %383
    %v386 = vsel %vm140, %v382, 0
    %v389 = vsel %vm140, %v384, 0
    %391 = vmatprep.subr.bf16.mxu0 0
    %392 = vmatpush1.bf16.xpose.msra.mxu0 0
    %393 = vmatprep.subr.bf16.mxu0 0
    %394 = vmatpush1.bf16.xpose.msra.mxu0 0
    %395 = vmatprep.subr.bf16.mxu0 0
    %396 = vmatpush1.bf16.xpose.msra.mxu0 0
    %397 = vmatprep.subr.bf16.mxu0 0
    %398 = vmatpush1.bf16.xpose.msra.mxu0 0
    %399 = vmatprep.subr.bf16.mxu0 0
    %400 = vmatpush1.bf16.xpose.msra.mxu0 0
    %401 = vmatprep.subr.bf16.mxu0 0
    %402 = vmatpush1.bf16.xpose.msra.mxu0 0
    %403 = vmatprep.subr.bf16.mxu0 0
    %404 = vmatpush1.bf16.xpose.msra.mxu0 0
    %405 = vmatprep.subr.bf16.mxu0 0
    %406 = vmatpush1.bf16.xpose.msra.mxu0 %v389
    %407 = vmatprep.subr.bf16.mxu0 0
    %408 = vmatpush2.bf16.xpose.msra.mxu0 0
    %409 = vmatprep.subr.bf16.mxu0 0
    %410 = vmatpush2.bf16.xpose.msra.mxu0 0
    %411 = vmatprep.subr.bf16.mxu0 0
    %412 = vmatpush2.bf16.xpose.msra.mxu0 0
    %413 = vmatprep.subr.bf16.mxu0 0
    %414 = vmatpush2.bf16.xpose.msra.mxu0 0
    %415 = vmatprep.subr.bf16.mxu0 0
    %416 = vmatpush2.bf16.xpose.msra.mxu0 0
    %417 = vmatprep.subr.bf16.mxu0 0
    %418 = vmatpush2.bf16.xpose.msra.mxu0 0
    %419 = vmatprep.subr.bf16.mxu0 0
    %420 = vmatpush2.bf16.xpose.msra.mxu0 0
    %421 = vmatprep.subr.bf16.mxu0 0
    %422 = vmatpush2.bf16.xpose.msra.mxu0 0
    %423 = vmatprep.mubr.bf16.mxu0 0
    %424 = vmatmul.mubr.bf16.gmra.mxu0 %v386
    %v425 = vpop.f32.mrf.mxu0
    %v426 = vadd.f32 0.0, %v425
    %v427 = vpop.f32.mrf.mxu0
    %v428 = vpop.f32.mrf.mxu0
    %v429 = vpop.f32.mrf.mxu0
    %430 = vdwg.mxu0
    %v431 = vmul.f32 %v426, 0.5
    %v432 = vsel %vm188, %v431, -inf
    %433 = vmax.xlane.f32.xlu0 %v432
    %v434 = vpop.xlane.xlu0 %433
    %v435 = vsub.f32 %v431, %v434
    %v436 = vmul.f32 %v435, 1.442695
    %v437 = vpow.pop %v436
    %v438 = vsel %vm188, %v437, 0.0
    %439 = vadd.xlane.f32.xlu0 %v438
    %v440 = vpop.xlane.xlu0 %439
    %v441 = vrcp.pop %v440
    %v442 = vmul.f32 %v437, %v441
    %v443 = vadd.f32 %v319, %v442
    %v444 = vpack.c.bf16 %v442, %v442
    %445 = vrot.lane.b32.xlu0 %v379, 56
    %v446 = vpop.permute.xlu0 %445
    %v448 = vsel %vm188, %v444, 0
    %v451 = vsel %vm207, %v446, 0
    %453 = vmatprep.subr.bf16.mxu0 0
    %454 = vmatpush1.bf16.msra.mxu0 0
    %455 = vmatprep.subr.bf16.mxu0 0
    %456 = vmatpush1.bf16.msra.mxu0 0
    %457 = vmatprep.subr.bf16.mxu0 0
    %458 = vmatpush1.bf16.msra.mxu0 0
    %459 = vmatprep.subr.bf16.mxu0 0
    %460 = vmatpush1.bf16.msra.mxu0 0
    %461 = vmatprep.subr.bf16.mxu0 0
    %462 = vmatpush1.bf16.msra.mxu0 0
    %463 = vmatprep.subr.bf16.mxu0 0
    %464 = vmatpush1.bf16.msra.mxu0 0
    %465 = vmatprep.subr.bf16.mxu0 0
    %466 = vmatpush1.bf16.msra.mxu0 0
    %467 = vmatprep.subr.bf16.mxu0 0
    %468 = vmatpush1.bf16.msra.mxu0 %v451
    %469 = vmatprep.subr.bf16.mxu0 0
    %470 = vmatpush2.bf16.msra.mxu0 0
    %471 = vmatprep.subr.bf16.mxu0 0
    %472 = vmatpush2.bf16.msra.mxu0 0
    %473 = vmatprep.subr.bf16.mxu0 0
    %474 = vmatpush2.bf16.msra.mxu0 0
    %475 = vmatprep.subr.bf16.mxu0 0
    %476 = vmatpush2.bf16.msra.mxu0 0
    %477 = vmatprep.subr.bf16.mxu0 0
    %478 = vmatpush2.bf16.msra.mxu0 0
    %479 = vmatprep.subr.bf16.mxu0 0
    %480 = vmatpush2.bf16.msra.mxu0 0
    %481 = vmatprep.subr.bf16.mxu0 0
    %482 = vmatpush2.bf16.msra.mxu0 0
    %483 = vmatprep.subr.bf16.mxu0 0
    %484 = vmatpush2.bf16.msra.mxu0 0
    %485 = vmatprep.mubr.bf16.mxu0 0
    %486 = vmatmul.mubr.bf16.gmra.mxu0 %v448
    %v487 = vpop.f32.mrf.mxu0
    %v488 = vadd.f32 0.0, %v487
    %v489 = vpop.f32.mrf.mxu0
    %v490 = vpop.f32.mrf.mxu0
    %v491 = vpop.f32.mrf.mxu0
    %492 = vdwg.mxu0
    %v493 = vpack.c.bf16 %v488, %v488
    %v495 = vunpack.c.l.b16 %v493
    %v496 = vpack.c.b16 %v495, %v495
    %497 = vrot.lane.b32.xlu0 %v496, 8
    %v498 = vpop.permute.xlu0 %497
    %vm500 = vcmask 93248
    %501 = vst.msk [vmem:[#allocation3] sm:$0xf] %vm500, %v498
    %v502 = vld [vmem:[#allocation2] sm:$0xff]
    %v503 = vpack.c.bf16 %v502, %v502
    %505 = vrot.lane.b32.xlu0 %v503, 116
    %v506 = vpop.permute.xlu0 %505
    %507 = vrot.lane.b32.xlu0 %v503, 84
    %v508 = vpop.permute.xlu0 %507
    %v510 = vsel %vm140, %v506, 0
    %v513 = vsel %vm140, %v508, 0
    %515 = vmatprep.subr.bf16.mxu0 0
    %516 = vmatpush1.bf16.xpose.msra.mxu0 0
    %517 = vmatprep.subr.bf16.mxu0 0
    %518 = vmatpush1.bf16.xpose.msra.mxu0 0
    %519 = vmatprep.subr.bf16.mxu0 0
    %520 = vmatpush1.bf16.xpose.msra.mxu0 0
    %521 = vmatprep.subr.bf16.mxu0 0
    %522 = vmatpush1.bf16.xpose.msra.mxu0 0
    %523 = vmatprep.subr.bf16.mxu0 0
    %524 = vmatpush1.bf16.xpose.msra.mxu0 0
    %525 = vmatprep.subr.bf16.mxu0 0
    %526 = vmatpush1.bf16.xpose.msra.mxu0 0
    %527 = vmatprep.subr.bf16.mxu0 0
    %528 = vmatpush1.bf16.xpose.msra.mxu0 0
    %529 = vmatprep.subr.bf16.mxu0 0
    %530 = vmatpush1.bf16.xpose.msra.mxu0 %v513
    %531 = vmatprep.subr.bf16.mxu0 0
    %532 = vmatpush2.bf16.xpose.msra.mxu0 0
    %533 = vmatprep.subr.bf16.mxu0 0
    %534 = vmatpush2.bf16.xpose.msra.mxu0 0
    %535 = vmatprep.subr.bf16.mxu0 0
    %536 = vmatpush2.bf16.xpose.msra.mxu0 0
    %537 = vmatprep.subr.bf16.mxu0 0
    %538 = vmatpush2.bf16.xpose.msra.mxu0 0
    %539 = vmatprep.subr.bf16.mxu0 0
    %540 = vmatpush2.bf16.xpose.msra.mxu0 0
    %541 = vmatprep.subr.bf16.mxu0 0
    %542 = vmatpush2.bf16.xpose.msra.mxu0 0
    %543 = vmatprep.subr.bf16.mxu0 0
    %544 = vmatpush2.bf16.xpose.msra.mxu0 0
    %545 = vmatprep.subr.bf16.mxu0 0
    %546 = vmatpush2.bf16.xpose.msra.mxu0 0
    %547 = vmatprep.mubr.bf16.mxu0 0
    %548 = vmatmul.mubr.bf16.gmra.mxu0 %v510
    %v549 = vpop.f32.mrf.mxu0
    %v550 = vadd.f32 0.0, %v549
    %v551 = vpop.f32.mrf.mxu0
    %v552 = vpop.f32.mrf.mxu0
    %v553 = vpop.f32.mrf.mxu0
    %554 = vdwg.mxu0
    %v555 = vmul.f32 %v550, 0.5
    %v556 = vsel %vm188, %v555, -inf
    %557 = vmax.xlane.f32.xlu0 %v556
    %v558 = vpop.xlane.xlu0 %557
    %v559 = vsub.f32 %v555, %v558
    %v560 = vmul.f32 %v559, 1.442695
    %v561 = vpow.pop %v560
    %v562 = vsel %vm188, %v561, 0.0
    %563 = vadd.xlane.f32.xlu0 %v562
    %v564 = vpop.xlane.xlu0 %563
    %v565 = vrcp.pop %v564
    %v566 = vmul.f32 %v561, %v565
    %v567 = vadd.f32 %v443, %v566
    %v568 = vpack.c.bf16 %v566, %v566
    %569 = vrot.lane.b32.xlu0 %v503, 52
    %v570 = vpop.permute.xlu0 %569
    %v572 = vsel %vm188, %v568, 0
    %v575 = vsel %vm207, %v570, 0
    %577 = vmatprep.subr.bf16.mxu0 0
    %578 = vmatpush1.bf16.msra.mxu0 0
    %579 = vmatprep.subr.bf16.mxu0 0
    %580 = vmatpush1.bf16.msra.mxu0 0
    %581 = vmatprep.subr.bf16.mxu0 0
    %582 = vmatpush1.bf16.msra.mxu0 0
    %583 = vmatprep.subr.bf16.mxu0 0
    %584 = vmatpush1.bf16.msra.mxu0 0
    %585 = vmatprep.subr.bf16.mxu0 0
    %586 = vmatpush1.bf16.msra.mxu0 0
    %587 = vmatprep.subr.bf16.mxu0 0
    %588 = vmatpush1.bf16.msra.mxu0 0
    %589 = vmatprep.subr.bf16.mxu0 0
    %590 = vmatpush1.bf16.msra.mxu0 0
    %591 = vmatprep.subr.bf16.mxu0 0
    %592 = vmatpush1.bf16.msra.mxu0 %v575
    %593 = vmatprep.subr.bf16.mxu0 0
    %594 = vmatpush2.bf16.msra.mxu0 0
    %595 = vmatprep.subr.bf16.mxu0 0
    %596 = vmatpush2.bf16.msra.mxu0 0
    %597 = vmatprep.subr.bf16.mxu0 0
    %598 = vmatpush2.bf16.msra.mxu0 0
    %599 = vmatprep.subr.bf16.mxu0 0
    %600 = vmatpush2.bf16.msra.mxu0 0
    %601 = vmatprep.subr.bf16.mxu0 0
    %602 = vmatpush2.bf16.msra.mxu0 0
    %603 = vmatprep.subr.bf16.mxu0 0
    %604 = vmatpush2.bf16.msra.mxu0 0
    %605 = vmatprep.subr.bf16.mxu0 0
    %606 = vmatpush2.bf16.msra.mxu0 0
    %607 = vmatprep.subr.bf16.mxu0 0
    %608 = vmatpush2.bf16.msra.mxu0 0
    %609 = vmatprep.mubr.bf16.mxu0 0
    %610 = vmatmul.mubr.bf16.gmra.mxu0 %v572
    %v611 = vpop.f32.mrf.mxu0
    %v612 = vadd.f32 0.0, %v611
    %v613 = vpop.f32.mrf.mxu0
    %v614 = vpop.f32.mrf.mxu0
    %v615 = vpop.f32.mrf.mxu0
    %616 = vdwg.mxu0
    %v617 = vpack.c.bf16 %v612, %v612
    %v619 = vunpack.c.l.b16 %v617
    %v620 = vpack.c.b16 %v619, %v619
    %621 = vrot.lane.b32.xlu0 %v620, 12
    %v622 = vpop.permute.xlu0 %621
    %vm624 = vcmask 126048
    %625 = vst.msk [vmem:[#allocation3] sm:$0xf] %vm624, %v622
    %v626 = vld [vmem:[#allocation2] sm:$0xff]
    %v627 = vpack.c.bf16 %v626, %v626
    %629 = vrot.lane.b32.xlu0 %v627, 112
    %v630 = vpop.permute.xlu0 %629
    %631 = vrot.lane.b32.xlu0 %v627, 80
    %v632 = vpop.permute.xlu0 %631
    %v634 = vsel %vm140, %v630, 0
    %v637 = vsel %vm140, %v632, 0
    %639 = vmatprep.subr.bf16.mxu0 0
    %640 = vmatpush1.bf16.xpose.msra.mxu0 0
    %641 = vmatprep.subr.bf16.mxu0 0
    %642 = vmatpush1.bf16.xpose.msra.mxu0 0
    %643 = vmatprep.subr.bf16.mxu0 0
    %644 = vmatpush1.bf16.xpose.msra.mxu0 0
    %645 = vmatprep.subr.bf16.mxu0 0
    %646 = vmatpush1.bf16.xpose.msra.mxu0 0
    %647 = vmatprep.subr.bf16.mxu0 0
    %648 = vmatpush1.bf16.xpose.msra.mxu0 0
    %649 = vmatprep.subr.bf16.mxu0 0
    %650 = vmatpush1.bf16.xpose.msra.mxu0 0
    %651 = vmatprep.subr.bf16.mxu0 0
    %652 = vmatpush1.bf16.xpose.msra.mxu0 0
    %653 = vmatprep.subr.bf16.mxu0 0
    %654 = vmatpush1.bf16.xpose.msra.mxu0 %v637
    %655 = vmatprep.subr.bf16.mxu0 0
    %656 = vmatpush2.bf16.xpose.msra.mxu0 0
    %657 = vmatprep.subr.bf16.mxu0 0
    %658 = vmatpush2.bf16.xpose.msra.mxu0 0
    %659 = vmatprep.subr.bf16.mxu0 0
    %660 = vmatpush2.bf16.xpose.msra.mxu0 0
    %661 = vmatprep.subr.bf16.mxu0 0
    %662 = vmatpush2.bf16.xpose.msra.mxu0 0
    %663 = vmatprep.subr.bf16.mxu0 0
    %664 = vmatpush2.bf16.xpose.msra.mxu0 0
    %665 = vmatprep.subr.bf16.mxu0 0
    %666 = vmatpush2.bf16.xpose.msra.mxu0 0
    %667 = vmatprep.subr.bf16.mxu0 0
    %668 = vmatpush2.bf16.xpose.msra.mxu0 0
    %669 = vmatprep.subr.bf16.mxu0 0
    %670 = vmatpush2.bf16.xpose.msra.mxu0 0
    %671 = vmatprep.mubr.bf16.mxu0 0
    %672 = vmatmul.mubr.bf16.gmra.mxu0 %v634
    %v673 = vpop.f32.mrf.mxu0
    %v674 = vadd.f32 0.0, %v673
    %v675 = vpop.f32.mrf.mxu0
    %v676 = vpop.f32.mrf.mxu0
    %v677 = vpop.f32.mrf.mxu0
    %678 = vdwg.mxu0
    %v679 = vmul.f32 %v674, 0.5
    %v680 = vsel %vm188, %v679, -inf
    %681 = vmax.xlane.f32.xlu0 %v680
    %v682 = vpop.xlane.xlu0 %681
    %v683 = vsub.f32 %v679, %v682
    %v684 = vmul.f32 %v683, 1.442695
    %v685 = vpow.pop %v684
    %v686 = vsel %vm188, %v685, 0.0
    %687 = vadd.xlane.f32.xlu0 %v686
    %v688 = vpop.xlane.xlu0 %687
    %v689 = vrcp.pop %v688
    %v690 = vmul.f32 %v685, %v689
    %v691 = vadd.f32 %v567, %v690
    %v692 = vpack.c.bf16 %v690, %v690
    %693 = vrot.lane.b32.xlu0 %v627, 48
    %v694 = vpop.permute.xlu0 %693
    %v696 = vsel %vm188, %v692, 0
    %v699 = vsel %vm207, %v694, 0
    %701 = vmatprep.subr.bf16.mxu0 0
    %702 = vmatpush1.bf16.msra.mxu0 0
    %703 = vmatprep.subr.bf16.mxu0 0
    %704 = vmatpush1.bf16.msra.mxu0 0
    %705 = vmatprep.subr.bf16.mxu0 0
    %706 = vmatpush1.bf16.msra.mxu0 0
    %707 = vmatprep.subr.bf16.mxu0 0
    %708 = vmatpush1.bf16.msra.mxu0 0
    %709 = vmatprep.subr.bf16.mxu0 0
    %710 = vmatpush1.bf16.msra.mxu0 0
    %711 = vmatprep.subr.bf16.mxu0 0
    %712 = vmatpush1.bf16.msra.mxu0 0
    %713 = vmatprep.subr.bf16.mxu0 0
    %714 = vmatpush1.bf16.msra.mxu0 0
    %715 = vmatprep.subr.bf16.mxu0 0
    %716 = vmatpush1.bf16.msra.mxu0 %v699
    %717 = vmatprep.subr.bf16.mxu0 0
    %718 = vmatpush2.bf16.msra.mxu0 0
    %719 = vmatprep.subr.bf16.mxu0 0
    %720 = vmatpush2.bf16.msra.mxu0 0
    %721 = vmatprep.subr.bf16.mxu0 0
    %722 = vmatpush2.bf16.msra.mxu0 0
    %723 = vmatprep.subr.bf16.mxu0 0
    %724 = vmatpush2.bf16.msra.mxu0 0
    %725 = vmatprep.subr.bf16.mxu0 0
    %726 = vmatpush2.bf16.msra.mxu0 0
    %727 = vmatprep.subr.bf16.mxu0 0
    %728 = vmatpush2.bf16.msra.mxu0 0
    %729 = vmatprep.subr.bf16.mxu0 0
    %730 = vmatpush2.bf16.msra.mxu0 0
    %731 = vmatprep.subr.bf16.mxu0 0
    %732 = vmatpush2.bf16.msra.mxu0 0
    %733 = vmatprep.mubr.bf16.mxu0 0
    %734 = vmatmul.mubr.bf16.gmra.mxu0 %v696
    %v735 = vpop.f32.mrf.mxu0
    %v736 = vadd.f32 0.0, %v735
    %v737 = vpop.f32.mrf.mxu0
    %v738 = vpop.f32.mrf.mxu0
    %v739 = vpop.f32.mrf.mxu0
    %740 = vdwg.mxu0
    %v741 = vpack.c.bf16 %v736, %v736
    %v743 = vunpack.c.l.b16 %v741
    %v744 = vpack.c.b16 %v743, %v743
    %745 = vrot.lane.b32.xlu0 %v744, 16
    %v746 = vpop.permute.xlu0 %745
    %vm748 = vcmask 158848
    %749 = vst.msk [vmem:[#allocation3] sm:$0xf] %vm748, %v746
    %v750 = vld [vmem:[#allocation2] sm:$0xff]
    %v751 = vpack.c.bf16 %v750, %v750
    %753 = vrot.lane.b32.xlu0 %v751, 108
    %v754 = vpop.permute.xlu0 %753
    %755 = vrot.lane.b32.xlu0 %v751, 76
    %v756 = vpop.permute.xlu0 %755
    %v758 = vsel %vm140, %v754, 0
    %v761 = vsel %vm140, %v756, 0
    %763 = vmatprep.subr.bf16.mxu0 0
    %764 = vmatpush1.bf16.xpose.msra.mxu0 0
    %765 = vmatprep.subr.bf16.mxu0 0
    %766 = vmatpush1.bf16.xpose.msra.mxu0 0
    %767 = vmatprep.subr.bf16.mxu0 0
    %768 = vmatpush1.bf16.xpose.msra.mxu0 0
    %769 = vmatprep.subr.bf16.mxu0 0
    %770 = vmatpush1.bf16.xpose.msra.mxu0 0
    %771 = vmatprep.subr.bf16.mxu0 0
    %772 = vmatpush1.bf16.xpose.msra.mxu0 0
    %773 = vmatprep.subr.bf16.mxu0 0
    %774 = vmatpush1.bf16.xpose.msra.mxu0 0
    %775 = vmatprep.subr.bf16.mxu0 0
    %776 = vmatpush1.bf16.xpose.msra.mxu0 0
    %777 = vmatprep.subr.bf16.mxu0 0
    %778 = vmatpush1.bf16.xpose.msra.mxu0 %v761
    %779 = vmatprep.subr.bf16.mxu0 0
    %780 = vmatpush2.bf16.xpose.msra.mxu0 0
    %781 = vmatprep.subr.bf16.mxu0 0
    %782 = vmatpush2.bf16.xpose.msra.mxu0 0
    %783 = vmatprep.subr.bf16.mxu0 0
    %784 = vmatpush2.bf16.xpose.msra.mxu0 0
    %785 = vmatprep.subr.bf16.mxu0 0
    %786 = vmatpush2.bf16.xpose.msra.mxu0 0
    %787 = vmatprep.subr.bf16.mxu0 0
    %788 = vmatpush2.bf16.xpose.msra.mxu0 0
    %789 = vmatprep.subr.bf16.mxu0 0
    %790 = vmatpush2.bf16.xpose.msra.mxu0 0
    %791 = vmatprep.subr.bf16.mxu0 0
    %792 = vmatpush2.bf16.xpose.msra.mxu0 0
    %793 = vmatprep.subr.bf16.mxu0 0
    %794 = vmatpush2.bf16.xpose.msra.mxu0 0
    %795 = vmatprep.mubr.bf16.mxu0 0
    %796 = vmatmul.mubr.bf16.gmra.mxu0 %v758
    %v797 = vpop.f32.mrf.mxu0
    %v798 = vadd.f32 0.0, %v797
    %v799 = vpop.f32.mrf.mxu0
    %v800 = vpop.f32.mrf.mxu0
    %v801 = vpop.f32.mrf.mxu0
    %802 = vdwg.mxu0
    %v803 = vmul.f32 %v798, 0.5
    %v804 = vsel %vm188, %v803, -inf
    %805 = vmax.xlane.f32.xlu0 %v804
    %v806 = vpop.xlane.xlu0 %805
    %v807 = vsub.f32 %v803, %v806
    %v808 = vmul.f32 %v807, 1.442695
    %v809 = vpow.pop %v808
    %v810 = vsel %vm188, %v809, 0.0
    %811 = vadd.xlane.f32.xlu0 %v810
    %v812 = vpop.xlane.xlu0 %811
    %v813 = vrcp.pop %v812
    %v814 = vmul.f32 %v809, %v813
    %v815 = vadd.f32 %v691, %v814
    %v816 = vpack.c.bf16 %v814, %v814
    %817 = vrot.lane.b32.xlu0 %v751, 44
    %v818 = vpop.permute.xlu0 %817
    %v820 = vsel %vm188, %v816, 0
    %v823 = vsel %vm207, %v818, 0
    %825 = vmatprep.subr.bf16.mxu0 0
    %826 = vmatpush1.bf16.msra.mxu0 0
    %827 = vmatprep.subr.bf16.mxu0 0
    %828 = vmatpush1.bf16.msra.mxu0 0
    %829 = vmatprep.subr.bf16.mxu0 0
    %830 = vmatpush1.bf16.msra.mxu0 0
    %831 = vmatprep.subr.bf16.mxu0 0
    %832 = vmatpush1.bf16.msra.mxu0 0
    %833 = vmatprep.subr.bf16.mxu0 0
    %834 = vmatpush1.bf16.msra.mxu0 0
    %835 = vmatprep.subr.bf16.mxu0 0
    %836 = vmatpush1.bf16.msra.mxu0 0
    %837 = vmatprep.subr.bf16.mxu0 0
    %838 = vmatpush1.bf16.msra.mxu0 0
    %839 = vmatprep.subr.bf16.mxu0 0
    %840 = vmatpush1.bf16.msra.mxu0 %v823
    %841 = vmatprep.subr.bf16.mxu0 0
    %842 = vmatpush2.bf16.msra.mxu0 0
    %843 = vmatprep.subr.bf16.mxu0 0
    %844 = vmatpush2.bf16.msra.mxu0 0
    %845 = vmatprep.subr.bf16.mxu0 0
    %846 = vmatpush2.bf16.msra.mxu0 0
    %847 = vmatprep.subr.bf16.mxu0 0
    %848 = vmatpush2.bf16.msra.mxu0 0
    %849 = vmatprep.subr.bf16.mxu0 0
    %850 = vmatpush2.bf16.msra.mxu0 0
    %851 = vmatprep.subr.bf16.mxu0 0
    %852 = vmatpush2.bf16.msra.mxu0 0
    %853 = vmatprep.subr.bf16.mxu0 0
    %854 = vmatpush2.bf16.msra.mxu0 0
    %855 = vmatprep.subr.bf16.mxu0 0
    %856 = vmatpush2.bf16.msra.mxu0 0
    %857 = vmatprep.mubr.bf16.mxu0 0
    %858 = vmatmul.mubr.bf16.gmra.mxu0 %v820
    %v859 = vpop.f32.mrf.mxu0
    %v860 = vadd.f32 0.0, %v859
    %v861 = vpop.f32.mrf.mxu0
    %v862 = vpop.f32.mrf.mxu0
    %v863 = vpop.f32.mrf.mxu0
    %864 = vdwg.mxu0
    %v865 = vpack.c.bf16 %v860, %v860
    %v867 = vunpack.c.l.b16 %v865
    %v868 = vpack.c.b16 %v867, %v867
    %869 = vrot.lane.b32.xlu0 %v868, 20
    %v870 = vpop.permute.xlu0 %869
    %vm872 = vcmask 191648
    %873 = vst.msk [vmem:[#allocation3] sm:$0xf] %vm872, %v870
    %v874 = vld [vmem:[#allocation2] sm:$0xff]
    %v875 = vpack.c.bf16 %v874, %v874
    %877 = vrot.lane.b32.xlu0 %v875, 104
    %v878 = vpop.permute.xlu0 %877
    %879 = vrot.lane.b32.xlu0 %v875, 72
    %v880 = vpop.permute.xlu0 %879
    %v882 = vsel %vm140, %v878, 0
    %v885 = vsel %vm140, %v880, 0
    %887 = vmatprep.subr.bf16.mxu0 0
    %888 = vmatpush1.bf16.xpose.msra.mxu0 0
    %889 = vmatprep.subr.bf16.mxu0 0
    %890 = vmatpush1.bf16.xpose.msra.mxu0 0
    %891 = vmatprep.subr.bf16.mxu0 0
    %892 = vmatpush1.bf16.xpose.msra.mxu0 0
    %893 = vmatprep.subr.bf16.mxu0 0
    %894 = vmatpush1.bf16.xpose.msra.mxu0 0
    %895 = vmatprep.subr.bf16.mxu0 0
    %896 = vmatpush1.bf16.xpose.msra.mxu0 0
    %897 = vmatprep.subr.bf16.mxu0 0
    %898 = vmatpush1.bf16.xpose.msra.mxu0 0
    %899 = vmatprep.subr.bf16.mxu0 0
    %900 = vmatpush1.bf16.xpose.msra.mxu0 0
    %901 = vmatprep.subr.bf16.mxu0 0
    %902 = vmatpush1.bf16.xpose.msra.mxu0 %v885
    %903 = vmatprep.subr.bf16.mxu0 0
    %904 = vmatpush2.bf16.xpose.msra.mxu0 0
    %905 = vmatprep.subr.bf16.mxu0 0
    %906 = vmatpush2.bf16.xpose.msra.mxu0 0
    %907 = vmatprep.subr.bf16.mxu0 0
    %908 = vmatpush2.bf16.xpose.msra.mxu0 0
    %909 = vmatprep.subr.bf16.mxu0 0
    %910 = vmatpush2.bf16.xpose.msra.mxu0 0
    %911 = vmatprep.subr.bf16.mxu0 0
    %912 = vmatpush2.bf16.xpose.msra.mxu0 0
    %913 = vmatprep.subr.bf16.mxu0 0
    %914 = vmatpush2.bf16.xpose.msra.mxu0 0
    %915 = vmatprep.subr.bf16.mxu0 0
    %916 = vmatpush2.bf16.xpose.msra.mxu0 0
    %917 = vmatprep.subr.bf16.mxu0 0
    %918 = vmatpush2.bf16.xpose.msra.mxu0 0
    %919 = vmatprep.mubr.bf16.mxu0 0
    %920 = vmatmul.mubr.bf16.gmra.mxu0 %v882
    %v921 = vpop.f32.mrf.mxu0
    %v922 = vadd.f32 0.0, %v921
    %v923 = vpop.f32.mrf.mxu0
    %v924 = vpop.f32.mrf.mxu0
    %v925 = vpop.f32.mrf.mxu0
    %926 = vdwg.mxu0
    %v927 = vmul.f32 %v922, 0.5
    %v928 = vsel %vm188, %v927, -inf
    %929 = vmax.xlane.f32.xlu0 %v928
    %v930 = vpop.xlane.xlu0 %929
    %v931 = vsub.f32 %v927, %v930
    %v932 = vmul.f32 %v931, 1.442695
    %v933 = vpow.pop %v932
    %v934 = vsel %vm188, %v933, 0.0
    %935 = vadd.xlane.f32.xlu0 %v934
    %v936 = vpop.xlane.xlu0 %935
    %v937 = vrcp.pop %v936
    %v938 = vmul.f32 %v933, %v937
    %v939 = vadd.f32 %v815, %v938
    %v940 = vpack.c.bf16 %v938, %v938
    %941 = vrot.lane.b32.xlu0 %v875, 40
    %v942 = vpop.permute.xlu0 %941
    %v944 = vsel %vm188, %v940, 0
    %v947 = vsel %vm207, %v942, 0
    %949 = vmatprep.subr.bf16.mxu0 0
    %950 = vmatpush1.bf16.msra.mxu0 0
    %951 = vmatprep.subr.bf16.mxu0 0
    %952 = vmatpush1.bf16.msra.mxu0 0
    %953 = vmatprep.subr.bf16.mxu0 0
    %954 = vmatpush1.bf16.msra.mxu0 0
    %955 = vmatprep.subr.bf16.mxu0 0
    %956 = vmatpush1.bf16.msra.mxu0 0
    %957 = vmatprep.subr.bf16.mxu0 0
    %958 = vmatpush1.bf16.msra.mxu0 0
    %959 = vmatprep.subr.bf16.mxu0 0
    %960 = vmatpush1.bf16.msra.mxu0 0
    %961 = vmatprep.subr.bf16.mxu0 0
    %962 = vmatpush1.bf16.msra.mxu0 0
    %963 = vmatprep.subr.bf16.mxu0 0
    %964 = vmatpush1.bf16.msra.mxu0 %v947
    %965 = vmatprep.subr.bf16.mxu0 0
    %966 = vmatpush2.bf16.msra.mxu0 0
    %967 = vmatprep.subr.bf16.mxu0 0
    %968 = vmatpush2.bf16.msra.mxu0 0
    %969 = vmatprep.subr.bf16.mxu0 0
    %970 = vmatpush2.bf16.msra.mxu0 0
    %971 = vmatprep.subr.bf16.mxu0 0
    %972 = vmatpush2.bf16.msra.mxu0 0
    %973 = vmatprep.subr.bf16.mxu0 0
    %974 = vmatpush2.bf16.msra.mxu0 0
    %975 = vmatprep.subr.bf16.mxu0 0
    %976 = vmatpush2.bf16.msra.mxu0 0
    %977 = vmatprep.subr.bf16.mxu0 0
    %978 = vmatpush2.bf16.msra.mxu0 0
    %979 = vmatprep.subr.bf16.mxu0 0
    %980 = vmatpush2.bf16.msra.mxu0 0
    %981 = vmatprep.mubr.bf16.mxu0 0
    %982 = vmatmul.mubr.bf16.gmra.mxu0 %v944
    %v983 = vpop.f32.mrf.mxu0
    %v984 = vadd.f32 0.0, %v983
    %v985 = vpop.f32.mrf.mxu0
    %v986 = vpop.f32.mrf.mxu0
    %v987 = vpop.f32.mrf.mxu0
    %988 = vdwg.mxu0
    %v989 = vpack.c.bf16 %v984, %v984
    %v991 = vunpack.c.l.b16 %v989
    %v992 = vpack.c.b16 %v991, %v991
    %993 = vrot.lane.b32.xlu0 %v992, 24
    %v994 = vpop.permute.xlu0 %993
    %vm996 = vcmask 224448
    %997 = vst.msk [vmem:[#allocation3] sm:$0xf] %vm996, %v994
    %v998 = vld [vmem:[#allocation2] sm:$0xff]
    %v999 = vpack.c.bf16 %v998, %v998
    %1001 = vrot.lane.b32.xlu0 %v999, 100
    %v1002 = vpop.permute.xlu0 %1001
    %1003 = vrot.lane.b32.xlu0 %v999, 68
    %v1004 = vpop.permute.xlu0 %1003
    %v1006 = vsel %vm140, %v1002, 0
    %v1009 = vsel %vm140, %v1004, 0
    %1011 = vmatprep.subr.bf16.mxu0 0
    %1012 = vmatpush1.bf16.xpose.msra.mxu0 0
    %1013 = vmatprep.subr.bf16.mxu0 0
    %1014 = vmatpush1.bf16.xpose.msra.mxu0 0
    %1015 = vmatprep.subr.bf16.mxu0 0
    %1016 = vmatpush1.bf16.xpose.msra.mxu0 0
    %1017 = vmatprep.subr.bf16.mxu0 0
    %1018 = vmatpush1.bf16.xpose.msra.mxu0 0
    %1019 = vmatprep.subr.bf16.mxu0 0
    %1020 = vmatpush1.bf16.xpose.msra.mxu0 0
    %1021 = vmatprep.subr.bf16.mxu0 0
    %1022 = vmatpush1.bf16.xpose.msra.mxu0 0
    %1023 = vmatprep.subr.bf16.mxu0 0
    %1024 = vmatpush1.bf16.xpose.msra.mxu0 0
    %1025 = vmatprep.subr.bf16.mxu0 0
    %1026 = vmatpush1.bf16.xpose.msra.mxu0 %v1009
    %1027 = vmatprep.subr.bf16.mxu0 0
    %1028 = vmatpush2.bf16.xpose.msra.mxu0 0
    %1029 = vmatprep.subr.bf16.mxu0 0
    %1030 = vmatpush2.bf16.xpose.msra.mxu0 0
    %1031 = vmatprep.subr.bf16.mxu0 0
    %1032 = vmatpush2.bf16.xpose.msra.mxu0 0
    %1033 = vmatprep.subr.bf16.mxu0 0
    %1034 = vmatpush2.bf16.xpose.msra.mxu0 0
    %1035 = vmatprep.subr.bf16.mxu0 0
    %1036 = vmatpush2.bf16.xpose.msra.mxu0 0
    %1037 = vmatprep.subr.bf16.mxu0 0
    %1038 = vmatpush2.bf16.xpose.msra.mxu0 0
    %1039 = vmatprep.subr.bf16.mxu0 0
    %1040 = vmatpush2.bf16.xpose.msra.mxu0 0
    %1041 = vmatprep.subr.bf16.mxu0 0
    %1042 = vmatpush2.bf16.xpose.msra.mxu0 0
    %1043 = vmatprep.mubr.bf16.mxu0 0
    %1044 = vmatmul.mubr.bf16.gmra.mxu0 %v1006
    %v1045 = vpop.f32.mrf.mxu0
    %v1046 = vadd.f32 0.0, %v1045
    %v1047 = vpop.f32.mrf.mxu0
    %v1048 = vpop.f32.mrf.mxu0
    %v1049 = vpop.f32.mrf.mxu0
    %1050 = vdwg.mxu0
    %v1051 = vmul.f32 %v1046, 0.5
    %v1052 = vsel %vm188, %v1051, -inf
    %1053 = vmax.xlane.f32.xlu0 %v1052
    %v1054 = vpop.xlane.xlu0 %1053
    %v1055 = vsub.f32 %v1051, %v1054
    %v1056 = vmul.f32 %v1055, 1.442695
    %v1057 = vpow.pop %v1056
    %v1058 = vsel %vm188, %v1057, 0.0
    %1059 = vadd.xlane.f32.xlu0 %v1058
    %v1060 = vpop.xlane.xlu0 %1059
    %v1061 = vrcp.pop %v1060
    %v1062 = vmul.f32 %v1057, %v1061
    %v1063 = vadd.f32 %v939, %v1062
    %v1064 = vpack.c.bf16 %v1062, %v1062
    %1065 = vrot.lane.b32.xlu0 %v999, 36
    %v1066 = vpop.permute.xlu0 %1065
    %v1068 = vsel %vm188, %v1064, 0
    %v1071 = vsel %vm207, %v1066, 0
    %1073 = vmatprep.subr.bf16.mxu0 0
    %1074 = vmatpush1.bf16.msra.mxu0 0
    %1075 = vmatprep.subr.bf16.mxu0 0
    %1076 = vmatpush1.bf16.msra.mxu0 0
    %1077 = vmatprep.subr.bf16.mxu0 0
    %1078 = vmatpush1.bf16.msra.mxu0 0
    %1079 = vmatprep.subr.bf16.mxu0 0
    %1080 = vmatpush1.bf16.msra.mxu0 0
    %1081 = vmatprep.subr.bf16.mxu0 0
    %1082 = vmatpush1.bf16.msra.mxu0 0
    %1083 = vmatprep.subr.bf16.mxu0 0
    %1084 = vmatpush1.bf16.msra.mxu0 0
    %1085 = vmatprep.subr.bf16.mxu0 0
    %1086 = vmatpush1.bf16.msra.mxu0 0
    %1087 = vmatprep.subr.bf16.mxu0 0
    %1088 = vmatpush1.bf16.msra.mxu0 %v1071
    %1089 = vmatprep.subr.bf16.mxu0 0
    %1090 = vmatpush2.bf16.msra.mxu0 0
    %1091 = vmatprep.subr.bf16.mxu0 0
    %1092 = vmatpush2.bf16.msra.mxu0 0
    %1093 = vmatprep.subr.bf16.mxu0 0
    %1094 = vmatpush2.bf16.msra.mxu0 0
    %1095 = vmatprep.subr.bf16.mxu0 0
    %1096 = vmatpush2.bf16.msra.mxu0 0
    %1097 = vmatprep.subr.bf16.mxu0 0
    %1098 = vmatpush2.bf16.msra.mxu0 0
    %1099 = vmatprep.subr.bf16.mxu0 0
    %1100 = vmatpush2.bf16.msra.mxu0 0
    %1101 = vmatprep.subr.bf16.mxu0 0
    %1102 = vmatpush2.bf16.msra.mxu0 0
    %1103 = vmatprep.subr.bf16.mxu0 0
    %1104 = vmatpush2.bf16.msra.mxu0 0
    %1105 = vmatprep.mubr.bf16.mxu0 0
    %1106 = vmatmul.mubr.bf16.gmra.mxu0 %v1068
    %v1107 = vpop.f32.mrf.mxu0
    %v1108 = vadd.f32 0.0, %v1107
    %v1109 = vpop.f32.mrf.mxu0
    %v1110 = vpop.f32.mrf.mxu0
    %v1111 = vpop.f32.mrf.mxu0
    %1112 = vdwg.mxu0
    %v1113 = vpack.c.bf16 %v1108, %v1108
    %v1115 = vunpack.c.l.b16 %v1113
    %v1116 = vpack.c.b16 %v1115, %v1115
    %1117 = vrot.lane.b32.xlu0 %v1116, 28
    %v1118 = vpop.permute.xlu0 %1117
    %vm1120 = vcmask 257248
    %1121 = vst.msk [vmem:[#allocation3] sm:$0xf] %vm1120, %v1118
    %v1122 = vmul.f32 %v1063, 0.125
    %1123 = vst.msk [vmem:[#allocation11] sm:$0xff] %vm188, %v1122
    %v1124 = vld [vmem:[#allocation3] sm:$0xf]
    %v1126 = vlaneseq
    %v1127 = vshrl.u32 %v1126, 7
    %v1128 = vsub.s32 0, %v1127
    %v1129 = vrot.slane %v134, %v1128
    %v1135 = vunpack.c.l.b16 %v130
    %v1136 = vunpack.c.l.b16 %v131
    %v1137 = vunpack.c.l.b16 %v132
    %v1138 = vunpack.c.l.b16 %v133
    %v1139 = vpack.c.b16 %v1136, %v1135
    %v1140 = vpack.c.b16 %v1138, %v1137
    %v1144 = vsel %vm82, %v1124, 0
    %1146 = vmatprep.subr.bf16.mxu0 0
    %1147 = vmatpush1.bf16.msra.mxu0 0
    %1148 = vmatprep.subr.bf16.mxu0 0
    %1149 = vmatpush1.bf16.msra.mxu0 0
    %1150 = vmatprep.subr.bf16.mxu0 0
    %1151 = vmatpush1.bf16.msra.mxu0 0
    %1152 = vmatprep.subr.bf16.mxu0 0
    %1153 = vmatpush1.bf16.msra.mxu0 0
    %1154 = vmatprep.subr.bf16.mxu0 0
    %1155 = vmatpush1.bf16.msra.mxu0 0
    %1156 = vmatprep.subr.bf16.mxu0 0
    %1157 = vmatpush1.bf16.msra.mxu0 0
    %1158 = vmatprep.subr.bf16.mxu0 0
    %1159 = vmatpush1.bf16.msra.mxu0 %v1140
    %1160 = vmatprep.subr.bf16.mxu0 0
    %1161 = vmatpush1.bf16.msra.mxu0 %v1139
    %1162 = vmatprep.subr.bf16.mxu0 0
    %1163 = vmatpush2.bf16.msra.mxu0 0
    %1164 = vmatprep.subr.bf16.mxu0 0
    %1165 = vmatpush2.bf16.msra.mxu0 0
    %1166 = vmatprep.subr.bf16.mxu0 0
    %1167 = vmatpush2.bf16.msra.mxu0 0
    %1168 = vmatprep.subr.bf16.mxu0 0
    %1169 = vmatpush2.bf16.msra.mxu0 0
    %1170 = vmatprep.subr.bf16.mxu0 0
    %1171 = vmatpush2.bf16.msra.mxu0 0
    %1172 = vmatprep.subr.bf16.mxu0 0
    %1173 = vmatpush2.bf16.msra.mxu0 0
    %1174 = vmatprep.subr.bf16.mxu0 0
    %1175 = vmatpush2.bf16.msra.mxu0 0
    %1176 = vmatprep.subr.bf16.mxu0 0
    %1177 = vmatpush2.bf16.msra.mxu0 0
    %1178 = vmatprep.mubr.bf16.mxu0 0
    %1179 = vmatmul.mubr.bf16.gmra.mxu0 %v1144
    %v1180 = vpop.f32.mrf.mxu0
    %v1181 = vadd.f32 %v1129, %v1180
    %v1182 = vpop.f32.mrf.mxu0
    %v1183 = vpop.f32.mrf.mxu0
    %v1184 = vpop.f32.mrf.mxu0
    %1185 = vdwg.mxu0
    %1186 = vst.msk [vmem:[#allocation10] sm:$0xff] %vm82, %v1181
    %s1187 = scalar_lea.vmem [#allocation2], 8
    %v1188 = vld [vmem:[%s1187] sm:$0xff]
    %v1189 = vpack.c.bf16 %v1188, %v1188
    %1191 = vrot.lane.b32.xlu0 %v1189, 96
    %v1192 = vpop.permute.xlu0 %1191
    %v1194 = vsel %vm140, %v1189, 0
    %v1197 = vsel %vm140, %v1192, 0
    %1199 = vmatprep.subr.bf16.mxu0 0
    %1200 = vmatpush1.bf16.xpose.msra.mxu0 0
    %1201 = vmatprep.subr.bf16.mxu0 0
    %1202 = vmatpush1.bf16.xpose.msra.mxu0 0
    %1203 = vmatprep.subr.bf16.mxu0 0
    %1204 = vmatpush1.bf16.xpose.msra.mxu0 0
    %1205 = vmatprep.subr.bf16.mxu0 0
    %1206 = vmatpush1.bf16.xpose.msra.mxu0 0
    %1207 = vmatprep.subr.bf16.mxu0 0
    %1208 = vmatpush1.bf16.xpose.msra.mxu0 0
    %1209 = vmatprep.subr.bf16.mxu0 0
    %1210 = vmatpush1.bf16.xpose.msra.mxu0 0
    %1211 = vmatprep.subr.bf16.mxu0 0
    %1212 = vmatpush1.bf16.xpose.msra.mxu0 0
    %1213 = vmatprep.subr.bf16.mxu0 0
    %1214 = vmatpush1.bf16.xpose.msra.mxu0 %v1197
    %1215 = vmatprep.subr.bf16.mxu0 0
    %1216 = vmatpush2.bf16.xpose.msra.mxu0 0
    %1217 = vmatprep.subr.bf16.mxu0 0
    %1218 = vmatpush2.bf16.xpose.msra.mxu0 0
    %1219 = vmatprep.subr.bf16.mxu0 0
    %1220 = vmatpush2.bf16.xpose.msra.mxu0 0
    %1221 = vmatprep.subr.bf16.mxu0 0
    %1222 = vmatpush2.bf16.xpose.msra.mxu0 0
    %1223 = vmatprep.subr.bf16.mxu0 0
    %1224 = vmatpush2.bf16.xpose.msra.mxu0 0
    %1225 = vmatprep.subr.bf16.mxu0 0
    %1226 = vmatpush2.bf16.xpose.msra.mxu0 0
    %1227 = vmatprep.subr.bf16.mxu0 0
    %1228 = vmatpush2.bf16.xpose.msra.mxu0 0
    %1229 = vmatprep.subr.bf16.mxu0 0
    %1230 = vmatpush2.bf16.xpose.msra.mxu0 0
    %1231 = vmatprep.mubr.bf16.mxu0 0
    %1232 = vmatmul.mubr.bf16.gmra.mxu0 %v1194
    %v1233 = vpop.f32.mrf.mxu0
    %v1234 = vadd.f32 0.0, %v1233
    %v1235 = vpop.f32.mrf.mxu0
    %v1236 = vpop.f32.mrf.mxu0
    %v1237 = vpop.f32.mrf.mxu0
    %1238 = vdwg.mxu0
    %v1239 = vmul.f32 %v1234, 0.5
    %v1240 = vsel %vm188, %v1239, -inf
    %1241 = vmax.xlane.f32.xlu0 %v1240
    %v1242 = vpop.xlane.xlu0 %1241
    %v1243 = vsub.f32 %v1239, %v1242
    %v1244 = vmul.f32 %v1243, 1.442695
    %v1245 = vpow.pop %v1244
    %v1246 = vsel %vm188, %v1245, 0.0
    %1247 = vadd.xlane.f32.xlu0 %v1246
    %v1248 = vpop.xlane.xlu0 %1247
    %v1249 = vrcp.pop %v1248
    %v1250 = vmul.f32 %v1245, %v1249
    %v1251 = vadd.f32 %v1250, 0.0
    %v1252 = vpack.c.bf16 %v1250, %v1250
    %1253 = vrot.lane.b32.xlu0 %v1189, 64
    %v1254 = vpop.permute.xlu0 %1253
    %v1256 = vsel %vm188, %v1252, 0
    %v1259 = vsel %vm207, %v1254, 0
    %1261 = vmatprep.subr.bf16.mxu0 0
    %1262 = vmatpush1.bf16.msra.mxu0 0
    %1263 = vmatprep.subr.bf16.mxu0 0
    %1264 = vmatpush1.bf16.msra.mxu0 0
    %1265 = vmatprep.subr.bf16.mxu0 0
    %1266 = vmatpush1.bf16.msra.mxu0 0
    %1267 = vmatprep.subr.bf16.mxu0 0
    %1268 = vmatpush1.bf16.msra.mxu0 0
    %1269 = vmatprep.subr.bf16.mxu0 0
    %1270 = vmatpush1.bf16.msra.mxu0 0
    %1271 = vmatprep.subr.bf16.mxu0 0
    %1272 = vmatpush1.bf16.msra.mxu0 0
    %1273 = vmatprep.subr.bf16.mxu0 0
    %1274 = vmatpush1.bf16.msra.mxu0 0
    %1275 = vmatprep.subr.bf16.mxu0 0
    %1276 = vmatpush1.bf16.msra.mxu0 %v1259
    %1277 = vmatprep.subr.bf16.mxu0 0
    %1278 = vmatpush2.bf16.msra.mxu0 0
    %1279 = vmatprep.subr.bf16.mxu0 0
    %1280 = vmatpush2.bf16.msra.mxu0 0
    %1281 = vmatprep.subr.bf16.mxu0 0
    %1282 = vmatpush2.bf16.msra.mxu0 0
    %1283 = vmatprep.subr.bf16.mxu0 0
    %1284 = vmatpush2.bf16.msra.mxu0 0
    %1285 = vmatprep.subr.bf16.mxu0 0
    %1286 = vmatpush2.bf16.msra.mxu0 0
    %1287 = vmatprep.subr.bf16.mxu0 0
    %1288 = vmatpush2.bf16.msra.mxu0 0
    %1289 = vmatprep.subr.bf16.mxu0 0
    %1290 = vmatpush2.bf16.msra.mxu0 0
    %1291 = vmatprep.subr.bf16.mxu0 0
    %1292 = vmatpush2.bf16.msra.mxu0 0
    %1293 = vmatprep.mubr.bf16.mxu0 0
    %1294 = vmatmul.mubr.bf16.gmra.mxu0 %v1256
    %v1295 = vpop.f32.mrf.mxu0
    %v1296 = vadd.f32 0.0, %v1295
    %v1297 = vpop.f32.mrf.mxu0
    %v1298 = vpop.f32.mrf.mxu0
    %v1299 = vpop.f32.mrf.mxu0
    %1300 = vdwg.mxu0
    %v1301 = vpack.c.bf16 %v1296, %v1296
    %1302 = vst.msk [vmem:[#allocation3] sm:$0xf] %vm252, %v1301
    %v1303 = vld [vmem:[%s1187] sm:$0xff]
    %v1304 = vpack.c.bf16 %v1303, %v1303
    %1306 = vrot.lane.b32.xlu0 %v1304, 124
    %v1307 = vpop.permute.xlu0 %1306
    %1308 = vrot.lane.b32.xlu0 %v1304, 92
    %v1309 = vpop.permute.xlu0 %1308
    %v1311 = vsel %vm140, %v1307, 0
    %v1314 = vsel %vm140, %v1309, 0
    %1316 = vmatprep.subr.bf16.mxu0 0
    %1317 = vmatpush1.bf16.xpose.msra.mxu0 0
    %1318 = vmatprep.subr.bf16.mxu0 0
    %1319 = vmatpush1.bf16.xpose.msra.mxu0 0
    %1320 = vmatprep.subr.bf16.mxu0 0
    %1321 = vmatpush1.bf16.xpose.msra.mxu0 0
    %1322 = vmatprep.subr.bf16.mxu0 0
    %1323 = vmatpush1.bf16.xpose.msra.mxu0 0
    %1324 = vmatprep.subr.bf16.mxu0 0
    %1325 = vmatpush1.bf16.xpose.msra.mxu0 0
    %1326 = vmatprep.subr.bf16.mxu0 0
    %1327 = vmatpush1.bf16.xpose.msra.mxu0 0
    %1328 = vmatprep.subr.bf16.mxu0 0
    %1329 = vmatpush1.bf16.xpose.msra.mxu0 0
    %1330 = vmatprep.subr.bf16.mxu0 0
    %1331 = vmatpush1.bf16.xpose.msra.mxu0 %v1314
    %1332 = vmatprep.subr.bf16.mxu0 0
    %1333 = vmatpush2.bf16.xpose.msra.mxu0 0
    %1334 = vmatprep.subr.bf16.mxu0 0
    %1335 = vmatpush2.bf16.xpose.msra.mxu0 0
    %1336 = vmatprep.subr.bf16.mxu0 0
    %1337 = vmatpush2.bf16.xpose.msra.mxu0 0
    %1338 = vmatprep.subr.bf16.mxu0 0
    %1339 = vmatpush2.bf16.xpose.msra.mxu0 0
    %1340 = vmatprep.subr.bf16.mxu0 0
    %1341 = vmatpush2.bf16.xpose.msra.mxu0 0
    %1342 = vmatprep.subr.bf16.mxu0 0
    %1343 = vmatpush2.bf16.xpose.msra.mxu0 0
    %1344 = vmatprep.subr.bf16.mxu0 0
    %1345 = vmatpush2.bf16.xpose.msra.mxu0 0
    %1346 = vmatprep.subr.bf16.mxu0 0
    %1347 = vmatpush2.bf16.xpose.msra.mxu0 0
    %1348 = vmatprep.mubr.bf16.mxu0 0
    %1349 = vmatmul.mubr.bf16.gmra.mxu0 %v1311
    %v1350 = vpop.f32.mrf.mxu0
    %v1351 = vadd.f32 0.0, %v1350
    %v1352 = vpop.f32.mrf.mxu0
    %v1353 = vpop.f32.mrf.mxu0
    %v1354 = vpop.f32.mrf.mxu0
    %1355 = vdwg.mxu0
    %v1356 = vmul.f32 %v1351, 0.5
    %v1357 = vsel %vm188, %v1356, -inf
    %1358 = vmax.xlane.f32.xlu0 %v1357
    %v1359 = vpop.xlane.xlu0 %1358
    %v1360 = vsub.f32 %v1356, %v1359
    %v1361 = vmul.f32 %v1360, 1.442695
    %v1362 = vpow.pop %v1361
    %v1363 = vsel %vm188, %v1362, 0.0
    %1364 = vadd.xlane.f32.xlu0 %v1363
    %v1365 = vpop.xlane.xlu0 %1364
    %v1366 = vrcp.pop %v1365
    %v1367 = vmul.f32 %v1362, %v1366
    %v1368 = vadd.f32 %v1251, %v1367
    %v1369 = vpack.c.bf16 %v1367, %v1367
    %1370 = vrot.lane.b32.xlu0 %v1304, 60
    %v1371 = vpop.permute.xlu0 %1370
    %v1373 = vsel %vm188, %v1369, 0
    %v1376 = vsel %vm207, %v1371, 0
    %1378 = vmatprep.subr.bf16.mxu0 0
    %1379 = vmatpush1.bf16.msra.mxu0 0
    %1380 = vmatprep.subr.bf16.mxu0 0
    %1381 = vmatpush1.bf16.msra.mxu0 0
    %1382 = vmatprep.subr.bf16.mxu0 0
    %1383 = vmatpush1.bf16.msra.mxu0 0
    %1384 = vmatprep.subr.bf16.mxu0 0
    %1385 = vmatpush1.bf16.msra.mxu0 0
    %1386 = vmatprep.subr.bf16.mxu0 0
    %1387 = vmatpush1.bf16.msra.mxu0 0
    %1388 = vmatprep.subr.bf16.mxu0 0
    %1389 = vmatpush1.bf16.msra.mxu0 0
    %1390 = vmatprep.subr.bf16.mxu0 0
    %1391 = vmatpush1.bf16.msra.mxu0 0
    %1392 = vmatprep.subr.bf16.mxu0 0
    %1393 = vmatpush1.bf16.msra.mxu0 %v1376
    %1394 = vmatprep.subr.bf16.mxu0 0
    %1395 = vmatpush2.bf16.msra.mxu0 0
    %1396 = vmatprep.subr.bf16.mxu0 0
    %1397 = vmatpush2.bf16.msra.mxu0 0
    %1398 = vmatprep.subr.bf16.mxu0 0
    %1399 = vmatpush2.bf16.msra.mxu0 0
    %1400 = vmatprep.subr.bf16.mxu0 0
    %1401 = vmatpush2.bf16.msra.mxu0 0
    %1402 = vmatprep.subr.bf16.mxu0 0
    %1403 = vmatpush2.bf16.msra.mxu0 0
    %1404 = vmatprep.subr.bf16.mxu0 0
    %1405 = vmatpush2.bf16.msra.mxu0 0
    %1406 = vmatprep.subr.bf16.mxu0 0
    %1407 = vmatpush2.bf16.msra.mxu0 0
    %1408 = vmatprep.subr.bf16.mxu0 0
    %1409 = vmatpush2.bf16.msra.mxu0 0
    %1410 = vmatprep.mubr.bf16.mxu0 0
    %1411 = vmatmul.mubr.bf16.gmra.mxu0 %v1373
    %v1412 = vpop.f32.mrf.mxu0
    %v1413 = vadd.f32 0.0, %v1412
    %v1414 = vpop.f32.mrf.mxu0
    %v1415 = vpop.f32.mrf.mxu0
    %v1416 = vpop.f32.mrf.mxu0
    %1417 = vdwg.mxu0
    %v1418 = vpack.c.bf16 %v1413, %v1413
    %v1420 = vunpack.c.l.b16 %v1418
    %v1421 = vpack.c.b16 %v1420, %v1420
    %1422 = vrot.lane.b32.xlu0 %v1421, 4
    %v1423 = vpop.permute.xlu0 %1422
    %1425 = vst.msk [vmem:[#allocation3] sm:$0xf] %vm376, %v1423
    %v1426 = vld [vmem:[%s1187] sm:$0xff]
    %v1427 = vpack.c.bf16 %v1426, %v1426
    %1429 = vrot.lane.b32.xlu0 %v1427, 120
    %v1430 = vpop.permute.xlu0 %1429
    %1431 = vrot.lane.b32.xlu0 %v1427, 88
    %v1432 = vpop.permute.xlu0 %1431
    %v1434 = vsel %vm140, %v1430, 0
    %v1437 = vsel %vm140, %v1432, 0
    %1439 = vmatprep.subr.bf16.mxu0 0
    %1440 = vmatpush1.bf16.xpose.msra.mxu0 0
    %1441 = vmatprep.subr.bf16.mxu0 0
    %1442 = vmatpush1.bf16.xpose.msra.mxu0 0
    %1443 = vmatprep.subr.bf16.mxu0 0
    %1444 = vmatpush1.bf16.xpose.msra.mxu0 0
    %1445 = vmatprep.subr.bf16.mxu0 0
    %1446 = vmatpush1.bf16.xpose.msra.mxu0 0
    %1447 = vmatprep.subr.bf16.mxu0 0
    %1448 = vmatpush1.bf16.xpose.msra.mxu0 0
    %1449 = vmatprep.subr.bf16.mxu0 0
    %1450 = vmatpush1.bf16.xpose.msra.mxu0 0
    %1451 = vmatprep.subr.bf16.mxu0 0
    %1452 = vmatpush1.bf16.xpose.msra.mxu0 0
    %1453 = vmatprep.subr.bf16.mxu0 0
    %1454 = vmatpush1.bf16.xpose.msra.mxu0 %v1437
    %1455 = vmatprep.subr.bf16.mxu0 0
    %1456 = vmatpush2.bf16.xpose.msra.mxu0 0
    %1457 = vmatprep.subr.bf16.mxu0 0
    %1458 = vmatpush2.bf16.xpose.msra.mxu0 0
    %1459 = vmatprep.subr.bf16.mxu0 0
    %1460 = vmatpush2.bf16.xpose.msra.mxu0 0
    %1461 = vmatprep.subr.bf16.mxu0 0
    %1462 = vmatpush2.bf16.xpose.msra.mxu0 0
    %1463 = vmatprep.subr.bf16.mxu0 0
    %1464 = vmatpush2.bf16.xpose.msra.mxu0 0
    %1465 = vmatprep.subr.bf16.mxu0 0
    %1466 = vmatpush2.bf16.xpose.msra.mxu0 0
    %1467 = vmatprep.subr.bf16.mxu0 0
    %1468 = vmatpush2.bf16.xpose.msra.mxu0 0
    %1469 = vmatprep.subr.bf16.mxu0 0
    %1470 = vmatpush2.bf16.xpose.msra.mxu0 0
    %1471 = vmatprep.mubr.bf16.mxu0 0
    %1472 = vmatmul.mubr.bf16.gmra.mxu0 %v1434
    %v1473 = vpop.f32.mrf.mxu0
    %v1474 = vadd.f32 0.0, %v1473
    %v1475 = vpop.f32.mrf.mxu0
    %v1476 = vpop.f32.mrf.mxu0
    %v1477 = vpop.f32.mrf.mxu0
    %1478 = vdwg.mxu0
    %v1479 = vmul.f32 %v1474, 0.5
    %v1480 = vsel %vm188, %v1479, -inf
    %1481 = vmax.xlane.f32.xlu0 %v1480
    %v1482 = vpop.xlane.xlu0 %1481
    %v1483 = vsub.f32 %v1479, %v1482
    %v1484 = vmul.f32 %v1483, 1.442695
    %v1485 = vpow.pop %v1484
    %v1486 = vsel %vm188, %v1485, 0.0
    %1487 = vadd.xlane.f32.xlu0 %v1486
    %v1488 = vpop.xlane.xlu0 %1487
    %v1489 = vrcp.pop %v1488
    %v1490 = vmul.f32 %v1485, %v1489
    %v1491 = vadd.f32 %v1368, %v1490
    %v1492 = vpack.c.bf16 %v1490, %v1490
    %1493 = vrot.lane.b32.xlu0 %v1427, 56
    %v1494 = vpop.permute.xlu0 %1493
    %v1496 = vsel %vm188, %v1492, 0
    %v1499 = vsel %vm207, %v1494, 0
    %1501 = vmatprep.subr.bf16.mxu0 0
    %1502 = vmatpush1.bf16.msra.mxu0 0
    %1503 = vmatprep.subr.bf16.mxu0 0
    %1504 = vmatpush1.bf16.msra.mxu0 0
    %1505 = vmatprep.subr.bf16.mxu0 0
    %1506 = vmatpush1.bf16.msra.mxu0 0
    %1507 = vmatprep.subr.bf16.mxu0 0
    %1508 = vmatpush1.bf16.msra.mxu0 0
    %1509 = vmatprep.subr.bf16.mxu0 0
    %1510 = vmatpush1.bf16.msra.mxu0 0
    %1511 = vmatprep.subr.bf16.mxu0 0
    %1512 = vmatpush1.bf16.msra.mxu0 0
    %1513 = vmatprep.subr.bf16.mxu0 0
    %1514 = vmatpush1.bf16.msra.mxu0 0
    %1515 = vmatprep.subr.bf16.mxu0 0
    %1516 = vmatpush1.bf16.msra.mxu0 %v1499
    %1517 = vmatprep.subr.bf16.mxu0 0
    %1518 = vmatpush2.bf16.msra.mxu0 0
    %1519 = vmatprep.subr.bf16.mxu0 0
    %1520 = vmatpush2.bf16.msra.mxu0 0
    %1521 = vmatprep.subr.bf16.mxu0 0
    %1522 = vmatpush2.bf16.msra.mxu0 0
    %1523 = vmatprep.subr.bf16.mxu0 0
    %1524 = vmatpush2.bf16.msra.mxu0 0
    %1525 = vmatprep.subr.bf16.mxu0 0
    %1526 = vmatpush2.bf16.msra.mxu0 0
    %1527 = vmatprep.subr.bf16.mxu0 0
    %1528 = vmatpush2.bf16.msra.mxu0 0
    %1529 = vmatprep.subr.bf16.mxu0 0
    %1530 = vmatpush2.bf16.msra.mxu0 0
    %1531 = vmatprep.subr.bf16.mxu0 0
    %1532 = vmatpush2.bf16.msra.mxu0 0
    %1533 = vmatprep.mubr.bf16.mxu0 0
    %1534 = vmatmul.mubr.bf16.gmra.mxu0 %v1496
    %v1535 = vpop.f32.mrf.mxu0
    %v1536 = vadd.f32 0.0, %v1535
    %v1537 = vpop.f32.mrf.mxu0
    %v1538 = vpop.f32.mrf.mxu0
    %v1539 = vpop.f32.mrf.mxu0
    %1540 = vdwg.mxu0
    %v1541 = vpack.c.bf16 %v1536, %v1536
    %v1543 = vunpack.c.l.b16 %v1541
    %v1544 = vpack.c.b16 %v1543, %v1543
    %1545 = vrot.lane.b32.xlu0 %v1544, 8
    %v1546 = vpop.permute.xlu0 %1545
    %1548 = vst.msk [vmem:[#allocation3] sm:$0xf] %vm500, %v1546
    %v1549 = vld [vmem:[%s1187] sm:$0xff]
    %v1550 = vpack.c.bf16 %v1549, %v1549
    %1552 = vrot.lane.b32.xlu0 %v1550, 116
    %v1553 = vpop.permute.xlu0 %1552
    %1554 = vrot.lane.b32.xlu0 %v1550, 84
    %v1555 = vpop.permute.xlu0 %1554
    %v1557 = vsel %vm140, %v1553, 0
    %v1560 = vsel %vm140, %v1555, 0
    %1562 = vmatprep.subr.bf16.mxu0 0
    %1563 = vmatpush1.bf16.xpose.msra.mxu0 0
    %1564 = vmatprep.subr.bf16.mxu0 0
    %1565 = vmatpush1.bf16.xpose.msra.mxu0 0
    %1566 = vmatprep.subr.bf16.mxu0 0
    %1567 = vmatpush1.bf16.xpose.msra.mxu0 0
    %1568 = vmatprep.subr.bf16.mxu0 0
    %1569 = vmatpush1.bf16.xpose.msra.mxu0 0
    %1570 = vmatprep.subr.bf16.mxu0 0
    %1571 = vmatpush1.bf16.xpose.msra.mxu0 0
    %1572 = vmatprep.subr.bf16.mxu0 0
    %1573 = vmatpush1.bf16.xpose.msra.mxu0 0
    %1574 = vmatprep.subr.bf16.mxu0 0
    %1575 = vmatpush1.bf16.xpose.msra.mxu0 0
    %1576 = vmatprep.subr.bf16.mxu0 0
    %1577 = vmatpush1.bf16.xpose.msra.mxu0 %v1560
    %1578 = vmatprep.subr.bf16.mxu0 0
    %1579 = vmatpush2.bf16.xpose.msra.mxu0 0
    %1580 = vmatprep.subr.bf16.mxu0 0
    %1581 = vmatpush2.bf16.xpose.msra.mxu0 0
    %1582 = vmatprep.subr.bf16.mxu0 0
    %1583 = vmatpush2.bf16.xpose.msra.mxu0 0
    %1584 = vmatprep.subr.bf16.mxu0 0
    %1585 = vmatpush2.bf16.xpose.msra.mxu0 0
    %1586 = vmatprep.subr.bf16.mxu0 0
    %1587 = vmatpush2.bf16.xpose.msra.mxu0 0
    %1588 = vmatprep.subr.bf16.mxu0 0
    %1589 = vmatpush2.bf16.xpose.msra.mxu0 0
    %1590 = vmatprep.subr.bf16.mxu0 0
    %1591 = vmatpush2.bf16.xpose.msra.mxu0 0
    %1592 = vmatprep.subr.bf16.mxu0 0
    %1593 = vmatpush2.bf16.xpose.msra.mxu0 0
    %1594 = vmatprep.mubr.bf16.mxu0 0
    %1595 = vmatmul.mubr.bf16.gmra.mxu0 %v1557
    %v1596 = vpop.f32.mrf.mxu0
    %v1597 = vadd.f32 0.0, %v1596
    %v1598 = vpop.f32.mrf.mxu0
    %v1599 = vpop.f32.mrf.mxu0
    %v1600 = vpop.f32.mrf.mxu0
    %1601 = vdwg.mxu0
    %v1602 = vmul.f32 %v1597, 0.5
    %v1603 = vsel %vm188, %v1602, -inf
    %1604 = vmax.xlane.f32.xlu0 %v1603
    %v1605 = vpop.xlane.xlu0 %1604
    %v1606 = vsub.f32 %v1602, %v1605
    %v1607 = vmul.f32 %v1606, 1.442695
    %v1608 = vpow.pop %v1607
    %v1609 = vsel %vm188, %v1608, 0.0
    %1610 = vadd.xlane.f32.xlu0 %v1609
    %v1611 = vpop.xlane.xlu0 %1610
    %v1612 = vrcp.pop %v1611
    %v1613 = vmul.f32 %v1608, %v1612
    %v1614 = vadd.f32 %v1491, %v1613
    %v1615 = vpack.c.bf16 %v1613, %v1613
    %1616 = vrot.lane.b32.xlu0 %v1550, 52
    %v1617 = vpop.permute.xlu0 %1616
    %v1619 = vsel %vm188, %v1615, 0
    %v1622 = vsel %vm207, %v1617, 0
    %1624 = vmatprep.subr.bf16.mxu0 0
    %1625 = vmatpush1.bf16.msra.mxu0 0
    %1626 = vmatprep.subr.bf16.mxu0 0
    %1627 = vmatpush1.bf16.msra.mxu0 0
    %1628 = vmatprep.subr.bf16.mxu0 0
    %1629 = vmatpush1.bf16.msra.mxu0 0
    %1630 = vmatprep.subr.bf16.mxu0 0
    %1631 = vmatpush1.bf16.msra.mxu0 0
    %1632 = vmatprep.subr.bf16.mxu0 0
    %1633 = vmatpush1.bf16.msra.mxu0 0
    %1634 = vmatprep.subr.bf16.mxu0 0
    %1635 = vmatpush1.bf16.msra.mxu0 0
    %1636 = vmatprep.subr.bf16.mxu0 0
    %1637 = vmatpush1.bf16.msra.mxu0 0
    %1638 = vmatprep.subr.bf16.mxu0 0
    %1639 = vmatpush1.bf16.msra.mxu0 %v1622
    %1640 = vmatprep.subr.bf16.mxu0 0
    %1641 = vmatpush2.bf16.msra.mxu0 0
    %1642 = vmatprep.subr.bf16.mxu0 0
    %1643 = vmatpush2.bf16.msra.mxu0 0
    %1644 = vmatprep.subr.bf16.mxu0 0
    %1645 = vmatpush2.bf16.msra.mxu0 0
    %1646 = vmatprep.subr.bf16.mxu0 0
    %1647 = vmatpush2.bf16.msra.mxu0 0
    %1648 = vmatprep.subr.bf16.mxu0 0
    %1649 = vmatpush2.bf16.msra.mxu0 0
    %1650 = vmatprep.subr.bf16.mxu0 0
    %1651 = vmatpush2.bf16.msra.mxu0 0
    %1652 = vmatprep.subr.bf16.mxu0 0
    %1653 = vmatpush2.bf16.msra.mxu0 0
    %1654 = vmatprep.subr.bf16.mxu0 0
    %1655 = vmatpush2.bf16.msra.mxu0 0
    %1656 = vmatprep.mubr.bf16.mxu0 0
    %1657 = vmatmul.mubr.bf16.gmra.mxu0 %v1619
    %v1658 = vpop.f32.mrf.mxu0
    %v1659 = vadd.f32 0.0, %v1658
    %v1660 = vpop.f32.mrf.mxu0
    %v1661 = vpop.f32.mrf.mxu0
    %v1662 = vpop.f32.mrf.mxu0
    %1663 = vdwg.mxu0
    %v1664 = vpack.c.bf16 %v1659, %v1659
    %v1666 = vunpack.c.l.b16 %v1664
    %v1667 = vpack.c.b16 %v1666, %v1666
    %1668 = vrot.lane.b32.xlu0 %v1667, 12
    %v1669 = vpop.permute.xlu0 %1668
    %1671 = vst.msk [vmem:[#allocation3] sm:$0xf] %vm624, %v1669
    %v1672 = vld [vmem:[%s1187] sm:$0xff]
    %v1673 = vpack.c.bf16 %v1672, %v1672
    %1675 = vrot.lane.b32.xlu0 %v1673, 112
    %v1676 = vpop.permute.xlu0 %1675
    %1677 = vrot.lane.b32.xlu0 %v1673, 80
    %v1678 = vpop.permute.xlu0 %1677
    %v1680 = vsel %vm140, %v1676, 0
    %v1683 = vsel %vm140, %v1678, 0
    %1685 = vmatprep.subr.bf16.mxu0 0
    %1686 = vmatpush1.bf16.xpose.msra.mxu0 0
    %1687 = vmatprep.subr.bf16.mxu0 0
    %1688 = vmatpush1.bf16.xpose.msra.mxu0 0
    %1689 = vmatprep.subr.bf16.mxu0 0
    %1690 = vmatpush1.bf16.xpose.msra.mxu0 0
    %1691 = vmatprep.subr.bf16.mxu0 0
    %1692 = vmatpush1.bf16.xpose.msra.mxu0 0
    %1693 = vmatprep.subr.bf16.mxu0 0
    %1694 = vmatpush1.bf16.xpose.msra.mxu0 0
    %1695 = vmatprep.subr.bf16.mxu0 0
    %1696 = vmatpush1.bf16.xpose.msra.mxu0 0
    %1697 = vmatprep.subr.bf16.mxu0 0
    %1698 = vmatpush1.bf16.xpose.msra.mxu0 0
    %1699 = vmatprep.subr.bf16.mxu0 0
    %1700 = vmatpush1.bf16.xpose.msra.mxu0 %v1683
    %1701 = vmatprep.subr.bf16.mxu0 0
    %1702 = vmatpush2.bf16.xpose.msra.mxu0 0
    %1703 = vmatprep.subr.bf16.mxu0 0
    %1704 = vmatpush2.bf16.xpose.msra.mxu0 0
    %1705 = vmatprep.subr.bf16.mxu0 0
    %1706 = vmatpush2.bf16.xpose.msra.mxu0 0
    %1707 = vmatprep.subr.bf16.mxu0 0
    %1708 = vmatpush2.bf16.xpose.msra.mxu0 0
    %1709 = vmatprep.subr.bf16.mxu0 0
    %1710 = vmatpush2.bf16.xpose.msra.mxu0 0
    %1711 = vmatprep.subr.bf16.mxu0 0
    %1712 = vmatpush2.bf16.xpose.msra.mxu0 0
    %1713 = vmatprep.subr.bf16.mxu0 0
    %1714 = vmatpush2.bf16.xpose.msra.mxu0 0
    %1715 = vmatprep.subr.bf16.mxu0 0
    %1716 = vmatpush2.bf16.xpose.msra.mxu0 0
    %1717 = vmatprep.mubr.bf16.mxu0 0
    %1718 = vmatmul.mubr.bf16.gmra.mxu0 %v1680
    %v1719 = vpop.f32.mrf.mxu0
    %v1720 = vadd.f32 0.0, %v1719
    %v1721 = vpop.f32.mrf.mxu0
    %v1722 = vpop.f32.mrf.mxu0
    %v1723 = vpop.f32.mrf.mxu0
    %1724 = vdwg.mxu0
    %v1725 = vmul.f32 %v1720, 0.5
    %v1726 = vsel %vm188, %v1725, -inf
    %1727 = vmax.xlane.f32.xlu0 %v1726
    %v1728 = vpop.xlane.xlu0 %1727
    %v1729 = vsub.f32 %v1725, %v1728
    %v1730 = vmul.f32 %v1729, 1.442695
    %v1731 = vpow.pop %v1730
    %v1732 = vsel %vm188, %v1731, 0.0
    %1733 = vadd.xlane.f32.xlu0 %v1732
    %v1734 = vpop.xlane.xlu0 %1733
    %v1735 = vrcp.pop %v1734
    %v1736 = vmul.f32 %v1731, %v1735
    %v1737 = vadd.f32 %v1614, %v1736
    %v1738 = vpack.c.bf16 %v1736, %v1736
    %1739 = vrot.lane.b32.xlu0 %v1673, 48
    %v1740 = vpop.permute.xlu0 %1739
    %v1742 = vsel %vm188, %v1738, 0
    %v1745 = vsel %vm207, %v1740, 0
    %1747 = vmatprep.subr.bf16.mxu0 0
    %1748 = vmatpush1.bf16.msra.mxu0 0
    %1749 = vmatprep.subr.bf16.mxu0 0
    %1750 = vmatpush1.bf16.msra.mxu0 0
    %1751 = vmatprep.subr.bf16.mxu0 0
    %1752 = vmatpush1.bf16.msra.mxu0 0
    %1753 = vmatprep.subr.bf16.mxu0 0
    %1754 = vmatpush1.bf16.msra.mxu0 0
    %1755 = vmatprep.subr.bf16.mxu0 0
    %1756 = vmatpush1.bf16.msra.mxu0 0
    %1757 = vmatprep.subr.bf16.mxu0 0
    %1758 = vmatpush1.bf16.msra.mxu0 0
    %1759 = vmatprep.subr.bf16.mxu0 0
    %1760 = vmatpush1.bf16.msra.mxu0 0
    %1761 = vmatprep.subr.bf16.mxu0 0
    %1762 = vmatpush1.bf16.msra.mxu0 %v1745
    %1763 = vmatprep.subr.bf16.mxu0 0
    %1764 = vmatpush2.bf16.msra.mxu0 0
    %1765 = vmatprep.subr.bf16.mxu0 0
    %1766 = vmatpush2.bf16.msra.mxu0 0
    %1767 = vmatprep.subr.bf16.mxu0 0
    %1768 = vmatpush2.bf16.msra.mxu0 0
    %1769 = vmatprep.subr.bf16.mxu0 0
    %1770 = vmatpush2.bf16.msra.mxu0 0
    %1771 = vmatprep.subr.bf16.mxu0 0
    %1772 = vmatpush2.bf16.msra.mxu0 0
    %1773 = vmatprep.subr.bf16.mxu0 0
    %1774 = vmatpush2.bf16.msra.mxu0 0
    %1775 = vmatprep.subr.bf16.mxu0 0
    %1776 = vmatpush2.bf16.msra.mxu0 0
    %1777 = vmatprep.subr.bf16.mxu0 0
    %1778 = vmatpush2.bf16.msra.mxu0 0
    %1779 = vmatprep.mubr.bf16.mxu0 0
    %1780 = vmatmul.mubr.bf16.gmra.mxu0 %v1742
    %v1781 = vpop.f32.mrf.mxu0
    %v1782 = vadd.f32 0.0, %v1781
    %v1783 = vpop.f32.mrf.mxu0
    %v1784 = vpop.f32.mrf.mxu0
    %v1785 = vpop.f32.mrf.mxu0
    %1786 = vdwg.mxu0
    %v1787 = vpack.c.bf16 %v1782, %v1782
    %v1789 = vunpack.c.l.b16 %v1787
    %v1790 = vpack.c.b16 %v1789, %v1789
    %1791 = vrot.lane.b32.xlu0 %v1790, 16
    %v1792 = vpop.permute.xlu0 %1791
    %1794 = vst.msk [vmem:[#allocation3] sm:$0xf] %vm748, %v1792
    %v1795 = vld [vmem:[%s1187] sm:$0xff]
    %v1796 = vpack.c.bf16 %v1795, %v1795
    %1798 = vrot.lane.b32.xlu0 %v1796, 108
    %v1799 = vpop.permute.xlu0 %1798
    %1800 = vrot.lane.b32.xlu0 %v1796, 76
    %v1801 = vpop.permute.xlu0 %1800
    %v1803 = vsel %vm140, %v1799, 0
    %v1806 = vsel %vm140, %v1801, 0
    %1808 = vmatprep.subr.bf16.mxu0 0
    %1809 = vmatpush1.bf16.xpose.msra.mxu0 0
    %1810 = vmatprep.subr.bf16.mxu0 0
    %1811 = vmatpush1.bf16.xpose.msra.mxu0 0
    %1812 = vmatprep.subr.bf16.mxu0 0
    %1813 = vmatpush1.bf16.xpose.msra.mxu0 0
    %1814 = vmatprep.subr.bf16.mxu0 0
    %1815 = vmatpush1.bf16.xpose.msra.mxu0 0
    %1816 = vmatprep.subr.bf16.mxu0 0
    %1817 = vmatpush1.bf16.xpose.msra.mxu0 0
    %1818 = vmatprep.subr.bf16.mxu0 0
    %1819 = vmatpush1.bf16.xpose.msra.mxu0 0
    %1820 = vmatprep.subr.bf16.mxu0 0
    %1821 = vmatpush1.bf16.xpose.msra.mxu0 0
    %1822 = vmatprep.subr.bf16.mxu0 0
    %1823 = vmatpush1.bf16.xpose.msra.mxu0 %v1806
    %1824 = vmatprep.subr.bf16.mxu0 0
    %1825 = vmatpush2.bf16.xpose.msra.mxu0 0
    %1826 = vmatprep.subr.bf16.mxu0 0
    %1827 = vmatpush2.bf16.xpose.msra.mxu0 0
    %1828 = vmatprep.subr.bf16.mxu0 0
    %1829 = vmatpush2.bf16.xpose.msra.mxu0 0
    %1830 = vmatprep.subr.bf16.mxu0 0
    %1831 = vmatpush2.bf16.xpose.msra.mxu0 0
    %1832 = vmatprep.subr.bf16.mxu0 0
    %1833 = vmatpush2.bf16.xpose.msra.mxu0 0
    %1834 = vmatprep.subr.bf16.mxu0 0
    %1835 = vmatpush2.bf16.xpose.msra.mxu0 0
    %1836 = vmatprep.subr.bf16.mxu0 0
    %1837 = vmatpush2.bf16.xpose.msra.mxu0 0
    %1838 = vmatprep.subr.bf16.mxu0 0
    %1839 = vmatpush2.bf16.xpose.msra.mxu0 0
    %1840 = vmatprep.mubr.bf16.mxu0 0
    %1841 = vmatmul.mubr.bf16.gmra.mxu0 %v1803
    %v1842 = vpop.f32.mrf.mxu0
    %v1843 = vadd.f32 0.0, %v1842
    %v1844 = vpop.f32.mrf.mxu0
    %v1845 = vpop.f32.mrf.mxu0
    %v1846 = vpop.f32.mrf.mxu0
    %1847 = vdwg.mxu0
    %v1848 = vmul.f32 %v1843, 0.5
    %v1849 = vsel %vm188, %v1848, -inf
    %1850 = vmax.xlane.f32.xlu0 %v1849
    %v1851 = vpop.xlane.xlu0 %1850
    %v1852 = vsub.f32 %v1848, %v1851
    %v1853 = vmul.f32 %v1852, 1.442695
    %v1854 = vpow.pop %v1853
    %v1855 = vsel %vm188, %v1854, 0.0
    %1856 = vadd.xlane.f32.xlu0 %v1855
    %v1857 = vpop.xlane.xlu0 %1856
    %v1858 = vrcp.pop %v1857
    %v1859 = vmul.f32 %v1854, %v1858
    %v1860 = vadd.f32 %v1737, %v1859
    %v1861 = vpack.c.bf16 %v1859, %v1859
    %1862 = vrot.lane.b32.xlu0 %v1796, 44
    %v1863 = vpop.permute.xlu0 %1862
    %v1865 = vsel %vm188, %v1861, 0
    %v1868 = vsel %vm207, %v1863, 0
    %1870 = vmatprep.subr.bf16.mxu0 0
    %1871 = vmatpush1.bf16.msra.mxu0 0
    %1872 = vmatprep.subr.bf16.mxu0 0
    %1873 = vmatpush1.bf16.msra.mxu0 0
    %1874 = vmatprep.subr.bf16.mxu0 0
    %1875 = vmatpush1.bf16.msra.mxu0 0
    %1876 = vmatprep.subr.bf16.mxu0 0
    %1877 = vmatpush1.bf16.msra.mxu0 0
    %1878 = vmatprep.subr.bf16.mxu0 0
    %1879 = vmatpush1.bf16.msra.mxu0 0
    %1880 = vmatprep.subr.bf16.mxu0 0
    %1881 = vmatpush1.bf16.msra.mxu0 0
    %1882 = vmatprep.subr.bf16.mxu0 0
    %1883 = vmatpush1.bf16.msra.mxu0 0
    %1884 = vmatprep.subr.bf16.mxu0 0
    %1885 = vmatpush1.bf16.msra.mxu0 %v1868
    %1886 = vmatprep.subr.bf16.mxu0 0
    %1887 = vmatpush2.bf16.msra.mxu0 0
    %1888 = vmatprep.subr.bf16.mxu0 0
    %1889 = vmatpush2.bf16.msra.mxu0 0
    %1890 = vmatprep.subr.bf16.mxu0 0
    %1891 = vmatpush2.bf16.msra.mxu0 0
    %1892 = vmatprep.subr.bf16.mxu0 0
    %1893 = vmatpush2.bf16.msra.mxu0 0
    %1894 = vmatprep.subr.bf16.mxu0 0
    %1895 = vmatpush2.bf16.msra.mxu0 0
    %1896 = vmatprep.subr.bf16.mxu0 0
    %1897 = vmatpush2.bf16.msra.mxu0 0
    %1898 = vmatprep.subr.bf16.mxu0 0
    %1899 = vmatpush2.bf16.msra.mxu0 0
    %1900 = vmatprep.subr.bf16.mxu0 0
    %1901 = vmatpush2.bf16.msra.mxu0 0
    %1902 = vmatprep.mubr.bf16.mxu0 0
    %1903 = vmatmul.mubr.bf16.gmra.mxu0 %v1865
    %v1904 = vpop.f32.mrf.mxu0
    %v1905 = vadd.f32 0.0, %v1904
    %v1906 = vpop.f32.mrf.mxu0
    %v1907 = vpop.f32.mrf.mxu0
    %v1908 = vpop.f32.mrf.mxu0
    %1909 = vdwg.mxu0
    %v1910 = vpack.c.bf16 %v1905, %v1905
    %v1912 = vunpack.c.l.b16 %v1910
    %v1913 = vpack.c.b16 %v1912, %v1912
    %1914 = vrot.lane.b32.xlu0 %v1913, 20
    %v1915 = vpop.permute.xlu0 %1914
    %1917 = vst.msk [vmem:[#allocation3] sm:$0xf] %vm872, %v1915
    %v1918 = vld [vmem:[%s1187] sm:$0xff]
    %v1919 = vpack.c.bf16 %v1918, %v1918
    %1921 = vrot.lane.b32.xlu0 %v1919, 104
    %v1922 = vpop.permute.xlu0 %1921
    %1923 = vrot.lane.b32.xlu0 %v1919, 72
    %v1924 = vpop.permute.xlu0 %1923
    %v1926 = vsel %vm140, %v1922, 0
    %v1929 = vsel %vm140, %v1924, 0
    %1931 = vmatprep.subr.bf16.mxu0 0
    %1932 = vmatpush1.bf16.xpose.msra.mxu0 0
    %1933 = vmatprep.subr.bf16.mxu0 0
    %1934 = vmatpush1.bf16.xpose.msra.mxu0 0
    %1935 = vmatprep.subr.bf16.mxu0 0
    %1936 = vmatpush1.bf16.xpose.msra.mxu0 0
    %1937 = vmatprep.subr.bf16.mxu0 0
    %1938 = vmatpush1.bf16.xpose.msra.mxu0 0
    %1939 = vmatprep.subr.bf16.mxu0 0
    %1940 = vmatpush1.bf16.xpose.msra.mxu0 0
    %1941 = vmatprep.subr.bf16.mxu0 0
    %1942 = vmatpush1.bf16.xpose.msra.mxu0 0
    %1943 = vmatprep.subr.bf16.mxu0 0
    %1944 = vmatpush1.bf16.xpose.msra.mxu0 0
    %1945 = vmatprep.subr.bf16.mxu0 0
    %1946 = vmatpush1.bf16.xpose.msra.mxu0 %v1929
    %1947 = vmatprep.subr.bf16.mxu0 0
    %1948 = vmatpush2.bf16.xpose.msra.mxu0 0
    %1949 = vmatprep.subr.bf16.mxu0 0
    %1950 = vmatpush2.bf16.xpose.msra.mxu0 0
    %1951 = vmatprep.subr.bf16.mxu0 0
    %1952 = vmatpush2.bf16.xpose.msra.mxu0 0
    %1953 = vmatprep.subr.bf16.mxu0 0
    %1954 = vmatpush2.bf16.xpose.msra.mxu0 0
    %1955 = vmatprep.subr.bf16.mxu0 0
    %1956 = vmatpush2.bf16.xpose.msra.mxu0 0
    %1957 = vmatprep.subr.bf16.mxu0 0
    %1958 = vmatpush2.bf16.xpose.msra.mxu0 0
    %1959 = vmatprep.subr.bf16.mxu0 0
    %1960 = vmatpush2.bf16.xpose.msra.mxu0 0
    %1961 = vmatprep.subr.bf16.mxu0 0
    %1962 = vmatpush2.bf16.xpose.msra.mxu0 0
    %1963 = vmatprep.mubr.bf16.mxu0 0
    %1964 = vmatmul.mubr.bf16.gmra.mxu0 %v1926
    %v1965 = vpop.f32.mrf.mxu0
    %v1966 = vadd.f32 0.0, %v1965
    %v1967 = vpop.f32.mrf.mxu0
    %v1968 = vpop.f32.mrf.mxu0
    %v1969 = vpop.f32.mrf.mxu0
    %1970 = vdwg.mxu0
    %v1971 = vmul.f32 %v1966, 0.5
    %v1972 = vsel %vm188, %v1971, -inf
    %1973 = vmax.xlane.f32.xlu0 %v1972
    %v1974 = vpop.xlane.xlu0 %1973
    %v1975 = vsub.f32 %v1971, %v1974
    %v1976 = vmul.f32 %v1975, 1.442695
    %v1977 = vpow.pop %v1976
    %v1978 = vsel %vm188, %v1977, 0.0
    %1979 = vadd.xlane.f32.xlu0 %v1978
    %v1980 = vpop.xlane.xlu0 %1979
    %v1981 = vrcp.pop %v1980
    %v1982 = vmul.f32 %v1977, %v1981
    %v1983 = vadd.f32 %v1860, %v1982
    %v1984 = vpack.c.bf16 %v1982, %v1982
    %1985 = vrot.lane.b32.xlu0 %v1919, 40
    %v1986 = vpop.permute.xlu0 %1985
    %v1988 = vsel %vm188, %v1984, 0
    %v1991 = vsel %vm207, %v1986, 0
    %1993 = vmatprep.subr.bf16.mxu0 0
    %1994 = vmatpush1.bf16.msra.mxu0 0
    %1995 = vmatprep.subr.bf16.mxu0 0
    %1996 = vmatpush1.bf16.msra.mxu0 0
    %1997 = vmatprep.subr.bf16.mxu0 0
    %1998 = vmatpush1.bf16.msra.mxu0 0
    %1999 = vmatprep.subr.bf16.mxu0 0
    %2000 = vmatpush1.bf16.msra.mxu0 0
    %2001 = vmatprep.subr.bf16.mxu0 0
    %2002 = vmatpush1.bf16.msra.mxu0 0
    %2003 = vmatprep.subr.bf16.mxu0 0
    %2004 = vmatpush1.bf16.msra.mxu0 0
    %2005 = vmatprep.subr.bf16.mxu0 0
    %2006 = vmatpush1.bf16.msra.mxu0 0
    %2007 = vmatprep.subr.bf16.mxu0 0
    %2008 = vmatpush1.bf16.msra.mxu0 %v1991
    %2009 = vmatprep.subr.bf16.mxu0 0
    %2010 = vmatpush2.bf16.msra.mxu0 0
    %2011 = vmatprep.subr.bf16.mxu0 0
    %2012 = vmatpush2.bf16.msra.mxu0 0
    %2013 = vmatprep.subr.bf16.mxu0 0
    %2014 = vmatpush2.bf16.msra.mxu0 0
    %2015 = vmatprep.subr.bf16.mxu0 0
    %2016 = vmatpush2.bf16.msra.mxu0 0
    %2017 = vmatprep.subr.bf16.mxu0 0
    %2018 = vmatpush2.bf16.msra.mxu0 0
    %2019 = vmatprep.subr.bf16.mxu0 0
    %2020 = vmatpush2.bf16.msra.mxu0 0
    %2021 = vmatprep.subr.bf16.mxu0 0
    %2022 = vmatpush2.bf16.msra.mxu0 0
    %2023 = vmatprep.subr.bf16.mxu0 0
    %2024 = vmatpush2.bf16.msra.mxu0 0
    %2025 = vmatprep.mubr.bf16.mxu0 0
    %2026 = vmatmul.mubr.bf16.gmra.mxu0 %v1988
    %v2027 = vpop.f32.mrf.mxu0
    %v2028 = vadd.f32 0.0, %v2027
    %v2029 = vpop.f32.mrf.mxu0
    %v2030 = vpop.f32.mrf.mxu0
    %v2031 = vpop.f32.mrf.mxu0
    %2032 = vdwg.mxu0
    %v2033 = vpack.c.bf16 %v2028, %v2028
    %v2035 = vunpack.c.l.b16 %v2033
    %v2036 = vpack.c.b16 %v2035, %v2035
    %2037 = vrot.lane.b32.xlu0 %v2036, 24
    %v2038 = vpop.permute.xlu0 %2037
    %2040 = vst.msk [vmem:[#allocation3] sm:$0xf] %vm996, %v2038
    %v2041 = vld [vmem:[%s1187] sm:$0xff]
    %v2042 = vpack.c.bf16 %v2041, %v2041
    %2044 = vrot.lane.b32.xlu0 %v2042, 100
    %v2045 = vpop.permute.xlu0 %2044
    %2046 = vrot.lane.b32.xlu0 %v2042, 68
    %v2047 = vpop.permute.xlu0 %2046
    %v2049 = vsel %vm140, %v2045, 0
    %v2052 = vsel %vm140, %v2047, 0
    %2054 = vmatprep.subr.bf16.mxu0 0
    %2055 = vmatpush1.bf16.xpose.msra.mxu0 0
    %2056 = vmatprep.subr.bf16.mxu0 0
    %2057 = vmatpush1.bf16.xpose.msra.mxu0 0
    %2058 = vmatprep.subr.bf16.mxu0 0
    %2059 = vmatpush1.bf16.xpose.msra.mxu0 0
    %2060 = vmatprep.subr.bf16.mxu0 0
    %2061 = vmatpush1.bf16.xpose.msra.mxu0 0
    %2062 = vmatprep.subr.bf16.mxu0 0
    %2063 = vmatpush1.bf16.xpose.msra.mxu0 0
    %2064 = vmatprep.subr.bf16.mxu0 0
    %2065 = vmatpush1.bf16.xpose.msra.mxu0 0
    %2066 = vmatprep.subr.bf16.mxu0 0
    %2067 = vmatpush1.bf16.xpose.msra.mxu0 0
    %2068 = vmatprep.subr.bf16.mxu0 0
    %2069 = vmatpush1.bf16.xpose.msra.mxu0 %v2052
    %2070 = vmatprep.subr.bf16.mxu0 0
    %2071 = vmatpush2.bf16.xpose.msra.mxu0 0
    %2072 = vmatprep.subr.bf16.mxu0 0
    %2073 = vmatpush2.bf16.xpose.msra.mxu0 0
    %2074 = vmatprep.subr.bf16.mxu0 0
    %2075 = vmatpush2.bf16.xpose.msra.mxu0 0
    %2076 = vmatprep.subr.bf16.mxu0 0
    %2077 = vmatpush2.bf16.xpose.msra.mxu0 0
    %2078 = vmatprep.subr.bf16.mxu0 0
    %2079 = vmatpush2.bf16.xpose.msra.mxu0 0
    %2080 = vmatprep.subr.bf16.mxu0 0
    %2081 = vmatpush2.bf16.xpose.msra.mxu0 0
    %2082 = vmatprep.subr.bf16.mxu0 0
    %2083 = vmatpush2.bf16.xpose.msra.mxu0 0
    %2084 = vmatprep.subr.bf16.mxu0 0
    %2085 = vmatpush2.bf16.xpose.msra.mxu0 0
    %2086 = vmatprep.mubr.bf16.mxu0 0
    %2087 = vmatmul.mubr.bf16.gmra.mxu0 %v2049
    %v2088 = vpop.f32.mrf.mxu0
    %v2089 = vadd.f32 0.0, %v2088
    %v2090 = vpop.f32.mrf.mxu0
    %v2091 = vpop.f32.mrf.mxu0
    %v2092 = vpop.f32.mrf.mxu0
    %2093 = vdwg.mxu0
    %v2094 = vmul.f32 %v2089, 0.5
    %v2095 = vsel %vm188, %v2094, -inf
    %2096 = vmax.xlane.f32.xlu0 %v2095
    %v2097 = vpop.xlane.xlu0 %2096
    %v2098 = vsub.f32 %v2094, %v2097
    %v2099 = vmul.f32 %v2098, 1.442695
    %v2100 = vpow.pop %v2099
    %v2101 = vsel %vm188, %v2100, 0.0
    %2102 = vadd.xlane.f32.xlu0 %v2101
    %v2103 = vpop.xlane.xlu0 %2102
    %v2104 = vrcp.pop %v2103
    %v2105 = vmul.f32 %v2100, %v2104
    %v2106 = vadd.f32 %v1983, %v2105
    %v2107 = vpack.c.bf16 %v2105, %v2105
    %2108 = vrot.lane.b32.xlu0 %v2042, 36
    %v2109 = vpop.permute.xlu0 %2108
    %v2111 = vsel %vm188, %v2107, 0
    %v2114 = vsel %vm207, %v2109, 0
    %2116 = vmatprep.subr.bf16.mxu0 0
    %2117 = vmatpush1.bf16.msra.mxu0 0
    %2118 = vmatprep.subr.bf16.mxu0 0
    %2119 = vmatpush1.bf16.msra.mxu0 0
    %2120 = vmatprep.subr.bf16.mxu0 0
    %2121 = vmatpush1.bf16.msra.mxu0 0
    %2122 = vmatprep.subr.bf16.mxu0 0
    %2123 = vmatpush1.bf16.msra.mxu0 0
    %2124 = vmatprep.subr.bf16.mxu0 0
    %2125 = vmatpush1.bf16.msra.mxu0 0
    %2126 = vmatprep.subr.bf16.mxu0 0
    %2127 = vmatpush1.bf16.msra.mxu0 0
    %2128 = vmatprep.subr.bf16.mxu0 0
    %2129 = vmatpush1.bf16.msra.mxu0 0
    %2130 = vmatprep.subr.bf16.mxu0 0
    %2131 = vmatpush1.bf16.msra.mxu0 %v2114
    %2132 = vmatprep.subr.bf16.mxu0 0
    %2133 = vmatpush2.bf16.msra.mxu0 0
    %2134 = vmatprep.subr.bf16.mxu0 0
    %2135 = vmatpush2.bf16.msra.mxu0 0
    %2136 = vmatprep.subr.bf16.mxu0 0
    %2137 = vmatpush2.bf16.msra.mxu0 0
    %2138 = vmatprep.subr.bf16.mxu0 0
    %2139 = vmatpush2.bf16.msra.mxu0 0
    %2140 = vmatprep.subr.bf16.mxu0 0
    %2141 = vmatpush2.bf16.msra.mxu0 0
    %2142 = vmatprep.subr.bf16.mxu0 0
    %2143 = vmatpush2.bf16.msra.mxu0 0
    %2144 = vmatprep.subr.bf16.mxu0 0
    %2145 = vmatpush2.bf16.msra.mxu0 0
    %2146 = vmatprep.subr.bf16.mxu0 0
    %2147 = vmatpush2.bf16.msra.mxu0 0
    %2148 = vmatprep.mubr.bf16.mxu0 0
    %2149 = vmatmul.mubr.bf16.gmra.mxu0 %v2111
    %v2150 = vpop.f32.mrf.mxu0
    %v2151 = vadd.f32 0.0, %v2150
    %v2152 = vpop.f32.mrf.mxu0
    %v2153 = vpop.f32.mrf.mxu0
    %v2154 = vpop.f32.mrf.mxu0
    %2155 = vdwg.mxu0
    %v2156 = vpack.c.bf16 %v2151, %v2151
    %v2158 = vunpack.c.l.b16 %v2156
    %v2159 = vpack.c.b16 %v2158, %v2158
    %2160 = vrot.lane.b32.xlu0 %v2159, 28
    %v2161 = vpop.permute.xlu0 %2160
    %2163 = vst.msk [vmem:[#allocation3] sm:$0xf] %vm1120, %v2161
    %v2164 = vmul.f32 %v2106, 0.125
    %s2165 = scalar_lea.vmem [#allocation11], 8
    %2166 = vst.msk [vmem:[%s2165] sm:$0xff] %vm188, %v2164
    %v2167 = vld [vmem:[#allocation3] sm:$0xf]
    %v2169 = vsel %vm82, %v2167, 0
    %2171 = vmatprep.subr.bf16.mxu0 0
    %2172 = vmatpush1.bf16.msra.mxu0 0
    %2173 = vmatprep.subr.bf16.mxu0 0
    %2174 = vmatpush1.bf16.msra.mxu0 0
    %2175 = vmatprep.subr.bf16.mxu0 0
    %2176 = vmatpush1.bf16.msra.mxu0 0
    %2177 = vmatprep.subr.bf16.mxu0 0
    %2178 = vmatpush1.bf16.msra.mxu0 0
    %2179 = vmatprep.subr.bf16.mxu0 0
    %2180 = vmatpush1.bf16.msra.mxu0 0
    %2181 = vmatprep.subr.bf16.mxu0 0
    %2182 = vmatpush1.bf16.msra.mxu0 0
    %2183 = vmatprep.subr.bf16.mxu0 0
    %2184 = vmatpush1.bf16.msra.mxu0 %v1140
    %2185 = vmatprep.subr.bf16.mxu0 0
    %2186 = vmatpush1.bf16.msra.mxu0 %v1139
    %2187 = vmatprep.subr.bf16.mxu0 0
    %2188 = vmatpush2.bf16.msra.mxu0 0
    %2189 = vmatprep.subr.bf16.mxu0 0
    %2190 = vmatpush2.bf16.msra.mxu0 0
    %2191 = vmatprep.subr.bf16.mxu0 0
    %2192 = vmatpush2.bf16.msra.mxu0 0
    %2193 = vmatprep.subr.bf16.mxu0 0
    %2194 = vmatpush2.bf16.msra.mxu0 0
    %2195 = vmatprep.subr.bf16.mxu0 0
    %2196 = vmatpush2.bf16.msra.mxu0 0
    %2197 = vmatprep.subr.bf16.mxu0 0
    %2198 = vmatpush2.bf16.msra.mxu0 0
    %2199 = vmatprep.subr.bf16.mxu0 0
    %2200 = vmatpush2.bf16.msra.mxu0 0
    %2201 = vmatprep.subr.bf16.mxu0 0
    %2202 = vmatpush2.bf16.msra.mxu0 0
    %2203 = vmatprep.mubr.bf16.mxu0 0
    %2204 = vmatmul.mubr.bf16.gmra.mxu0 %v2169
    %v2205 = vpop.f32.mrf.mxu0
    %v2206 = vadd.f32 %v1129, %v2205
    %v2207 = vpop.f32.mrf.mxu0
    %v2208 = vpop.f32.mrf.mxu0
    %v2209 = vpop.f32.mrf.mxu0
    %2210 = vdwg.mxu0
    %s2211 = scalar_lea.vmem [#allocation10], 8
    %2212 = vst.msk [vmem:[%s2211] sm:$0xff] %vm82, %v2206
    // Predicated region
    $region30: #{tpu_custom_call.1} parent=1 // pred_check
      _
    $region31: #{tpu_custom_call.1} parent=1 // pred_check_branch
      %2214 = sbr.rel (0) target = $region33
    $region32: #{tpu_custom_call.1} parent=1 // pred_region
      %s2216 = ssub.s32 256, 256
      %2217 = vsyncadd [#allocation6], %s2216
      %s2218 = sshll.u32 [#allocation10], 4
      %s2219 = int_to_ptr.vmem [resolvable:$true] %s2218
      %2224 = dma.vmem_to_hbm [thread:$0]  %s2219, 256, %s4, [#allocation6], 128, 128, 8
    $region33: #{tpu_custom_call.1} parent=1 // pred_fallthru
      _
    // Predicated region
    $region34: #{tpu_custom_call.1} parent=1 // pred_check
      _
    $region35: #{tpu_custom_call.1} parent=1 // pred_check_branch
      %2226 = sbr.rel (0) target = $region37
    $region36: #{tpu_custom_call.1} parent=1 // pred_region
      %s2228 = ssub.s32 256, 256
      %2229 = vsyncadd [#allocation12], %s2228
      %s2230 = sshll.u32 [#allocation11], 4
      %s2231 = int_to_ptr.vmem [resolvable:$true] %s2230
      %2236 = dma.vmem_to_hbm [thread:$0]  %s2231, 256, %s5, [#allocation12], 128, 128, 8
    $region37: #{tpu_custom_call.1} parent=1 // pred_fallthru
      _
    // Predicated region
    $region38: #{tpu_custom_call.1} parent=1 // pred_check
      _
    $region39: #{tpu_custom_call.1} parent=1 // pred_check_branch
      %2238 = sbr.rel (0) target = $region41
    $region40: #{tpu_custom_call.1} parent=1 // pred_region
      %2239 = dma.done [#allocation6], 256
    $region41: #{tpu_custom_call.1} parent=1 // pred_fallthru
      _
    // Predicated region
    $region42: #{tpu_custom_call.1} parent=1 // pred_check
      _
    $region43: #{tpu_custom_call.1} parent=1 // pred_check_branch
      %2241 = sbr.rel (0) target = $region45
    $region44: #{tpu_custom_call.1} parent=1 // pred_region
      %2242 = dma.done [#allocation12], 256
    $region45: #{tpu_custom_call.1} parent=1 // pred_fallthru
      _
    %2243 = vsyncpa [#allocation5], 1
    %2244 = vsyncpa [#allocation8], 1
    %2245 = vsyncpa [#allocation6], 1
    %2246 = vsyncpa [#allocation12], 1

</llo_original>
